<compile_context>
chip_gen: v7x
topology: tpu7x:2x2x1
jax: 0.10.0
libtpu: 0.0.40
codegen_flags: <defaults>
</compile_context>

<pallas_src>
import functools

import jax
import jax.numpy as jnp
from jax.experimental import pallas as pl
from jax.experimental.pallas import tpu as pltpu

SELU_ALPHA = 1.6732632423543772
SELU_SCALE = 1.0507009873554805

IN_DIM, HID_DIM, IMG_DIM = 784, 400, 784
IN_PAD, HID_PAD, IMG_PAD = 896, 512, 896   # multiples of 128 (896 = 7*128, 512 = 4*128)


# ---------------------------------------------------------------------------
# Fused kernel (one batch tile): encode -> reparametrize (base + K samples)
#                                -> decode all samples in one MXU pass -> average
# ---------------------------------------------------------------------------
def vae_fused_kernel(x_ref, eps_ref, mask_ref, triu_ref,
                     w1_ref, b1_ref, wh_ref, bh_ref,
                     wd1_ref, bd1_ref, wd2_ref, bd2_ref,
                     img_ref, *, dim_z, num_samples):
    Dz, S = dim_z, num_samples
    TB = x_ref.shape[0]                              # rows in this batch tile

    # ----- encode: 784(pad 896) -> 400(pad 512) SELU ---------------------------
    w1 = w1_ref[...].astype(jnp.float32)             # bf16 -> f32 (cheap, DMA-hidden)
    h = jnp.dot(x_ref[...], w1, preferred_element_type=jnp.float32) + b1_ref[...]
    h = SELU_SCALE * jnp.where(h > 0, h,
                               SELU_ALPHA * (jnp.exp(jnp.minimum(h, 0.0)) - 1.0))

    # ----- fused heads: one matmul gives mean | log_sigma | L1 -----------------
    wh = wh_ref[...].astype(jnp.float32)
    heads = jnp.dot(h, wh, preferred_element_type=jnp.float32) + bh_ref[...]
    mean = heads[:, 0:Dz]
    exp_ls = jnp.exp(heads[:, Dz:2 * Dz])
    # L1 kept lane-flat as [TB, Dz*Dz]; strict-upper mask applied exactly once.
    l1 = heads[:, 2 * Dz:2 * Dz + Dz * Dz] * triu_ref[...]
    l1_rows = [l1[:, i * Dz:(i + 1) * Dz] for i in range(Dz - 1)]

    eps = eps_ref                                    # [S, TB, Dz]

    # z = eps @ (triu(L1,1) + diag(exp(log_sigma))) + mean, via static lane slices.
    def reparam(eps_s):                              # eps_s: [TB, Dz]
        z = mean + eps_s * exp_ls                    # diagonal term + mean
        for i in range(Dz - 1):                      # static unroll, Dz is small
            z = z + eps_s[:, i:i + 1] * l1_rows[i]
        return z

    z_base = reparam(eps[0])

    if S == 1:                                       # del_features == [] branch
        dec_in = z_base                              # [TB, Dz]
        n_dec = 1
    else:                                            # K-sample feature-swap branch
        mask = mask_ref[...]                         # [1, Dz]; 1 -> take fresh sample
        keep = 1.0 - mask
        zs = [mask * reparam(eps[s]) + keep * z_base for s in range(1, S)]
        dec_in = jnp.concatenate(zs, axis=0)         # [(S-1)*TB, Dz]  (M-batched)
        n_dec = S - 1

    # ----- decode all samples in one pair of MXU matmuls -----------------------
    hd = jnp.dot(dec_in, wd1_ref[...], preferred_element_type=jnp.float32) + bd1_ref[...]
    hd = jnp.maximum(hd, 0.0)
    wd2 = wd2_ref[...].astype(jnp.float32)
    img = jnp.tanh(jnp.dot(hd, wd2, preferred_element_type=jnp.float32)
                   + bd2_ref[...])                   # [n_dec*TB, IMG_PAD]

    if n_dec == 1:
        img_ref[...] = img
    else:
        acc = img[0:TB, :]
        for k in range(1, n_dec):
            acc = acc + img[k * TB:(k + 1) * TB, :]
        img_ref[...] = acc * (1.0 / n_dec)


# ---------------------------------------------------------------------------
# pallas_call wrapper — mirrors VAE.forward(x, del_features, K)
# ---------------------------------------------------------------------------
def vae_forward_pallas(kparams, x, eps_all, del_features, K, *, tile_rows=None):
    B = x.shape[0]
    Dz = kparams["wd1"].shape[0]
    in_pad = kparams["w1"].shape[0]
    img_pad = kparams["wd2"].shape[1]

    if len(del_features) == 0:
        S = 1
        eps = eps_all[0:1]                                          # [1, B, Dz]
        mask = jnp.zeros((1, Dz), jnp.float32)                      # unused
    else:
        S = K + 1
        eps = eps_all[:K + 1]                                       # [K+1, B, Dz]
        mask = jnp.zeros((1, Dz), jnp.float32).at[0, jnp.array(del_features)].set(1.0)

    # strict-upper-triangular mask of L1, flattened once on the host side
    tri = jnp.triu(jnp.ones((Dz, Dz), jnp.float32), k=1).reshape(1, Dz * Dz)

    x_p = jnp.pad(x, ((0, 0), (0, in_pad - x.shape[1])))            # 784 -> 896

    # Batch tiling: <=256 rows/tile keeps resident weights + double-buffered tiles
    # well inside v7x's 64 MiB/TC VMEM (sized for the smallest generation first).
    if tile_rows is None:
        tile_rows = min(B, 256)
    assert B % tile_rows == 0 and tile_rows % 8 == 0, "batch must tile into 8-row multiples"
    num_tiles = B // tile_rows

    kernel = functools.partial(vae_fused_kernel, dim_z=Dz, num_samples=S)

    def const_spec(shape):
        # weights / small constants: constant block index -> VMEM-resident across grid
        return pl.BlockSpec(shape, lambda i, _s=shape: (0,) * len(_s))

    grid_spec = pltpu.PrefetchScalarGridSpec(
        num_scalar_prefetch=0,
        grid=(num_tiles,),
        in_specs=[
            pl.BlockSpec((tile_rows, in_pad), lambda i: (i, 0)),    # x tile
            pl.BlockSpec((S, tile_rows, Dz), lambda i: (0, i, 0)),  # eps tile
            const_spec((1, Dz)),                                    # del-feature mask
            const_spec((1, Dz * Dz)),                               # triu mask
            const_spec(kparams["w1"].shape), const_spec(kparams["b1"].shape),
            const_spec(kparams["wh"].shape), const_spec(kparams["bh"].shape),
            const_spec(kparams["wd1"].shape), const_spec(kparams["bd1"].shape),
            const_spec(kparams["wd2"].shape), const_spec(kparams["bd2"].shape),
        ],
        out_specs=pl.BlockSpec((tile_rows, img_pad), lambda i: (i, 0)),
    )

    img = pl.pallas_call(
        kernel,
        out_shape=jax.ShapeDtypeStruct((B, img_pad), jnp.float32),
        grid_spec=grid_spec,
        compiler_params=pltpu.CompilerParams(dimension_semantics=("parallel",)),
    )(x_p, eps, mask, tri,
      kparams["w1"], kparams["b1"], kparams["wh"], kparams["bh"],
      kparams["wd1"], kparams["bd1"], kparams["wd2"], kparams["bd2"])

    # match torch's bmm-induced [B, 1, 784] output shape
    return img[:, None, :IMG_DIM]


# ---------------------------------------------------------------------------
# Pure-JAX reference (mirrors the PyTorch module semantics, unpadded weights)
# ---------------------------------------------------------------------------
def vae_forward_ref(params, x, eps_all, del_features, K):
    B = x.shape[0]
    Dz = params["w21"].shape[1]

    def selu(v):
        return SELU_SCALE * jnp.where(v > 0, v, SELU_ALPHA * (jnp.exp(v) - 1.0))

    h = selu(x @ params["w1"] + params["b1"])
    mean = h @ params["w21"] + params["b21"]
    log_sigma = h @ params["w22"] + params["b22"]
    L1 = (h @ params["w23"] + params["b23"]).reshape(B, Dz, Dz)
    L1 = jnp.triu(L1, k=1)
    L = L1 + jnp.eye(Dz, dtype=jnp.float32)[None] * jnp.exp(log_sigma)[:, :, None]

    def reparam(eps):
        return jnp.einsum("bi,bij->bj", eps, L) + mean

    def decode(z):
        hd = jnp.maximum(z @ params["wd1"] + params["bd1"], 0.0)
        return jnp.tanh(hd @ params["wd2"] + params["bd2"])

    z = reparam(eps_all[0])
    if len(del_features) == 0:
        return decode(z)[:, None, :]
    idx = jnp.array(del_features)
    fake = jnp.zeros((B, IMG_DIM), jnp.float32)
    for k in range(K):
        sample = reparam(eps_all[k + 1])
        z_copy = z.at[:, idx].set(sample[:, idx])
        fake = fake + decode(z_copy) / K
    return fake[:, None, :]


# ---------------------------------------------------------------------------
# Deterministic parameter init (PyTorch Linear-style uniform(-1/sqrt(in), 1/sqrt(in)))
# ---------------------------------------------------------------------------
def _linear(key, fan_in, fan_out):
    kw, kb = jax.random.split(key)
    bound = 1.0 / (fan_in ** 0.5)
    w = jax.random.uniform(kw, (fan_in, fan_out), jnp.float32, -bound, bound)
    b = jax.random.uniform(kb, (1, fan_out), jnp.float32, -bound, bound)
    return w, b


def init_params(key, dim_z):
    ks = jax.random.split(key, 6)
    p = {}
    p["w1"], p["b1"] = _linear(ks[0], IN_DIM, HID_DIM)
    p["w21"], p["b21"] = _linear(ks[1], HID_DIM, dim_z)
    p["w22"], p["b22"] = _linear(ks[2], HID_DIM, dim_z)
    p["w23"], p["b23"] = _linear(ks[3], HID_DIM, dim_z * dim_z)
    p["wd1"], p["bd1"] = _linear(ks[4], dim_z, HID_DIM)
    p["wd2"], p["bd2"] = _linear(ks[5], HID_DIM, IMG_DIM)
    return p


def _pad2(a, rows, cols):
    r, c = a.shape
    return jnp.pad(a, ((0, rows - r), (0, cols - c)))


def prepare_params(p, dim_z):
    """Kernel weights: lane/MXU padded, heads fused, big matrices stored in bf16.
    Reference weights: identical values (bf16-rounded big matrices, exact biases),
    so the allclose check validates the kernel, not the storage-format choice."""
    heads_cols = 2 * dim_z + dim_z * dim_z
    heads_pad = ((heads_cols + 127) // 128) * 128

    w_heads = jnp.concatenate([p["w21"], p["w22"], p["w23"]], axis=1)   # [400, 2Dz+Dz^2]
    b_heads = jnp.concatenate([p["b21"], p["b22"], p["b23"]], axis=1)

    k = {}
    k["w1"] = _pad2(p["w1"], IN_PAD, HID_PAD).astype(jnp.bfloat16)
    k["b1"] = _pad2(p["b1"], 1, HID_PAD)
    k["wh"] = _pad2(w_heads, HID_PAD, heads_pad).astype(jnp.bfloat16)
    k["bh"] = _pad2(b_heads, 1, heads_pad)
    k["wd1"] = _pad2(p["wd1"], dim_z, HID_PAD)
    k["bd1"] = _pad2(p["bd1"], 1, HID_PAD)
    k["wd2"] = _pad2(p["wd2"], HID_PAD, IMG_PAD).astype(jnp.bfloat16)
    k["bd2"] = _pad2(p["bd2"], 1, IMG_PAD)

    deq = lambda a: a.astype(jnp.bfloat16).astype(jnp.float32)
    r = dict(p)
    r["w1"] = deq(p["w1"])
    r["w21"] = deq(p["w21"])
    r["w22"] = deq(p["w22"])
    r["w23"] = deq(p["w23"])
    r["wd2"] = deq(p["wd2"])
    return k, r


# ---------------------------------------------------------------------------
if __name__ == "__main__":
    B, DIM_Z, K = 16, 8, 2          # two 8-row batch tiles -> exercises weight residency
    key = jax.random.PRNGKey(0)
    kx, kp, ke = jax.random.split(key, 3)

    params = init_params(kp, DIM_Z)
    kparams, rparams = prepare_params(params, DIM_Z)
    x = jax.random.normal(kx, (B, IN_DIM), jnp.float32)
    # eps_all[0] -> base reparametrize; eps_all[1:] -> the K samples in the loop.
    eps_all = jax.random.normal(ke, (K + 1, B, DIM_Z), jnp.float32)

    # Branch 1: del_features == []  -> single decode of the base z
    out_empty = vae_forward_pallas(kparams, x, eps_all, [], K, tile_rows=8)
    ref_empty = vae_forward_ref(rparams, x, eps_all, [], K)

    # Branch 2: del_features != []  -> K-sample averaged decode with feature swap
    del_features = [1, 3, 5]
    out_del = vae_forward_pallas(kparams, x, eps_all, del_features, K, tile_rows=8)
    ref_del = vae_forward_ref(rparams, x, eps_all, del_features, K)

    jax.block_until_ready((out_empty, out_del))

    assert out_empty.shape == (B, 1, IMG_DIM)
    assert out_del.shape == (B, 1, IMG_DIM)
    assert jnp.allclose(out_empty, ref_empty, atol=2e-3, rtol=2e-3)
    assert jnp.allclose(out_del, ref_del, atol=2e-3, rtol=2e-3)

    print("KERNEL_OK")
</pallas_src>

<mosaic_0001>
module attributes {stable_mosaic.version = 11 : i64} {
  func.func @vae_fused_kernel(%arg0: i32, %arg1: memref<8x896xf32, #tpu.memory_space<vmem>>, %arg2: memref<1x8x8xf32, #tpu.memory_space<vmem>>, %arg3: memref<1x8xf32, #tpu.memory_space<vmem>>, %arg4: memref<1x64xf32, #tpu.memory_space<vmem>>, %arg5: memref<896x512xbf16, #tpu.memory_space<vmem>>, %arg6: memref<1x512xf32, #tpu.memory_space<vmem>>, %arg7: memref<512x128xbf16, #tpu.memory_space<vmem>>, %arg8: memref<1x128xf32, #tpu.memory_space<vmem>>, %arg9: memref<8x512xf32, #tpu.memory_space<vmem>>, %arg10: memref<1x512xf32, #tpu.memory_space<vmem>>, %arg11: memref<512x896xbf16, #tpu.memory_space<vmem>>, %arg12: memref<1x896xf32, #tpu.memory_space<vmem>>, %arg13: memref<8x896xf32, #tpu.memory_space<vmem>>) attributes {dimension_semantics = [#tpu.dimension_semantics<parallel>], iteration_bounds = array<i64: 2>, scalar_prefetch = 0 : i64, scratch_operands = 0 : i64, tpu.core_type = #tpu.core_type<tc>, window_params = [{transform_indices = @transform_0, window_bounds = array<i64: 8, 896>}, {transform_indices = @transform_1, window_bounds = array<i64: 1, 8, 8>}, {pipeline_mode = #tpu.pipeline_mode<synchronous>, transform_indices = @transform_2, window_bounds = array<i64: 1, 8>}, {pipeline_mode = #tpu.pipeline_mode<synchronous>, transform_indices = @transform_3, window_bounds = array<i64: 1, 64>}, {pipeline_mode = #tpu.pipeline_mode<synchronous>, transform_indices = @transform_4, window_bounds = array<i64: 896, 512>}, {pipeline_mode = #tpu.pipeline_mode<synchronous>, transform_indices = @transform_5, window_bounds = array<i64: 1, 512>}, {pipeline_mode = #tpu.pipeline_mode<synchronous>, transform_indices = @transform_6, window_bounds = array<i64: 512, 128>}, {pipeline_mode = #tpu.pipeline_mode<synchronous>, transform_indices = @transform_7, window_bounds = array<i64: 1, 128>}, {pipeline_mode = #tpu.pipeline_mode<synchronous>, transform_indices = @transform_8, window_bounds = array<i64: 8, 512>}, {pipeline_mode = #tpu.pipeline_mode<synchronous>, transform_indices = @transform_9, window_bounds = array<i64: 1, 512>}, {pipeline_mode = #tpu.pipeline_mode<synchronous>, transform_indices = @transform_10, window_bounds = array<i64: 512, 896>}, {pipeline_mode = #tpu.pipeline_mode<synchronous>, transform_indices = @transform_11, window_bounds = array<i64: 1, 896>}, {transform_indices = @transform_12, window_bounds = array<i64: 8, 896>}]} {
    %c0 = arith.constant 0 : index
    %c0_0 = arith.constant 0 : index
    %0 = vector.load %arg5[%c0, %c0_0] : memref<896x512xbf16, #tpu.memory_space<vmem>>, vector<896x512xbf16>
    %1 = arith.extf %0 : vector<896x512xbf16> to vector<896x512xf32>
    %c0_1 = arith.constant 0 : index
    %c0_2 = arith.constant 0 : index
    %2 = vector.load %arg1[%c0_1, %c0_2] : memref<8x896xf32, #tpu.memory_space<vmem>>, vector<8x896xf32>
    %cst = arith.constant dense<0.000000e+00> : vector<8x512xf32>
    %3 = tpu.matmul %2, %1, %cst {dimension_numbers = #tpu.dot_dimension_numbers<[1], [0], [0], [1], [0, 0, 1, 1], [], []>} : vector<8x896xf32>, vector<896x512xf32>, vector<8x512xf32> -> vector<8x512xf32>
    %c0_3 = arith.constant 0 : index
    %c0_4 = arith.constant 0 : index
    %4 = vector.load %arg6[%c0_3, %c0_4] : memref<1x512xf32, #tpu.memory_space<vmem>>, vector<1x512xf32>
    %5 = vector.broadcast %4 : vector<1x512xf32> to vector<8x512xf32>
    %6 = arith.addf %3, %5 : vector<8x512xf32>
    %cst_5 = arith.constant 0.000000e+00 : f32
    %7 = vector.broadcast %cst_5 : f32 to vector<8x512xf32>
    %8 = arith.cmpf ogt, %6, %7 : vector<8x512xf32>
    %cst_6 = arith.constant 0.000000e+00 : f32
    %9 = vector.broadcast %cst_6 : f32 to vector<8x512xf32>
    %10 = arith.minimumf %6, %9 : vector<8x512xf32>
    %11 = math.exp %10 : vector<8x512xf32>
    %cst_7 = arith.constant 1.000000e+00 : f32
    %12 = vector.broadcast %cst_7 : f32 to vector<8x512xf32>
    %13 = arith.subf %11, %12 : vector<8x512xf32>
    %cst_8 = arith.constant 1.67326319 : f32
    %14 = vector.broadcast %cst_8 : f32 to vector<8x512xf32>
    %15 = arith.mulf %14, %13 : vector<8x512xf32>
    %16 = arith.select %8, %6, %15 : vector<8x512xi1>, vector<8x512xf32>
    %cst_9 = arith.constant 1.05070102 : f32
    %17 = vector.broadcast %cst_9 : f32 to vector<8x512xf32>
    %18 = arith.mulf %17, %16 : vector<8x512xf32>
    %c0_10 = arith.constant 0 : index
    %c0_11 = arith.constant 0 : index
    %19 = vector.load %arg7[%c0_10, %c0_11] : memref<512x128xbf16, #tpu.memory_space<vmem>>, vector<512x128xbf16>
    %20 = arith.extf %19 : vector<512x128xbf16> to vector<512x128xf32>
    %cst_12 = arith.constant dense<0.000000e+00> : vector<8x128xf32>
    %21 = tpu.matmul %18, %20, %cst_12 {dimension_numbers = #tpu.dot_dimension_numbers<[1], [0], [0], [1], [0, 0, 1, 1], [], []>} : vector<8x512xf32>, vector<512x128xf32>, vector<8x128xf32> -> vector<8x128xf32>
    %c0_13 = arith.constant 0 : index
    %c0_14 = arith.constant 0 : index
    %22 = vector.load %arg8[%c0_13, %c0_14] : memref<1x128xf32, #tpu.memory_space<vmem>>, vector<1x128xf32>
    %23 = vector.broadcast %22 : vector<1x128xf32> to vector<8x128xf32>
    %24 = arith.addf %21, %23 : vector<8x128xf32>
    %25 = vector.extract_strided_slice %24 {offsets = [0, 0], sizes = [8, 8], strides = [1, 1]} : vector<8x128xf32> to vector<8x8xf32>
    %26 = vector.extract_strided_slice %24 {offsets = [0, 8], sizes = [8, 8], strides = [1, 1]} : vector<8x128xf32> to vector<8x8xf32>
    %27 = math.exp %26 : vector<8x8xf32>
    %28 = vector.extract_strided_slice %24 {offsets = [0, 16], sizes = [8, 64], strides = [1, 1]} : vector<8x128xf32> to vector<8x64xf32>
    %c0_15 = arith.constant 0 : index
    %c0_16 = arith.constant 0 : index
    %29 = vector.load %arg4[%c0_15, %c0_16] : memref<1x64xf32, #tpu.memory_space<vmem>>, vector<1x64xf32>
    %30 = vector.broadcast %29 : vector<1x64xf32> to vector<8x64xf32>
    %31 = arith.mulf %28, %30 : vector<8x64xf32>
    %32 = vector.extract_strided_slice %31 {offsets = [0, 0], sizes = [8, 8], strides = [1, 1]} : vector<8x64xf32> to vector<8x8xf32>
    %33 = vector.extract_strided_slice %31 {offsets = [0, 8], sizes = [8, 8], strides = [1, 1]} : vector<8x64xf32> to vector<8x8xf32>
    %34 = vector.extract_strided_slice %31 {offsets = [0, 16], sizes = [8, 8], strides = [1, 1]} : vector<8x64xf32> to vector<8x8xf32>
    %35 = vector.extract_strided_slice %31 {offsets = [0, 24], sizes = [8, 8], strides = [1, 1]} : vector<8x64xf32> to vector<8x8xf32>
    %36 = vector.extract_strided_slice %31 {offsets = [0, 32], sizes = [8, 8], strides = [1, 1]} : vector<8x64xf32> to vector<8x8xf32>
    %37 = vector.extract_strided_slice %31 {offsets = [0, 40], sizes = [8, 8], strides = [1, 1]} : vector<8x64xf32> to vector<8x8xf32>
    %38 = vector.extract_strided_slice %31 {offsets = [0, 48], sizes = [8, 8], strides = [1, 1]} : vector<8x64xf32> to vector<8x8xf32>
    %c0_17 = arith.constant 0 : index
    %c0_18 = arith.constant 0 : index
    %c0_19 = arith.constant 0 : index
    %39 = vector.load %arg2[%c0_17, %c0_18, %c0_19] : memref<1x8x8xf32, #tpu.memory_space<vmem>>, vector<1x8x8xf32>
    %40 = vector.shape_cast %39 : vector<1x8x8xf32> to vector<8x8xf32>
    %41 = arith.mulf %40, %27 : vector<8x8xf32>
    %42 = arith.addf %25, %41 : vector<8x8xf32>
    %43 = vector.extract_strided_slice %40 {offsets = [0, 0], sizes = [8, 1], strides = [1, 1]} : vector<8x8xf32> to vector<8x1xf32>
    %44 = vector.broadcast %43 : vector<8x1xf32> to vector<8x8xf32>
    %45 = arith.mulf %44, %32 : vector<8x8xf32>
    %46 = arith.addf %42, %45 : vector<8x8xf32>
    %47 = vector.extract_strided_slice %40 {offsets = [0, 1], sizes = [8, 1], strides = [1, 1]} : vector<8x8xf32> to vector<8x1xf32>
    %48 = vector.broadcast %47 : vector<8x1xf32> to vector<8x8xf32>
    %49 = arith.mulf %48, %33 : vector<8x8xf32>
    %50 = arith.addf %46, %49 : vector<8x8xf32>
    %51 = vector.extract_strided_slice %40 {offsets = [0, 2], sizes = [8, 1], strides = [1, 1]} : vector<8x8xf32> to vector<8x1xf32>
    %52 = vector.broadcast %51 : vector<8x1xf32> to vector<8x8xf32>
    %53 = arith.mulf %52, %34 : vector<8x8xf32>
    %54 = arith.addf %50, %53 : vector<8x8xf32>
    %55 = vector.extract_strided_slice %40 {offsets = [0, 3], sizes = [8, 1], strides = [1, 1]} : vector<8x8xf32> to vector<8x1xf32>
    %56 = vector.broadcast %55 : vector<8x1xf32> to vector<8x8xf32>
    %57 = arith.mulf %56, %35 : vector<8x8xf32>
    %58 = arith.addf %54, %57 : vector<8x8xf32>
    %59 = vector.extract_strided_slice %40 {offsets = [0, 4], sizes = [8, 1], strides = [1, 1]} : vector<8x8xf32> to vector<8x1xf32>
    %60 = vector.broadcast %59 : vector<8x1xf32> to vector<8x8xf32>
    %61 = arith.mulf %60, %36 : vector<8x8xf32>
    %62 = arith.addf %58, %61 : vector<8x8xf32>
    %63 = vector.extract_strided_slice %40 {offsets = [0, 5], sizes = [8, 1], strides = [1, 1]} : vector<8x8xf32> to vector<8x1xf32>
    %64 = vector.broadcast %63 : vector<8x1xf32> to vector<8x8xf32>
    %65 = arith.mulf %64, %37 : vector<8x8xf32>
    %66 = arith.addf %62, %65 : vector<8x8xf32>
    %67 = vector.extract_strided_slice %40 {offsets = [0, 6], sizes = [8, 1], strides = [1, 1]} : vector<8x8xf32> to vector<8x1xf32>
    %68 = vector.broadcast %67 : vector<8x1xf32> to vector<8x8xf32>
    %69 = arith.mulf %68, %38 : vector<8x8xf32>
    %70 = arith.addf %66, %69 : vector<8x8xf32>
    %c0_20 = arith.constant 0 : index
    %c0_21 = arith.constant 0 : index
    %71 = vector.load %arg9[%c0_20, %c0_21] : memref<8x512xf32, #tpu.memory_space<vmem>>, vector<8x512xf32>
    %cst_22 = arith.constant dense<0.000000e+00> : vector<8x512xf32>
    %72 = tpu.matmul %70, %71, %cst_22 {dimension_numbers = #tpu.dot_dimension_numbers<[1], [0], [0], [1], [0, 0, 1, 1], [], []>} : vector<8x8xf32>, vector<8x512xf32>, vector<8x512xf32> -> vector<8x512xf32>
    %c0_23 = arith.constant 0 : index
    %c0_24 = arith.constant 0 : index
    %73 = vector.load %arg10[%c0_23, %c0_24] : memref<1x512xf32, #tpu.memory_space<vmem>>, vector<1x512xf32>
    %74 = vector.broadcast %73 : vector<1x512xf32> to vector<8x512xf32>
    %75 = arith.addf %72, %74 : vector<8x512xf32>
    %cst_25 = arith.constant 0.000000e+00 : f32
    %76 = vector.broadcast %cst_25 : f32 to vector<8x512xf32>
    %77 = arith.maximumf %75, %76 : vector<8x512xf32>
    %c0_26 = arith.constant 0 : index
    %c0_27 = arith.constant 0 : index
    %78 = vector.load %arg11[%c0_26, %c0_27] : memref<512x896xbf16, #tpu.memory_space<vmem>>, vector<512x896xbf16>
    %79 = arith.extf %78 : vector<512x896xbf16> to vector<512x896xf32>
    %cst_28 = arith.constant dense<0.000000e+00> : vector<8x896xf32>
    %80 = tpu.matmul %77, %79, %cst_28 {dimension_numbers = #tpu.dot_dimension_numbers<[1], [0], [0], [1], [0, 0, 1, 1], [], []>} : vector<8x512xf32>, vector<512x896xf32>, vector<8x896xf32> -> vector<8x896xf32>
    %c0_29 = arith.constant 0 : index
    %c0_30 = arith.constant 0 : index
    %81 = vector.load %arg12[%c0_29, %c0_30] : memref<1x896xf32, #tpu.memory_space<vmem>>, vector<1x896xf32>
    %82 = vector.broadcast %81 : vector<1x896xf32> to vector<8x896xf32>
    %83 = arith.addf %80, %82 : vector<8x896xf32>
    %84 = math.tanh %83 : vector<8x896xf32>
    %c0_31 = arith.constant 0 : index
    %c0_32 = arith.constant 0 : index
    %85 = vector.load %arg13[%c0_31, %c0_32] : memref<8x896xf32, #tpu.memory_space<vmem>>, vector<8x896xf32>
    tpu.vector_store %arg13[%c0_31, %c0_32], %84 {strides = array<i32>} : memref<8x896xf32, #tpu.memory_space<vmem>>, vector<8x896xf32>,
    return
  }
  func.func @transform_0(%arg0: i32) -> (i32, i32) {
    %c0_i32 = arith.constant 0 : i32
    %c0_i32_0 = arith.constant 0 : i32
    return %arg0, %c0_i32 : i32, i32
  }
  func.func @transform_1(%arg0: i32) -> (i32, i32, i32) {
    %c0_i32 = arith.constant 0 : i32
    %c0_i32_0 = arith.constant 0 : i32
    %c0_i32_1 = arith.constant 0 : i32
    return %c0_i32, %arg0, %c0_i32_0 : i32, i32, i32
  }
  func.func @transform_2(%arg0: i32) -> (i32, i32) {
    %c0_i32 = arith.constant 0 : i32
    %c0_i32_0 = arith.constant 0 : i32
    %c0_i32_1 = arith.constant 0 : i32
    return %c0_i32, %c0_i32_0 : i32, i32
  }
  func.func @transform_3(%arg0: i32) -> (i32, i32) {
    %c0_i32 = arith.constant 0 : i32
    %c0_i32_0 = arith.constant 0 : i32
    %c0_i32_1 = arith.constant 0 : i32
    return %c0_i32, %c0_i32_0 : i32, i32
  }
  func.func @transform_4(%arg0: i32) -> (i32, i32) {
    %c0_i32 = arith.constant 0 : i32
    %c0_i32_0 = arith.constant 0 : i32
    %c0_i32_1 = arith.constant 0 : i32
    return %c0_i32, %c0_i32_0 : i32, i32
  }
  func.func @transform_5(%arg0: i32) -> (i32, i32) {
    %c0_i32 = arith.constant 0 : i32
    %c0_i32_0 = arith.constant 0 : i32
    %c0_i32_1 = arith.constant 0 : i32
    return %c0_i32, %c0_i32_0 : i32, i32
  }
  func.func @transform_6(%arg0: i32) -> (i32, i32) {
    %c0_i32 = arith.constant 0 : i32
    %c0_i32_0 = arith.constant 0 : i32
    %c0_i32_1 = arith.constant 0 : i32
    return %c0_i32, %c0_i32_0 : i32, i32
  }
  func.func @transform_7(%arg0: i32) -> (i32, i32) {
    %c0_i32 = arith.constant 0 : i32
    %c0_i32_0 = arith.constant 0 : i32
    %c0_i32_1 = arith.constant 0 : i32
    return %c0_i32, %c0_i32_0 : i32, i32
  }
  func.func @transform_8(%arg0: i32) -> (i32, i32) {
    %c0_i32 = arith.constant 0 : i32
    %c0_i32_0 = arith.constant 0 : i32
    %c0_i32_1 = arith.constant 0 : i32
    return %c0_i32, %c0_i32_0 : i32, i32
  }
  func.func @transform_9(%arg0: i32) -> (i32, i32) {
    %c0_i32 = arith.constant 0 : i32
    %c0_i32_0 = arith.constant 0 : i32
    %c0_i32_1 = arith.constant 0 : i32
    return %c0_i32, %c0_i32_0 : i32, i32
  }
  func.func @transform_10(%arg0: i32) -> (i32, i32) {
    %c0_i32 = arith.constant 0 : i32
    %c0_i32_0 = arith.constant 0 : i32
    %c0_i32_1 = arith.constant 0 : i32
    return %c0_i32, %c0_i32_0 : i32, i32
  }
  func.func @transform_11(%arg0: i32) -> (i32, i32) {
    %c0_i32 = arith.constant 0 : i32
    %c0_i32_0 = arith.constant 0 : i32
    %c0_i32_1 = arith.constant 0 : i32
    return %c0_i32, %c0_i32_0 : i32, i32
  }
  func.func @transform_12(%arg0: i32) -> (i32, i32) {
    %c0_i32 = arith.constant 0 : i32
    %c0_i32_0 = arith.constant 0 : i32
    return %arg0, %c0_i32 : i32, i32
  }
}

</mosaic_0001>

<llo_original>
// kernel: tpu_custom_call.1
$region0: #{tpu_custom_call.1}
  #allocation0 [shape = 'u32[]', space=smem, size = 0x4, offset = 0x4, fixed_abs, tag = 'smem constant byte address 0x4 - core index']
  #allocation1 [shape = 'u32[144,128]{1,0:T(1,128)}', space=vmem, size = 0x12000, scoped, tag = 'internal scratch']
  %s0 = inlined_call_operand.hbm [shape: f32[16,896], index: 0, kind: input, shape index: {}]
  %s1 = inlined_call_operand.vmem [shape: f32[1,16,8], index: 1, kind: input, shape index: {}]
  %s2 = inlined_call_operand.vmem [shape: f32[1,8], index: 2, kind: input, shape index: {}]
  %s3 = inlined_call_operand.vmem [shape: f32[1,64], index: 3, kind: input, shape index: {}]
  %s4 = inlined_call_operand.hbm [shape: bf16[896,512], index: 4, kind: input, shape index: {}]
  %s5 = inlined_call_operand.vmem [shape: f32[1,512], index: 5, kind: input, shape index: {}]
  %s6 = inlined_call_operand.hbm [shape: bf16[512,128], index: 6, kind: input, shape index: {}]
  %s7 = inlined_call_operand.vmem [shape: f32[1,128], index: 7, kind: input, shape index: {}]
  %s8 = inlined_call_operand.vmem [shape: f32[8,512], index: 8, kind: input, shape index: {}]
  %s9 = inlined_call_operand.vmem [shape: f32[1,512], index: 9, kind: input, shape index: {}]
  %s10 = inlined_call_operand.hbm [shape: bf16[512,896], index: 10, kind: input, shape index: {}]
  %s11 = inlined_call_operand.vmem [shape: f32[1,896], index: 11, kind: input, shape index: {}]
  %s12 = inlined_call_operand.hbm [shape: f32[16,896], index: 12, kind: output, shape index: {}]
  %s13 = sld [smem:[#allocation0]]
  $region97: #{tpu_custom_call.1} parent=0
    _
  %s15 = ssub.s32 1, %s13
  %s16 = scalar_select 0, %s15, %s13
  $region1: #{tpu_custom_call.1} parent=0
    #allocation2 [shape = 'u8[57344]{0}', space=vmem, size = 0xe000, scoped, tag = 'input window, operand 0']
    #allocation3 [shape = 's32[2]{0}', space=sflag, size = 0x8, scoped, tag = 'scoped memory for tpu_custom_call.1']
    #allocation4 [shape = 's32[2]{0}', space=sflag, size = 0x8, scoped, tag = 'scoped memory for tpu_custom_call.1']
    #allocation5 [shape = 'u8[917504]{0}', space=vmem, size = 0xe0000, scoped, tag = 'input window, operand 4, single buffered']
    #allocation6 [shape = 's32[1]{0}', space=sflag, size = 0x4, scoped, tag = 'scoped memory for tpu_custom_call.1']
    #allocation7 [shape = 'u8[131072]{0}', space=vmem, size = 0x20000, scoped, tag = 'input window, operand 6, single buffered']
    #allocation8 [shape = 'u8[917504]{0}', space=vmem, size = 0xe0000, scoped, tag = 'input window, operand 10, single buffered']
    #allocation9 [shape = 's32[1]{0}', space=sflag, size = 0x4, scoped, tag = 'scoped memory for tpu_custom_call.1']
    #allocation10 [shape = 'u8[57344]{0}', space=vmem, size = 0xe000, scoped, tag = 'output window, operand 0']
    %17 = vsyncpa [#allocation3], 0
    %s18 = scalar_lea.sflag [#allocation3], 1
    %19 = vsyncpa %s18, 0
    %20 = vsyncpa [#allocation6], 0
    %21 = vsyncpa [#allocation9], 0
    %22 = vsyncpa [#allocation4], 0
    %s23 = scalar_lea.sflag [#allocation4], 1
    %24 = vsyncpa %s23, 0
    loop: start=0, step=1, limit=4
    $region2: #{tpu_custom_call.1} parent=1 // loop_pre_header
      _
    $region3: #{tpu_custom_call.1} parent=1 // loop_header
      %s26 = sphi 0, %s30
      %p27 = scmp.ge.s32.totalorder %s26, 4
      %s36 = sphi 0, %s38
      %s39 = sphi 0, %s36
      %s40 = sphi 0, %s39
      %s56 = sphi 0, %s40
      %s62 = sphi 0, %s64
      %s65 = sphi 0, %s62
      %s66 = sphi 0, %s65
      %s82 = sphi 0, %s66
      %s86 = sphi 0, %s86
      %s88 = sphi 0, %s86
      %s89 = sphi 0, %s88
      %s103 = sphi 0, %s89
      %s107 = sphi 0, %s107
      %s109 = sphi 0, %s107
      %s110 = sphi 0, %s109
      %s124 = sphi 0, %s110
      %s128 = sphi 0, %s128
      %s130 = sphi 0, %s128
      %s131 = sphi 0, %s130
      %s145 = sphi 0, %s131
      %s149 = sphi 0, %s149
      %s151 = sphi 0, %s149
      %s152 = sphi 0, %s151
      %s166 = sphi 0, %s152
      %s170 = sphi 0, %s170
      %s172 = sphi 0, %s170
      %s173 = sphi 0, %s172
      %s187 = sphi 0, %s173
      %s191 = sphi 0, %s191
      %s193 = sphi 0, %s191
      %s194 = sphi 0, %s193
      %s208 = sphi 0, %s194
      %s212 = sphi 0, %s212
      %s214 = sphi 0, %s212
      %s215 = sphi 0, %s214
      %s229 = sphi 0, %s215
      %s233 = sphi 0, %s233
      %s235 = sphi 0, %s233
      %s236 = sphi 0, %s235
      %s250 = sphi 0, %s236
      %s254 = sphi 0, %s254
      %s256 = sphi 0, %s254
      %s257 = sphi 0, %s256
      %s271 = sphi 0, %s257
      %s275 = sphi 0, %s275
      %s277 = sphi 0, %s275
      %s278 = sphi 0, %s277
      %s292 = sphi 0, %s278
      %s298 = sphi 0, %s300
      %s301 = sphi 0, %s298
      %s302 = sphi 0, %s301
      %s318 = sphi 0, %s302
    $region4: #{tpu_custom_call.1} parent=1 // loop_header_branch
      %29 = sbr.rel (%p27) target = $region8
    $region5: #{tpu_custom_call.1} parent=1 // loop_body
      %s31 = ssub.s32 %s26, 1
      %s32 = ssub.s32 %s26, 2
      %s33 = sadd.s32 %s26, 1
      %s34 = ssub.s32 %s26, %s33
      %p35 = scmp.eq.s32.totalorder %s34, 0
      %s37 = sadd.s32 %s36, 1
      %s38 = scalar_select %p35, %s36, %s37
      %p41 = pneg %p35
      %p42 = scmp.eq.s32.totalorder %s26, 1
      %p43 = por %p41, %p42
      %p44 = scmp.ne.s32.totalorder %s36, %s39
      %p45 = scmp.eq.s32.totalorder %s26, 0
      %p46 = por %p44, %p45
      %p47 = scmp.ne.s32.totalorder %s36, %s39
      %p48 = scmp.eq.s32.totalorder %s31, 1
      %p49 = por %p47, %p48
      %p50 = scmp.ne.s32.totalorder %s39, %s40
      %p51 = scmp.eq.s32.totalorder %s31, 0
      %p52 = por %p50, %p51
      %p53 = scmp.ne.s32.totalorder %s39, %s40
      %p54 = scmp.eq.s32.totalorder %s32, 1
      %p55 = por %p53, %p54
      %p57 = scmp.ne.s32.totalorder %s40, %s56
      %p58 = scmp.eq.s32.totalorder %s32, 0
      %p59 = por %p57, %p58
      %s60 = ssub.s32 %s26, %s33
      %p61 = scmp.eq.s32.totalorder %s60, 0
      %s63 = sadd.s32 %s62, 1
      %s64 = scalar_select %p61, %s62, %s63
      %p67 = pneg %p61
      %p68 = scmp.eq.s32.totalorder %s26, 1
      %p69 = por %p67, %p68
      %p70 = scmp.ne.s32.totalorder %s62, %s65
      %p71 = scmp.eq.s32.totalorder %s26, 0
      %p72 = por %p70, %p71
      %p73 = scmp.ne.s32.totalorder %s62, %s65
      %p74 = scmp.eq.s32.totalorder %s31, 1
      %p75 = por %p73, %p74
      %p76 = scmp.ne.s32.totalorder %s65, %s66
      %p77 = scmp.eq.s32.totalorder %s31, 0
      %p78 = por %p76, %p77
      %p79 = scmp.ne.s32.totalorder %s65, %s66
      %p80 = scmp.eq.s32.totalorder %s32, 1
      %p81 = por %p79, %p80
      %p83 = scmp.ne.s32.totalorder %s66, %s82
      %p84 = scmp.eq.s32.totalorder %s32, 0
      %p85 = por %p83, %p84
      %s87 = sadd.s32 %s86, 1
      %p90 = scmp.eq.s32.totalorder %s26, 1
      %p91 = scmp.ne.s32.totalorder %s86, %s88
      %p92 = scmp.eq.s32.totalorder %s26, 0
      %p93 = por %p91, %p92
      %p94 = scmp.ne.s32.totalorder %s86, %s88
      %p95 = scmp.eq.s32.totalorder %s31, 1
      %p96 = por %p94, %p95
      %p97 = scmp.ne.s32.totalorder %s88, %s89
      %p98 = scmp.eq.s32.totalorder %s31, 0
      %p99 = por %p97, %p98
      %p100 = scmp.ne.s32.totalorder %s88, %s89
      %p101 = scmp.eq.s32.totalorder %s32, 1
      %p102 = por %p100, %p101
      %p104 = scmp.ne.s32.totalorder %s89, %s103
      %p105 = scmp.eq.s32.totalorder %s32, 0
      %p106 = por %p104, %p105
      %s108 = sadd.s32 %s107, 1
      %p111 = scmp.eq.s32.totalorder %s26, 1
      %p112 = scmp.ne.s32.totalorder %s107, %s109
      %p113 = scmp.eq.s32.totalorder %s26, 0
      %p114 = por %p112, %p113
      %p115 = scmp.ne.s32.totalorder %s107, %s109
      %p116 = scmp.eq.s32.totalorder %s31, 1
      %p117 = por %p115, %p116
      %p118 = scmp.ne.s32.totalorder %s109, %s110
      %p119 = scmp.eq.s32.totalorder %s31, 0
      %p120 = por %p118, %p119
      %p121 = scmp.ne.s32.totalorder %s109, %s110
      %p122 = scmp.eq.s32.totalorder %s32, 1
      %p123 = por %p121, %p122
      %p125 = scmp.ne.s32.totalorder %s110, %s124
      %p126 = scmp.eq.s32.totalorder %s32, 0
      %p127 = por %p125, %p126
      %s129 = sadd.s32 %s128, 1
      %p132 = scmp.eq.s32.totalorder %s26, 1
      %p133 = scmp.ne.s32.totalorder %s128, %s130
      %p134 = scmp.eq.s32.totalorder %s26, 0
      %p135 = por %p133, %p134
      %p136 = scmp.ne.s32.totalorder %s128, %s130
      %p137 = scmp.eq.s32.totalorder %s31, 1
      %p138 = por %p136, %p137
      %p139 = scmp.ne.s32.totalorder %s130, %s131
      %p140 = scmp.eq.s32.totalorder %s31, 0
      %p141 = por %p139, %p140
      %p142 = scmp.ne.s32.totalorder %s130, %s131
      %p143 = scmp.eq.s32.totalorder %s32, 1
      %p144 = por %p142, %p143
      %p146 = scmp.ne.s32.totalorder %s131, %s145
      %p147 = scmp.eq.s32.totalorder %s32, 0
      %p148 = por %p146, %p147
      %s150 = sadd.s32 %s149, 1
      %p153 = scmp.eq.s32.totalorder %s26, 1
      %p154 = scmp.ne.s32.totalorder %s149, %s151
      %p155 = scmp.eq.s32.totalorder %s26, 0
      %p156 = por %p154, %p155
      %p157 = scmp.ne.s32.totalorder %s149, %s151
      %p158 = scmp.eq.s32.totalorder %s31, 1
      %p159 = por %p157, %p158
      %p160 = scmp.ne.s32.totalorder %s151, %s152
      %p161 = scmp.eq.s32.totalorder %s31, 0
      %p162 = por %p160, %p161
      %p163 = scmp.ne.s32.totalorder %s151, %s152
      %p164 = scmp.eq.s32.totalorder %s32, 1
      %p165 = por %p163, %p164
      %p167 = scmp.ne.s32.totalorder %s152, %s166
      %p168 = scmp.eq.s32.totalorder %s32, 0
      %p169 = por %p167, %p168
      %s171 = sadd.s32 %s170, 1
      %p174 = scmp.eq.s32.totalorder %s26, 1
      %p175 = scmp.ne.s32.totalorder %s170, %s172
      %p176 = scmp.eq.s32.totalorder %s26, 0
      %p177 = por %p175, %p176
      %p178 = scmp.ne.s32.totalorder %s170, %s172
      %p179 = scmp.eq.s32.totalorder %s31, 1
      %p180 = por %p178, %p179
      %p181 = scmp.ne.s32.totalorder %s172, %s173
      %p182 = scmp.eq.s32.totalorder %s31, 0
      %p183 = por %p181, %p182
      %p184 = scmp.ne.s32.totalorder %s172, %s173
      %p185 = scmp.eq.s32.totalorder %s32, 1
      %p186 = por %p184, %p185
      %p188 = scmp.ne.s32.totalorder %s173, %s187
      %p189 = scmp.eq.s32.totalorder %s32, 0
      %p190 = por %p188, %p189
      %s192 = sadd.s32 %s191, 1
      %p195 = scmp.eq.s32.totalorder %s26, 1
      %p196 = scmp.ne.s32.totalorder %s191, %s193
      %p197 = scmp.eq.s32.totalorder %s26, 0
      %p198 = por %p196, %p197
      %p199 = scmp.ne.s32.totalorder %s191, %s193
      %p200 = scmp.eq.s32.totalorder %s31, 1
      %p201 = por %p199, %p200
      %p202 = scmp.ne.s32.totalorder %s193, %s194
      %p203 = scmp.eq.s32.totalorder %s31, 0
      %p204 = por %p202, %p203
      %p205 = scmp.ne.s32.totalorder %s193, %s194
      %p206 = scmp.eq.s32.totalorder %s32, 1
      %p207 = por %p205, %p206
      %p209 = scmp.ne.s32.totalorder %s194, %s208
      %p210 = scmp.eq.s32.totalorder %s32, 0
      %p211 = por %p209, %p210
      %s213 = sadd.s32 %s212, 1
      %p216 = scmp.eq.s32.totalorder %s26, 1
      %p217 = scmp.ne.s32.totalorder %s212, %s214
      %p218 = scmp.eq.s32.totalorder %s26, 0
      %p219 = por %p217, %p218
      %p220 = scmp.ne.s32.totalorder %s212, %s214
      %p221 = scmp.eq.s32.totalorder %s31, 1
      %p222 = por %p220, %p221
      %p223 = scmp.ne.s32.totalorder %s214, %s215
      %p224 = scmp.eq.s32.totalorder %s31, 0
      %p225 = por %p223, %p224
      %p226 = scmp.ne.s32.totalorder %s214, %s215
      %p227 = scmp.eq.s32.totalorder %s32, 1
      %p228 = por %p226, %p227
      %p230 = scmp.ne.s32.totalorder %s215, %s229
      %p231 = scmp.eq.s32.totalorder %s32, 0
      %p232 = por %p230, %p231
      %s234 = sadd.s32 %s233, 1
      %p237 = scmp.eq.s32.totalorder %s26, 1
      %p238 = scmp.ne.s32.totalorder %s233, %s235
      %p239 = scmp.eq.s32.totalorder %s26, 0
      %p240 = por %p238, %p239
      %p241 = scmp.ne.s32.totalorder %s233, %s235
      %p242 = scmp.eq.s32.totalorder %s31, 1
      %p243 = por %p241, %p242
      %p244 = scmp.ne.s32.totalorder %s235, %s236
      %p245 = scmp.eq.s32.totalorder %s31, 0
      %p246 = por %p244, %p245
      %p247 = scmp.ne.s32.totalorder %s235, %s236
      %p248 = scmp.eq.s32.totalorder %s32, 1
      %p249 = por %p247, %p248
      %p251 = scmp.ne.s32.totalorder %s236, %s250
      %p252 = scmp.eq.s32.totalorder %s32, 0
      %p253 = por %p251, %p252
      %s255 = sadd.s32 %s254, 1
      %p258 = scmp.eq.s32.totalorder %s26, 1
      %p259 = scmp.ne.s32.totalorder %s254, %s256
      %p260 = scmp.eq.s32.totalorder %s26, 0
      %p261 = por %p259, %p260
      %p262 = scmp.ne.s32.totalorder %s254, %s256
      %p263 = scmp.eq.s32.totalorder %s31, 1
      %p264 = por %p262, %p263
      %p265 = scmp.ne.s32.totalorder %s256, %s257
      %p266 = scmp.eq.s32.totalorder %s31, 0
      %p267 = por %p265, %p266
      %p268 = scmp.ne.s32.totalorder %s256, %s257
      %p269 = scmp.eq.s32.totalorder %s32, 1
      %p270 = por %p268, %p269
      %p272 = scmp.ne.s32.totalorder %s257, %s271
      %p273 = scmp.eq.s32.totalorder %s32, 0
      %p274 = por %p272, %p273
      %s276 = sadd.s32 %s275, 1
      %p279 = scmp.eq.s32.totalorder %s26, 1
      %p280 = scmp.ne.s32.totalorder %s275, %s277
      %p281 = scmp.eq.s32.totalorder %s26, 0
      %p282 = por %p280, %p281
      %p283 = scmp.ne.s32.totalorder %s275, %s277
      %p284 = scmp.eq.s32.totalorder %s31, 1
      %p285 = por %p283, %p284
      %p286 = scmp.ne.s32.totalorder %s277, %s278
      %p287 = scmp.eq.s32.totalorder %s31, 0
      %p288 = por %p286, %p287
      %p289 = scmp.ne.s32.totalorder %s277, %s278
      %p290 = scmp.eq.s32.totalorder %s32, 1
      %p291 = por %p289, %p290
      %p293 = scmp.ne.s32.totalorder %s278, %s292
      %p294 = scmp.eq.s32.totalorder %s32, 0
      %p295 = por %p293, %p294
      %s296 = ssub.s32 %s26, %s33
      %p297 = scmp.eq.s32.totalorder %s296, 0
      %s299 = sadd.s32 %s298, 1
      %s300 = scalar_select %p297, %s298, %s299
      %p303 = pneg %p297
      %p304 = scmp.eq.s32.totalorder %s26, 1
      %p305 = por %p303, %p304
      %p306 = scmp.ne.s32.totalorder %s298, %s301
      %p307 = scmp.eq.s32.totalorder %s26, 0
      %p308 = por %p306, %p307
      %p309 = scmp.ne.s32.totalorder %s298, %s301
      %p310 = scmp.eq.s32.totalorder %s31, 1
      %p311 = por %p309, %p310
      %p312 = scmp.ne.s32.totalorder %s301, %s302
      %p313 = scmp.eq.s32.totalorder %s31, 0
      %p314 = por %p312, %p313
      %p315 = scmp.ne.s32.totalorder %s301, %s302
      %p316 = scmp.eq.s32.totalorder %s32, 1
      %p317 = por %p315, %p316
      %p319 = scmp.ne.s32.totalorder %s302, %s318
      %p320 = scmp.eq.s32.totalorder %s32, 0
      %p321 = por %p319, %p320
      %p322 = scmp.le.s32.totalorder 1, %s26
      %p323 = scmp.lt.s32.totalorder %s26, 3
      %p324 = pnand %p322, %p323
      %p325 = pneg %p324
      // Predicated region
      $region9: #{tpu_custom_call.1} parent=5 // pred_check
        _
      $region10: #{tpu_custom_call.1} parent=5 // pred_check_branch
        %327 = sbr.rel (%p324) target = $region12
      $region11: #{tpu_custom_call.1} parent=5 // pred_region
        %s328 = ssub.s32 %s26, 1
        // Predicated region
        $region13: #{tpu_custom_call.1} parent=11 // pred_check
          %p329 = pneg %p99
        $region14: #{tpu_custom_call.1} parent=11 // pred_check_branch
          %331 = sbr.rel (%p329) target = $region16
        $region15: #{tpu_custom_call.1} parent=11 // pred_region
          _
        $region16: #{tpu_custom_call.1} parent=11 // pred_fallthru
          _
        // Predicated region
        $region17: #{tpu_custom_call.1} parent=11 // pred_check
          %p332 = pneg %p120
        $region18: #{tpu_custom_call.1} parent=11 // pred_check_branch
          %334 = sbr.rel (%p332) target = $region20
        $region19: #{tpu_custom_call.1} parent=11 // pred_region
          _
        $region20: #{tpu_custom_call.1} parent=11 // pred_fallthru
          _
        // Predicated region
        $region21: #{tpu_custom_call.1} parent=11 // pred_check
          %p335 = pneg %p141
        $region22: #{tpu_custom_call.1} parent=11 // pred_check_branch
          %337 = sbr.rel (%p335) target = $region24
        $region23: #{tpu_custom_call.1} parent=11 // pred_region
          %s339 = ssub.s32 28672, 28672
          %340 = vsyncadd [#allocation6], %s339
          %s341 = sshll.u32 [#allocation5], 4
          %s342 = int_to_ptr.vmem [resolvable:$true] %s341
          %347 = dma.hbm_to_vmem [thread:$0]  %s4, 28672, %s342, [#allocation6], 256, 256, 16
        $region24: #{tpu_custom_call.1} parent=11 // pred_fallthru
          _
        // Predicated region
        $region25: #{tpu_custom_call.1} parent=11 // pred_check
          %p348 = pneg %p162
        $region26: #{tpu_custom_call.1} parent=11 // pred_check_branch
          %350 = sbr.rel (%p348) target = $region28
        $region27: #{tpu_custom_call.1} parent=11 // pred_region
          _
        $region28: #{tpu_custom_call.1} parent=11 // pred_fallthru
          _
        // Predicated region
        $region29: #{tpu_custom_call.1} parent=11 // pred_check
          %p351 = pneg %p183
        $region30: #{tpu_custom_call.1} parent=11 // pred_check_branch
          %353 = sbr.rel (%p351) target = $region32
        $region31: #{tpu_custom_call.1} parent=11 // pred_region
          %s355 = ssub.s32 4096, 4096
          %356 = vsyncadd [#allocation6], %s355
          %s357 = sshll.u32 [#allocation7], 4
          %s358 = int_to_ptr.vmem [resolvable:$true] %s357
          %363 = dma.hbm_to_vmem [thread:$0]  %s6, 4096, %s358, [#allocation6], 64, 64, 4
        $region32: #{tpu_custom_call.1} parent=11 // pred_fallthru
          _
        // Predicated region
        $region33: #{tpu_custom_call.1} parent=11 // pred_check
          %p364 = pneg %p204
        $region34: #{tpu_custom_call.1} parent=11 // pred_check_branch
          %366 = sbr.rel (%p364) target = $region36
        $region35: #{tpu_custom_call.1} parent=11 // pred_region
          _
        $region36: #{tpu_custom_call.1} parent=11 // pred_fallthru
          _
        // Predicated region
        $region37: #{tpu_custom_call.1} parent=11 // pred_check
          %p367 = pneg %p225
        $region38: #{tpu_custom_call.1} parent=11 // pred_check_branch
          %369 = sbr.rel (%p367) target = $region40
        $region39: #{tpu_custom_call.1} parent=11 // pred_region
          _
        $region40: #{tpu_custom_call.1} parent=11 // pred_fallthru
          _
        // Predicated region
        $region41: #{tpu_custom_call.1} parent=11 // pred_check
          %p370 = pneg %p246
        $region42: #{tpu_custom_call.1} parent=11 // pred_check_branch
          %372 = sbr.rel (%p370) target = $region44
        $region43: #{tpu_custom_call.1} parent=11 // pred_region
          _
        $region44: #{tpu_custom_call.1} parent=11 // pred_fallthru
          _
        // Predicated region
        $region45: #{tpu_custom_call.1} parent=11 // pred_check
          %p373 = pneg %p267
        $region46: #{tpu_custom_call.1} parent=11 // pred_check_branch
          %375 = sbr.rel (%p373) target = $region48
        $region47: #{tpu_custom_call.1} parent=11 // pred_region
          %s377 = ssub.s32 28672, 28672
          %378 = vsyncadd [#allocation9], %s377
          %s379 = sshll.u32 [#allocation8], 4
          %s380 = int_to_ptr.vmem [resolvable:$true] %s379
          %385 = dma.hbm_to_vmem [thread:$0]  %s10, 28672, %s380, [#allocation9], 448, 448, 28
        $region48: #{tpu_custom_call.1} parent=11 // pred_fallthru
          _
        // Predicated region
        $region49: #{tpu_custom_call.1} parent=11 // pred_check
          %p386 = pneg %p288
        $region50: #{tpu_custom_call.1} parent=11 // pred_check_branch
          %388 = sbr.rel (%p386) target = $region52
        $region51: #{tpu_custom_call.1} parent=11 // pred_region
          _
        $region52: #{tpu_custom_call.1} parent=11 // pred_fallthru
          _
      $region12: #{tpu_custom_call.1} parent=5 // pred_fallthru
        _
      %p389 = scmp.lt.s32.totalorder %s26, 2
      // Predicated region
      $region53: #{tpu_custom_call.1} parent=5 // pred_check
        %p390 = pneg %p389
      $region54: #{tpu_custom_call.1} parent=5 // pred_check_branch
        %392 = sbr.rel (%p390) target = $region56
      $region55: #{tpu_custom_call.1} parent=5 // pred_region
        // Predicated region
        $region57: #{tpu_custom_call.1} parent=55 // pred_check
          %p393 = pneg %p46
        $region58: #{tpu_custom_call.1} parent=55 // pred_check_branch
          %395 = sbr.rel (%p393) target = $region60
        $region59: #{tpu_custom_call.1} parent=55 // pred_region
          %s396 = sand.u32 %s36, 1
          %s397 = scalar_lea.sflag [#allocation3], %s396
          %s398 = sand.u32 %s36, 1
          %s399 = smul.addr %s398, 56
          %s400 = scalar_lea.vmem [#allocation2], %s399
          %s402 = ssub.s32 896, 896
          %403 = vsyncadd %s397, %s402
          %s404 = smul.addr %s26, 7
          %s405 = smul.addr %s404, 128
          %s406 = scalar_lea.hbm %s0, %s405
          %s408 = sshll.u32 %s400, 4
          %s409 = int_to_ptr.vmem [resolvable:$true] %s408
          %411 = dma.hbm_to_vmem [thread:$0]  %s406, 896, %s409, %s397
        $region60: #{tpu_custom_call.1} parent=55 // pred_fallthru
          _
        // Predicated region
        $region61: #{tpu_custom_call.1} parent=55 // pred_check
          %p412 = pneg %p72
        $region62: #{tpu_custom_call.1} parent=55 // pred_check_branch
          %414 = sbr.rel (%p412) target = $region64
        $region63: #{tpu_custom_call.1} parent=55 // pred_region
          %p415 = scmp.lt.s32.totalorder %s26, 1
          %s416 = scalar_select %p415, %s26, 1
          %s417 = smul.addr %s416, 8
          %s418 = scalar_lea.vmem %s1, %s417
        $region64: #{tpu_custom_call.1} parent=55 // pred_fallthru
          _
      $region56: #{tpu_custom_call.1} parent=5 // pred_fallthru
        _
      %p419 = scmp.le.s32.totalorder 1, %s26
      %p420 = scmp.lt.s32.totalorder %s26, 3
      %p421 = pnand %p419, %p420
      %p422 = pneg %p421
      // Predicated region
      $region65: #{tpu_custom_call.1} parent=5 // pred_check
        _
      $region66: #{tpu_custom_call.1} parent=5 // pred_check_branch
        %424 = sbr.rel (%p421) target = $region68
      $region67: #{tpu_custom_call.1} parent=5 // pred_region
        %s425 = ssub.s32 %s26, 1
        %s426 = sand.u32 %s39, 1
        %s427 = scalar_lea.sflag [#allocation3], %s426
        %s428 = sand.u32 %s39, 1
        %s429 = smul.addr %s428, 56
        %s430 = scalar_lea.vmem [#allocation2], %s429
        // Predicated region
        $region69: #{tpu_custom_call.1} parent=67 // pred_check
          %p431 = pneg %p52
        $region70: #{tpu_custom_call.1} parent=67 // pred_check_branch
          %433 = sbr.rel (%p431) target = $region72
        $region71: #{tpu_custom_call.1} parent=67 // pred_region
          %434 = dma.done %s427, 896
        $region72: #{tpu_custom_call.1} parent=67 // pred_fallthru
          _
        // Predicated region
        $region73: #{tpu_custom_call.1} parent=67 // pred_check
          %p435 = pneg %p141
        $region74: #{tpu_custom_call.1} parent=67 // pred_check_branch
          %437 = sbr.rel (%p435) target = $region76
        $region75: #{tpu_custom_call.1} parent=67 // pred_region
          %438 = dma.done [#allocation6], 28672
        $region76: #{tpu_custom_call.1} parent=67 // pred_fallthru
          _
        // Predicated region
        $region77: #{tpu_custom_call.1} parent=67 // pred_check
          %p439 = pneg %p183
        $region78: #{tpu_custom_call.1} parent=67 // pred_check_branch
          %441 = sbr.rel (%p439) target = $region80
        $region79: #{tpu_custom_call.1} parent=67 // pred_region
          %442 = dma.done [#allocation6], 4096
        $region80: #{tpu_custom_call.1} parent=67 // pred_fallthru
          _
        // Predicated region
        $region81: #{tpu_custom_call.1} parent=67 // pred_check
          %p443 = pneg %p267
        $region82: #{tpu_custom_call.1} parent=67 // pred_check_branch
          %445 = sbr.rel (%p443) target = $region84
        $region83: #{tpu_custom_call.1} parent=67 // pred_region
          %446 = dma.done [#allocation9], 28672
        $region84: #{tpu_custom_call.1} parent=67 // pred_fallthru
          _
        %s447 = sand.u32 %s39, 1
        %s448 = scalar_lea.sflag [#allocation3], %s447
        %s449 = sand.u32 %s39, 1
        %s450 = smul.addr %s449, 56
        %s451 = scalar_lea.vmem [#allocation2], %s450
        %p452 = pneg %p52
        %p453 = pneg %p49
        %p454 = scmp.lt.s32.totalorder %s31, 1
        %s455 = scalar_select %p454, %s31, 1
        %s456 = smul.addr %s455, 8
        %s457 = scalar_lea.vmem %s1, %s456
        %p458 = pneg %p78
        %p459 = pneg %p75
        %p460 = pneg %p99
        %p461 = pneg %p96
        %p462 = pneg %p120
        %p463 = pneg %p117
        %p464 = pneg %p141
        %p465 = pneg %p138
        %p466 = pneg %p162
        %p467 = pneg %p159
        %p468 = pneg %p183
        %p469 = pneg %p180
        %p470 = pneg %p204
        %p471 = pneg %p201
        %p472 = pneg %p225
        %p473 = pneg %p222
        %p474 = pneg %p246
        %p475 = pneg %p243
        %p476 = pneg %p267
        %p477 = pneg %p264
        %p478 = pneg %p288
        %p479 = pneg %p285
        %p480 = pneg %p314
        %p481 = pneg %p311
        %s482 = sand.u32 %s301, 1
        %s483 = scalar_lea.sflag [#allocation4], %s482
        %s484 = sand.u32 %s301, 1
        %s485 = smul.addr %s484, 56
        %s486 = scalar_lea.vmem [#allocation10], %s485
        %p487 = scmp.lt.s32.totalorder %s31, 1
        %s488 = scalar_select %p487, %s31, 1
        %s489 = smul.addr %s488, 8
        %s490 = scalar_lea.vmem %s1, %s489
        %v491 = vld [vmem:[#allocation5] sm:$0xff]
        %v492 = vld [vmem:[#allocation5 + $0x8] sm:$0xff]
        %v493 = vld [vmem:[#allocation5 + $0x10] sm:$0xff]
        %v494 = vld [vmem:[#allocation5 + $0x18] sm:$0xff]
        %v495 = vld [vmem:[#allocation5 + $0x20] sm:$0xff]
        %v496 = vld [vmem:[#allocation5 + $0x28] sm:$0xff]
        %v497 = vld [vmem:[#allocation5 + $0x30] sm:$0xff]
        %v498 = vld [vmem:[#allocation5 + $0x38] sm:$0xff]
        %v499 = vld [vmem:[#allocation5 + $0x40] sm:$0xff]
        %v500 = vld [vmem:[#allocation5 + $0x48] sm:$0xff]
        %v501 = vld [vmem:[#allocation5 + $0x50] sm:$0xff]
        %v502 = vld [vmem:[#allocation5 + $0x58] sm:$0xff]
        %v503 = vld [vmem:[#allocation5 + $0x60] sm:$0xff]
        %v504 = vld [vmem:[#allocation5 + $0x68] sm:$0xff]
        %v505 = vld [vmem:[#allocation5 + $0x70] sm:$0xff]
        %v506 = vld [vmem:[#allocation5 + $0x78] sm:$0xff]
        %v507 = vld [vmem:[#allocation5 + $0x80] sm:$0xff]
        %v508 = vld [vmem:[#allocation5 + $0x88] sm:$0xff]
        %v509 = vld [vmem:[#allocation5 + $0x90] sm:$0xff]
        %v510 = vld [vmem:[#allocation5 + $0x98] sm:$0xff]
        %v511 = vld [vmem:[#allocation5 + $0xa0] sm:$0xff]
        %v512 = vld [vmem:[#allocation5 + $0xa8] sm:$0xff]
        %v513 = vld [vmem:[#allocation5 + $0xb0] sm:$0xff]
        %v514 = vld [vmem:[#allocation5 + $0xb8] sm:$0xff]
        %v515 = vld [vmem:[#allocation5 + $0xc0] sm:$0xff]
        %v516 = vld [vmem:[#allocation5 + $0xc8] sm:$0xff]
        %v517 = vld [vmem:[#allocation5 + $0xd0] sm:$0xff]
        %v518 = vld [vmem:[#allocation5 + $0xd8] sm:$0xff]
        %v519 = vld [vmem:[#allocation5 + $0xe0] sm:$0xff]
        %v520 = vld [vmem:[#allocation5 + $0xe8] sm:$0xff]
        %v521 = vld [vmem:[#allocation5 + $0xf0] sm:$0xff]
        %v522 = vld [vmem:[#allocation5 + $0xf8] sm:$0xff]
        %v523 = vld [vmem:[#allocation5 + $0x100] sm:$0xff]
        %v524 = vld [vmem:[#allocation5 + $0x108] sm:$0xff]
        %v525 = vld [vmem:[#allocation5 + $0x110] sm:$0xff]
        %v526 = vld [vmem:[#allocation5 + $0x118] sm:$0xff]
        %v527 = vld [vmem:[#allocation5 + $0x120] sm:$0xff]
        %v528 = vld [vmem:[#allocation5 + $0x128] sm:$0xff]
        %v529 = vld [vmem:[#allocation5 + $0x130] sm:$0xff]
        %v530 = vld [vmem:[#allocation5 + $0x138] sm:$0xff]
        %v531 = vld [vmem:[#allocation5 + $0x140] sm:$0xff]
        %v532 = vld [vmem:[#allocation5 + $0x148] sm:$0xff]
        %v533 = vld [vmem:[#allocation5 + $0x150] sm:$0xff]
        %v534 = vld [vmem:[#allocation5 + $0x158] sm:$0xff]
        %v535 = vld [vmem:[#allocation5 + $0x160] sm:$0xff]
        %v536 = vld [vmem:[#allocation5 + $0x168] sm:$0xff]
        %v537 = vld [vmem:[#allocation5 + $0x170] sm:$0xff]
        %v538 = vld [vmem:[#allocation5 + $0x178] sm:$0xff]
        %v539 = vld [vmem:[#allocation5 + $0x180] sm:$0xff]
        %v540 = vld [vmem:[#allocation5 + $0x188] sm:$0xff]
        %v541 = vld [vmem:[#allocation5 + $0x190] sm:$0xff]
        %v542 = vld [vmem:[#allocation5 + $0x198] sm:$0xff]
        %v543 = vld [vmem:[#allocation5 + $0x1a0] sm:$0xff]
        %v544 = vld [vmem:[#allocation5 + $0x1a8] sm:$0xff]
        %v545 = vld [vmem:[#allocation5 + $0x1b0] sm:$0xff]
        %v546 = vld [vmem:[#allocation5 + $0x1b8] sm:$0xff]
        %v547 = vld [vmem:[#allocation5 + $0x1c0] sm:$0xff]
        %v548 = vld [vmem:[#allocation5 + $0x1c8] sm:$0xff]
        %v549 = vld [vmem:[#allocation5 + $0x1d0] sm:$0xff]
        %v550 = vld [vmem:[#allocation5 + $0x1d8] sm:$0xff]
        %v551 = vld [vmem:[#allocation5 + $0x1e0] sm:$0xff]
        %v552 = vld [vmem:[#allocation5 + $0x1e8] sm:$0xff]
        %v553 = vld [vmem:[#allocation5 + $0x1f0] sm:$0xff]
        %v554 = vld [vmem:[#allocation5 + $0x1f8] sm:$0xff]
        %v555 = vld [vmem:[#allocation5 + $0x200] sm:$0xff]
        %v556 = vld [vmem:[#allocation5 + $0x208] sm:$0xff]
        %v557 = vld [vmem:[#allocation5 + $0x210] sm:$0xff]
        %v558 = vld [vmem:[#allocation5 + $0x218] sm:$0xff]
        %v559 = vld [vmem:[#allocation5 + $0x220] sm:$0xff]
        %v560 = vld [vmem:[#allocation5 + $0x228] sm:$0xff]
        %v561 = vld [vmem:[#allocation5 + $0x230] sm:$0xff]
        %v562 = vld [vmem:[#allocation5 + $0x238] sm:$0xff]
        %v563 = vld [vmem:[#allocation5 + $0x240] sm:$0xff]
        %v564 = vld [vmem:[#allocation5 + $0x248] sm:$0xff]
        %v565 = vld [vmem:[#allocation5 + $0x250] sm:$0xff]
        %v566 = vld [vmem:[#allocation5 + $0x258] sm:$0xff]
        %v567 = vld [vmem:[#allocation5 + $0x260] sm:$0xff]
        %v568 = vld [vmem:[#allocation5 + $0x268] sm:$0xff]
        %v569 = vld [vmem:[#allocation5 + $0x270] sm:$0xff]
        %v570 = vld [vmem:[#allocation5 + $0x278] sm:$0xff]
        %v571 = vld [vmem:[#allocation5 + $0x280] sm:$0xff]
        %v572 = vld [vmem:[#allocation5 + $0x288] sm:$0xff]
        %v573 = vld [vmem:[#allocation5 + $0x290] sm:$0xff]
        %v574 = vld [vmem:[#allocation5 + $0x298] sm:$0xff]
        %v575 = vld [vmem:[#allocation5 + $0x2a0] sm:$0xff]
        %v576 = vld [vmem:[#allocation5 + $0x2a8] sm:$0xff]
        %v577 = vld [vmem:[#allocation5 + $0x2b0] sm:$0xff]
        %v578 = vld [vmem:[#allocation5 + $0x2b8] sm:$0xff]
        %v579 = vld [vmem:[#allocation5 + $0x2c0] sm:$0xff]
        %v580 = vld [vmem:[#allocation5 + $0x2c8] sm:$0xff]
        %v581 = vld [vmem:[#allocation5 + $0x2d0] sm:$0xff]
        %v582 = vld [vmem:[#allocation5 + $0x2d8] sm:$0xff]
        %v583 = vld [vmem:[#allocation5 + $0x2e0] sm:$0xff]
        %v584 = vld [vmem:[#allocation5 + $0x2e8] sm:$0xff]
        %v585 = vld [vmem:[#allocation5 + $0x2f0] sm:$0xff]
        %v586 = vld [vmem:[#allocation5 + $0x2f8] sm:$0xff]
        %v587 = vld [vmem:[#allocation5 + $0x300] sm:$0xff]
        %v588 = vld [vmem:[#allocation5 + $0x308] sm:$0xff]
        %v589 = vld [vmem:[#allocation5 + $0x310] sm:$0xff]
        %v590 = vld [vmem:[#allocation5 + $0x318] sm:$0xff]
        %v591 = vld [vmem:[#allocation5 + $0x320] sm:$0xff]
        %v592 = vld [vmem:[#allocation5 + $0x328] sm:$0xff]
        %v593 = vld [vmem:[#allocation5 + $0x330] sm:$0xff]
        %v594 = vld [vmem:[#allocation5 + $0x338] sm:$0xff]
        %v595 = vld [vmem:[#allocation5 + $0x340] sm:$0xff]
        %v596 = vld [vmem:[#allocation5 + $0x348] sm:$0xff]
        %v597 = vld [vmem:[#allocation5 + $0x350] sm:$0xff]
        %v598 = vld [vmem:[#allocation5 + $0x358] sm:$0xff]
        %v599 = vld [vmem:[#allocation5 + $0x360] sm:$0xff]
        %v600 = vld [vmem:[#allocation5 + $0x368] sm:$0xff]
        %v601 = vld [vmem:[#allocation5 + $0x370] sm:$0xff]
        %v602 = vld [vmem:[#allocation5 + $0x378] sm:$0xff]
        %v603 = vld [vmem:[#allocation5 + $0x380] sm:$0xff]
        %v604 = vld [vmem:[#allocation5 + $0x388] sm:$0xff]
        %v605 = vld [vmem:[#allocation5 + $0x390] sm:$0xff]
        %v606 = vld [vmem:[#allocation5 + $0x398] sm:$0xff]
        %v607 = vld [vmem:[#allocation5 + $0x3a0] sm:$0xff]
        %v608 = vld [vmem:[#allocation5 + $0x3a8] sm:$0xff]
        %v609 = vld [vmem:[#allocation5 + $0x3b0] sm:$0xff]
        %v610 = vld [vmem:[#allocation5 + $0x3b8] sm:$0xff]
        %v611 = vld [vmem:[#allocation5 + $0x3c0] sm:$0xff]
        %v612 = vld [vmem:[#allocation5 + $0x3c8] sm:$0xff]
        %v613 = vld [vmem:[#allocation5 + $0x3d0] sm:$0xff]
        %v614 = vld [vmem:[#allocation5 + $0x3d8] sm:$0xff]
        %v615 = vld [vmem:[#allocation5 + $0x3e0] sm:$0xff]
        %v616 = vld [vmem:[#allocation5 + $0x3e8] sm:$0xff]
        %v617 = vld [vmem:[#allocation5 + $0x3f0] sm:$0xff]
        %v618 = vld [vmem:[#allocation5 + $0x3f8] sm:$0xff]
        %v619 = vld [vmem:[#allocation5 + $0x400] sm:$0xff]
        %v620 = vld [vmem:[#allocation5 + $0x408] sm:$0xff]
        %v621 = vld [vmem:[#allocation5 + $0x410] sm:$0xff]
        %v622 = vld [vmem:[#allocation5 + $0x418] sm:$0xff]
        %v623 = vld [vmem:[#allocation5 + $0x420] sm:$0xff]
        %v624 = vld [vmem:[#allocation5 + $0x428] sm:$0xff]
        %v625 = vld [vmem:[#allocation5 + $0x430] sm:$0xff]
        %v626 = vld [vmem:[#allocation5 + $0x438] sm:$0xff]
        %v627 = vld [vmem:[#allocation5 + $0x440] sm:$0xff]
        %v628 = vld [vmem:[#allocation5 + $0x448] sm:$0xff]
        %v629 = vld [vmem:[#allocation5 + $0x450] sm:$0xff]
        %v630 = vld [vmem:[#allocation5 + $0x458] sm:$0xff]
        %v631 = vld [vmem:[#allocation5 + $0x460] sm:$0xff]
        %v632 = vld [vmem:[#allocation5 + $0x468] sm:$0xff]
        %v633 = vld [vmem:[#allocation5 + $0x470] sm:$0xff]
        %v634 = vld [vmem:[#allocation5 + $0x478] sm:$0xff]
        %v635 = vld [vmem:[#allocation5 + $0x480] sm:$0xff]
        %v636 = vld [vmem:[#allocation5 + $0x488] sm:$0xff]
        %v637 = vld [vmem:[#allocation5 + $0x490] sm:$0xff]
        %v638 = vld [vmem:[#allocation5 + $0x498] sm:$0xff]
        %v639 = vld [vmem:[#allocation5 + $0x4a0] sm:$0xff]
        %v640 = vld [vmem:[#allocation5 + $0x4a8] sm:$0xff]
        %v641 = vld [vmem:[#allocation5 + $0x4b0] sm:$0xff]
        %v642 = vld [vmem:[#allocation5 + $0x4b8] sm:$0xff]
        %v643 = vld [vmem:[#allocation5 + $0x4c0] sm:$0xff]
        %v644 = vld [vmem:[#allocation5 + $0x4c8] sm:$0xff]
        %v645 = vld [vmem:[#allocation5 + $0x4d0] sm:$0xff]
        %v646 = vld [vmem:[#allocation5 + $0x4d8] sm:$0xff]
        %v647 = vld [vmem:[#allocation5 + $0x4e0] sm:$0xff]
        %v648 = vld [vmem:[#allocation5 + $0x4e8] sm:$0xff]
        %v649 = vld [vmem:[#allocation5 + $0x4f0] sm:$0xff]
        %v650 = vld [vmem:[#allocation5 + $0x4f8] sm:$0xff]
        %v651 = vld [vmem:[#allocation5 + $0x500] sm:$0xff]
        %v652 = vld [vmem:[#allocation5 + $0x508] sm:$0xff]
        %v653 = vld [vmem:[#allocation5 + $0x510] sm:$0xff]
        %v654 = vld [vmem:[#allocation5 + $0x518] sm:$0xff]
        %v655 = vld [vmem:[#allocation5 + $0x520] sm:$0xff]
        %v656 = vld [vmem:[#allocation5 + $0x528] sm:$0xff]
        %v657 = vld [vmem:[#allocation5 + $0x530] sm:$0xff]
        %v658 = vld [vmem:[#allocation5 + $0x538] sm:$0xff]
        %v659 = vld [vmem:[#allocation5 + $0x540] sm:$0xff]
        %v660 = vld [vmem:[#allocation5 + $0x548] sm:$0xff]
        %v661 = vld [vmem:[#allocation5 + $0x550] sm:$0xff]
        %v662 = vld [vmem:[#allocation5 + $0x558] sm:$0xff]
        %v663 = vld [vmem:[#allocation5 + $0x560] sm:$0xff]
        %v664 = vld [vmem:[#allocation5 + $0x568] sm:$0xff]
        %v665 = vld [vmem:[#allocation5 + $0x570] sm:$0xff]
        %v666 = vld [vmem:[#allocation5 + $0x578] sm:$0xff]
        %v667 = vld [vmem:[#allocation5 + $0x580] sm:$0xff]
        %v668 = vld [vmem:[#allocation5 + $0x588] sm:$0xff]
        %v669 = vld [vmem:[#allocation5 + $0x590] sm:$0xff]
        %v670 = vld [vmem:[#allocation5 + $0x598] sm:$0xff]
        %v671 = vld [vmem:[#allocation5 + $0x5a0] sm:$0xff]
        %v672 = vld [vmem:[#allocation5 + $0x5a8] sm:$0xff]
        %v673 = vld [vmem:[#allocation5 + $0x5b0] sm:$0xff]
        %v674 = vld [vmem:[#allocation5 + $0x5b8] sm:$0xff]
        %v675 = vld [vmem:[#allocation5 + $0x5c0] sm:$0xff]
        %v676 = vld [vmem:[#allocation5 + $0x5c8] sm:$0xff]
        %v677 = vld [vmem:[#allocation5 + $0x5d0] sm:$0xff]
        %v678 = vld [vmem:[#allocation5 + $0x5d8] sm:$0xff]
        %v679 = vld [vmem:[#allocation5 + $0x5e0] sm:$0xff]
        %v680 = vld [vmem:[#allocation5 + $0x5e8] sm:$0xff]
        %v681 = vld [vmem:[#allocation5 + $0x5f0] sm:$0xff]
        %v682 = vld [vmem:[#allocation5 + $0x5f8] sm:$0xff]
        %v683 = vld [vmem:[#allocation5 + $0x600] sm:$0xff]
        %v684 = vld [vmem:[#allocation5 + $0x608] sm:$0xff]
        %v685 = vld [vmem:[#allocation5 + $0x610] sm:$0xff]
        %v686 = vld [vmem:[#allocation5 + $0x618] sm:$0xff]
        %v687 = vld [vmem:[#allocation5 + $0x620] sm:$0xff]
        %v688 = vld [vmem:[#allocation5 + $0x628] sm:$0xff]
        %v689 = vld [vmem:[#allocation5 + $0x630] sm:$0xff]
        %v690 = vld [vmem:[#allocation5 + $0x638] sm:$0xff]
        %v691 = vld [vmem:[#allocation5 + $0x640] sm:$0xff]
        %v692 = vld [vmem:[#allocation5 + $0x648] sm:$0xff]
        %v693 = vld [vmem:[#allocation5 + $0x650] sm:$0xff]
        %v694 = vld [vmem:[#allocation5 + $0x658] sm:$0xff]
        %v695 = vld [vmem:[#allocation5 + $0x660] sm:$0xff]
        %v696 = vld [vmem:[#allocation5 + $0x668] sm:$0xff]
        %v697 = vld [vmem:[#allocation5 + $0x670] sm:$0xff]
        %v698 = vld [vmem:[#allocation5 + $0x678] sm:$0xff]
        %v699 = vld [vmem:[#allocation5 + $0x680] sm:$0xff]
        %v700 = vld [vmem:[#allocation5 + $0x688] sm:$0xff]
        %v701 = vld [vmem:[#allocation5 + $0x690] sm:$0xff]
        %v702 = vld [vmem:[#allocation5 + $0x698] sm:$0xff]
        %v703 = vld [vmem:[#allocation5 + $0x6a0] sm:$0xff]
        %v704 = vld [vmem:[#allocation5 + $0x6a8] sm:$0xff]
        %v705 = vld [vmem:[#allocation5 + $0x6b0] sm:$0xff]
        %v706 = vld [vmem:[#allocation5 + $0x6b8] sm:$0xff]
        %v707 = vld [vmem:[#allocation5 + $0x6c0] sm:$0xff]
        %v708 = vld [vmem:[#allocation5 + $0x6c8] sm:$0xff]
        %v709 = vld [vmem:[#allocation5 + $0x6d0] sm:$0xff]
        %v710 = vld [vmem:[#allocation5 + $0x6d8] sm:$0xff]
        %v711 = vld [vmem:[#allocation5 + $0x6e0] sm:$0xff]
        %v712 = vld [vmem:[#allocation5 + $0x6e8] sm:$0xff]
        %v713 = vld [vmem:[#allocation5 + $0x6f0] sm:$0xff]
        %v714 = vld [vmem:[#allocation5 + $0x6f8] sm:$0xff]
        %v715 = vunpack.c.l.bf16 %v491
        %v716 = vunpack.c.h.bf16 %v491
        %v717 = vunpack.c.l.bf16 %v492
        %v718 = vunpack.c.h.bf16 %v492
        %v719 = vunpack.c.l.bf16 %v493
        %v720 = vunpack.c.h.bf16 %v493
        %v721 = vunpack.c.l.bf16 %v494
        %v722 = vunpack.c.h.bf16 %v494
        %v723 = vunpack.c.l.bf16 %v495
        %v724 = vunpack.c.h.bf16 %v495
        %v725 = vunpack.c.l.bf16 %v496
        %v726 = vunpack.c.h.bf16 %v496
        %v727 = vunpack.c.l.bf16 %v497
        %v728 = vunpack.c.h.bf16 %v497
        %v729 = vunpack.c.l.bf16 %v498
        %v730 = vunpack.c.h.bf16 %v498
        %v731 = vunpack.c.l.bf16 %v499
        %v732 = vunpack.c.h.bf16 %v499
        %v733 = vunpack.c.l.bf16 %v500
        %v734 = vunpack.c.h.bf16 %v500
        %v735 = vunpack.c.l.bf16 %v501
        %v736 = vunpack.c.h.bf16 %v501
        %v737 = vunpack.c.l.bf16 %v502
        %v738 = vunpack.c.h.bf16 %v502
        %v739 = vunpack.c.l.bf16 %v503
        %v740 = vunpack.c.h.bf16 %v503
        %v741 = vunpack.c.l.bf16 %v504
        %v742 = vunpack.c.h.bf16 %v504
        %v743 = vunpack.c.l.bf16 %v505
        %v744 = vunpack.c.h.bf16 %v505
        %v745 = vunpack.c.l.bf16 %v506
        %v746 = vunpack.c.h.bf16 %v506
        %v747 = vunpack.c.l.bf16 %v507
        %v748 = vunpack.c.h.bf16 %v507
        %v749 = vunpack.c.l.bf16 %v508
        %v750 = vunpack.c.h.bf16 %v508
        %v751 = vunpack.c.l.bf16 %v509
        %v752 = vunpack.c.h.bf16 %v509
        %v753 = vunpack.c.l.bf16 %v510
        %v754 = vunpack.c.h.bf16 %v510
        %v755 = vunpack.c.l.bf16 %v511
        %v756 = vunpack.c.h.bf16 %v511
        %v757 = vunpack.c.l.bf16 %v512
        %v758 = vunpack.c.h.bf16 %v512
        %v759 = vunpack.c.l.bf16 %v513
        %v760 = vunpack.c.h.bf16 %v513
        %v761 = vunpack.c.l.bf16 %v514
        %v762 = vunpack.c.h.bf16 %v514
        %v763 = vunpack.c.l.bf16 %v515
        %v764 = vunpack.c.h.bf16 %v515
        %v765 = vunpack.c.l.bf16 %v516
        %v766 = vunpack.c.h.bf16 %v516
        %v767 = vunpack.c.l.bf16 %v517
        %v768 = vunpack.c.h.bf16 %v517
        %v769 = vunpack.c.l.bf16 %v518
        %v770 = vunpack.c.h.bf16 %v518
        %v771 = vunpack.c.l.bf16 %v519
        %v772 = vunpack.c.h.bf16 %v519
        %v773 = vunpack.c.l.bf16 %v520
        %v774 = vunpack.c.h.bf16 %v520
        %v775 = vunpack.c.l.bf16 %v521
        %v776 = vunpack.c.h.bf16 %v521
        %v777 = vunpack.c.l.bf16 %v522
        %v778 = vunpack.c.h.bf16 %v522
        %v779 = vunpack.c.l.bf16 %v523
        %v780 = vunpack.c.h.bf16 %v523
        %v781 = vunpack.c.l.bf16 %v524
        %v782 = vunpack.c.h.bf16 %v524
        %v783 = vunpack.c.l.bf16 %v525
        %v784 = vunpack.c.h.bf16 %v525
        %v785 = vunpack.c.l.bf16 %v526
        %v786 = vunpack.c.h.bf16 %v526
        %v787 = vunpack.c.l.bf16 %v527
        %v788 = vunpack.c.h.bf16 %v527
        %v789 = vunpack.c.l.bf16 %v528
        %v790 = vunpack.c.h.bf16 %v528
        %v791 = vunpack.c.l.bf16 %v529
        %v792 = vunpack.c.h.bf16 %v529
        %v793 = vunpack.c.l.bf16 %v530
        %v794 = vunpack.c.h.bf16 %v530
        %v795 = vunpack.c.l.bf16 %v531
        %v796 = vunpack.c.h.bf16 %v531
        %v797 = vunpack.c.l.bf16 %v532
        %v798 = vunpack.c.h.bf16 %v532
        %v799 = vunpack.c.l.bf16 %v533
        %v800 = vunpack.c.h.bf16 %v533
        %v801 = vunpack.c.l.bf16 %v534
        %v802 = vunpack.c.h.bf16 %v534
        %v803 = vunpack.c.l.bf16 %v535
        %v804 = vunpack.c.h.bf16 %v535
        %v805 = vunpack.c.l.bf16 %v536
        %v806 = vunpack.c.h.bf16 %v536
        %v807 = vunpack.c.l.bf16 %v537
        %v808 = vunpack.c.h.bf16 %v537
        %v809 = vunpack.c.l.bf16 %v538
        %v810 = vunpack.c.h.bf16 %v538
        %v811 = vunpack.c.l.bf16 %v539
        %v812 = vunpack.c.h.bf16 %v539
        %v813 = vunpack.c.l.bf16 %v540
        %v814 = vunpack.c.h.bf16 %v540
        %v815 = vunpack.c.l.bf16 %v541
        %v816 = vunpack.c.h.bf16 %v541
        %v817 = vunpack.c.l.bf16 %v542
        %v818 = vunpack.c.h.bf16 %v542
        %v819 = vunpack.c.l.bf16 %v543
        %v820 = vunpack.c.h.bf16 %v543
        %v821 = vunpack.c.l.bf16 %v544
        %v822 = vunpack.c.h.bf16 %v544
        %v823 = vunpack.c.l.bf16 %v545
        %v824 = vunpack.c.h.bf16 %v545
        %v825 = vunpack.c.l.bf16 %v546
        %v826 = vunpack.c.h.bf16 %v546
        %v827 = vunpack.c.l.bf16 %v547
        %v828 = vunpack.c.h.bf16 %v547
        %v829 = vunpack.c.l.bf16 %v548
        %v830 = vunpack.c.h.bf16 %v548
        %v831 = vunpack.c.l.bf16 %v549
        %v832 = vunpack.c.h.bf16 %v549
        %v833 = vunpack.c.l.bf16 %v550
        %v834 = vunpack.c.h.bf16 %v550
        %v835 = vunpack.c.l.bf16 %v551
        %v836 = vunpack.c.h.bf16 %v551
        %v837 = vunpack.c.l.bf16 %v552
        %v838 = vunpack.c.h.bf16 %v552
        %v839 = vunpack.c.l.bf16 %v553
        %v840 = vunpack.c.h.bf16 %v553
        %v841 = vunpack.c.l.bf16 %v554
        %v842 = vunpack.c.h.bf16 %v554
        %v843 = vunpack.c.l.bf16 %v555
        %v844 = vunpack.c.h.bf16 %v555
        %v845 = vunpack.c.l.bf16 %v556
        %v846 = vunpack.c.h.bf16 %v556
        %v847 = vunpack.c.l.bf16 %v557
        %v848 = vunpack.c.h.bf16 %v557
        %v849 = vunpack.c.l.bf16 %v558
        %v850 = vunpack.c.h.bf16 %v558
        %v851 = vunpack.c.l.bf16 %v559
        %v852 = vunpack.c.h.bf16 %v559
        %v853 = vunpack.c.l.bf16 %v560
        %v854 = vunpack.c.h.bf16 %v560
        %v855 = vunpack.c.l.bf16 %v561
        %v856 = vunpack.c.h.bf16 %v561
        %v857 = vunpack.c.l.bf16 %v562
        %v858 = vunpack.c.h.bf16 %v562
        %v859 = vunpack.c.l.bf16 %v563
        %v860 = vunpack.c.h.bf16 %v563
        %v861 = vunpack.c.l.bf16 %v564
        %v862 = vunpack.c.h.bf16 %v564
        %v863 = vunpack.c.l.bf16 %v565
        %v864 = vunpack.c.h.bf16 %v565
        %v865 = vunpack.c.l.bf16 %v566
        %v866 = vunpack.c.h.bf16 %v566
        %v867 = vunpack.c.l.bf16 %v567
        %v868 = vunpack.c.h.bf16 %v567
        %v869 = vunpack.c.l.bf16 %v568
        %v870 = vunpack.c.h.bf16 %v568
        %v871 = vunpack.c.l.bf16 %v569
        %v872 = vunpack.c.h.bf16 %v569
        %v873 = vunpack.c.l.bf16 %v570
        %v874 = vunpack.c.h.bf16 %v570
        %v875 = vunpack.c.l.bf16 %v571
        %v876 = vunpack.c.h.bf16 %v571
        %v877 = vunpack.c.l.bf16 %v572
        %v878 = vunpack.c.h.bf16 %v572
        %v879 = vunpack.c.l.bf16 %v573
        %v880 = vunpack.c.h.bf16 %v573
        %v881 = vunpack.c.l.bf16 %v574
        %v882 = vunpack.c.h.bf16 %v574
        %v883 = vunpack.c.l.bf16 %v575
        %v884 = vunpack.c.h.bf16 %v575
        %v885 = vunpack.c.l.bf16 %v576
        %v886 = vunpack.c.h.bf16 %v576
        %v887 = vunpack.c.l.bf16 %v577
        %v888 = vunpack.c.h.bf16 %v577
        %v889 = vunpack.c.l.bf16 %v578
        %v890 = vunpack.c.h.bf16 %v578
        %v891 = vunpack.c.l.bf16 %v579
        %v892 = vunpack.c.h.bf16 %v579
        %v893 = vunpack.c.l.bf16 %v580
        %v894 = vunpack.c.h.bf16 %v580
        %v895 = vunpack.c.l.bf16 %v581
        %v896 = vunpack.c.h.bf16 %v581
        %v897 = vunpack.c.l.bf16 %v582
        %v898 = vunpack.c.h.bf16 %v582
        %v899 = vunpack.c.l.bf16 %v583
        %v900 = vunpack.c.h.bf16 %v583
        %v901 = vunpack.c.l.bf16 %v584
        %v902 = vunpack.c.h.bf16 %v584
        %v903 = vunpack.c.l.bf16 %v585
        %v904 = vunpack.c.h.bf16 %v585
        %v905 = vunpack.c.l.bf16 %v586
        %v906 = vunpack.c.h.bf16 %v586
        %v907 = vunpack.c.l.bf16 %v587
        %v908 = vunpack.c.h.bf16 %v587
        %v909 = vunpack.c.l.bf16 %v588
        %v910 = vunpack.c.h.bf16 %v588
        %v911 = vunpack.c.l.bf16 %v589
        %v912 = vunpack.c.h.bf16 %v589
        %v913 = vunpack.c.l.bf16 %v590
        %v914 = vunpack.c.h.bf16 %v590
        %v915 = vunpack.c.l.bf16 %v591
        %v916 = vunpack.c.h.bf16 %v591
        %v917 = vunpack.c.l.bf16 %v592
        %v918 = vunpack.c.h.bf16 %v592
        %v919 = vunpack.c.l.bf16 %v593
        %v920 = vunpack.c.h.bf16 %v593
        %v921 = vunpack.c.l.bf16 %v594
        %v922 = vunpack.c.h.bf16 %v594
        %v923 = vunpack.c.l.bf16 %v595
        %v924 = vunpack.c.h.bf16 %v595
        %v925 = vunpack.c.l.bf16 %v596
        %v926 = vunpack.c.h.bf16 %v596
        %v927 = vunpack.c.l.bf16 %v597
        %v928 = vunpack.c.h.bf16 %v597
        %v929 = vunpack.c.l.bf16 %v598
        %v930 = vunpack.c.h.bf16 %v598
        %v931 = vunpack.c.l.bf16 %v599
        %v932 = vunpack.c.h.bf16 %v599
        %v933 = vunpack.c.l.bf16 %v600
        %v934 = vunpack.c.h.bf16 %v600
        %v935 = vunpack.c.l.bf16 %v601
        %v936 = vunpack.c.h.bf16 %v601
        %v937 = vunpack.c.l.bf16 %v602
        %v938 = vunpack.c.h.bf16 %v602
        %v939 = vunpack.c.l.bf16 %v603
        %v940 = vunpack.c.h.bf16 %v603
        %v941 = vunpack.c.l.bf16 %v604
        %v942 = vunpack.c.h.bf16 %v604
        %v943 = vunpack.c.l.bf16 %v605
        %v944 = vunpack.c.h.bf16 %v605
        %v945 = vunpack.c.l.bf16 %v606
        %v946 = vunpack.c.h.bf16 %v606
        %v947 = vunpack.c.l.bf16 %v607
        %v948 = vunpack.c.h.bf16 %v607
        %v949 = vunpack.c.l.bf16 %v608
        %v950 = vunpack.c.h.bf16 %v608
        %v951 = vunpack.c.l.bf16 %v609
        %v952 = vunpack.c.h.bf16 %v609
        %v953 = vunpack.c.l.bf16 %v610
        %v954 = vunpack.c.h.bf16 %v610
        %v955 = vunpack.c.l.bf16 %v611
        %v956 = vunpack.c.h.bf16 %v611
        %v957 = vunpack.c.l.bf16 %v612
        %v958 = vunpack.c.h.bf16 %v612
        %v959 = vunpack.c.l.bf16 %v613
        %v960 = vunpack.c.h.bf16 %v613
        %v961 = vunpack.c.l.bf16 %v614
        %v962 = vunpack.c.h.bf16 %v614
        %v963 = vunpack.c.l.bf16 %v615
        %v964 = vunpack.c.h.bf16 %v615
        %v965 = vunpack.c.l.bf16 %v616
        %v966 = vunpack.c.h.bf16 %v616
        %v967 = vunpack.c.l.bf16 %v617
        %v968 = vunpack.c.h.bf16 %v617
        %v969 = vunpack.c.l.bf16 %v618
        %v970 = vunpack.c.h.bf16 %v618
        %v971 = vunpack.c.l.bf16 %v619
        %v972 = vunpack.c.h.bf16 %v619
        %v973 = vunpack.c.l.bf16 %v620
        %v974 = vunpack.c.h.bf16 %v620
        %v975 = vunpack.c.l.bf16 %v621
        %v976 = vunpack.c.h.bf16 %v621
        %v977 = vunpack.c.l.bf16 %v622
        %v978 = vunpack.c.h.bf16 %v622
        %v979 = vunpack.c.l.bf16 %v623
        %v980 = vunpack.c.h.bf16 %v623
        %v981 = vunpack.c.l.bf16 %v624
        %v982 = vunpack.c.h.bf16 %v624
        %v983 = vunpack.c.l.bf16 %v625
        %v984 = vunpack.c.h.bf16 %v625
        %v985 = vunpack.c.l.bf16 %v626
        %v986 = vunpack.c.h.bf16 %v626
        %v987 = vunpack.c.l.bf16 %v627
        %v988 = vunpack.c.h.bf16 %v627
        %v989 = vunpack.c.l.bf16 %v628
        %v990 = vunpack.c.h.bf16 %v628
        %v991 = vunpack.c.l.bf16 %v629
        %v992 = vunpack.c.h.bf16 %v629
        %v993 = vunpack.c.l.bf16 %v630
        %v994 = vunpack.c.h.bf16 %v630
        %v995 = vunpack.c.l.bf16 %v631
        %v996 = vunpack.c.h.bf16 %v631
        %v997 = vunpack.c.l.bf16 %v632
        %v998 = vunpack.c.h.bf16 %v632
        %v999 = vunpack.c.l.bf16 %v633
        %v1000 = vunpack.c.h.bf16 %v633
        %v1001 = vunpack.c.l.bf16 %v634
        %v1002 = vunpack.c.h.bf16 %v634
        %v1003 = vunpack.c.l.bf16 %v635
        %v1004 = vunpack.c.h.bf16 %v635
        %v1005 = vunpack.c.l.bf16 %v636
        %v1006 = vunpack.c.h.bf16 %v636
        %v1007 = vunpack.c.l.bf16 %v637
        %v1008 = vunpack.c.h.bf16 %v637
        %v1009 = vunpack.c.l.bf16 %v638
        %v1010 = vunpack.c.h.bf16 %v638
        %v1011 = vunpack.c.l.bf16 %v639
        %v1012 = vunpack.c.h.bf16 %v639
        %v1013 = vunpack.c.l.bf16 %v640
        %v1014 = vunpack.c.h.bf16 %v640
        %v1015 = vunpack.c.l.bf16 %v641
        %v1016 = vunpack.c.h.bf16 %v641
        %v1017 = vunpack.c.l.bf16 %v642
        %v1018 = vunpack.c.h.bf16 %v642
        %v1019 = vunpack.c.l.bf16 %v643
        %v1020 = vunpack.c.h.bf16 %v643
        %v1021 = vunpack.c.l.bf16 %v644
        %v1022 = vunpack.c.h.bf16 %v644
        %v1023 = vunpack.c.l.bf16 %v645
        %v1024 = vunpack.c.h.bf16 %v645
        %v1025 = vunpack.c.l.bf16 %v646
        %v1026 = vunpack.c.h.bf16 %v646
        %v1027 = vunpack.c.l.bf16 %v647
        %v1028 = vunpack.c.h.bf16 %v647
        %v1029 = vunpack.c.l.bf16 %v648
        %v1030 = vunpack.c.h.bf16 %v648
        %v1031 = vunpack.c.l.bf16 %v649
        %v1032 = vunpack.c.h.bf16 %v649
        %v1033 = vunpack.c.l.bf16 %v650
        %v1034 = vunpack.c.h.bf16 %v650
        %v1035 = vunpack.c.l.bf16 %v651
        %v1036 = vunpack.c.h.bf16 %v651
        %v1037 = vunpack.c.l.bf16 %v652
        %v1038 = vunpack.c.h.bf16 %v652
        %v1039 = vunpack.c.l.bf16 %v653
        %v1040 = vunpack.c.h.bf16 %v653
        %v1041 = vunpack.c.l.bf16 %v654
        %v1042 = vunpack.c.h.bf16 %v654
        %v1043 = vunpack.c.l.bf16 %v655
        %v1044 = vunpack.c.h.bf16 %v655
        %v1045 = vunpack.c.l.bf16 %v656
        %v1046 = vunpack.c.h.bf16 %v656
        %v1047 = vunpack.c.l.bf16 %v657
        %v1048 = vunpack.c.h.bf16 %v657
        %v1049 = vunpack.c.l.bf16 %v658
        %v1050 = vunpack.c.h.bf16 %v658
        %v1051 = vunpack.c.l.bf16 %v659
        %v1052 = vunpack.c.h.bf16 %v659
        %v1053 = vunpack.c.l.bf16 %v660
        %v1054 = vunpack.c.h.bf16 %v660
        %v1055 = vunpack.c.l.bf16 %v661
        %v1056 = vunpack.c.h.bf16 %v661
        %v1057 = vunpack.c.l.bf16 %v662
        %v1058 = vunpack.c.h.bf16 %v662
        %v1059 = vunpack.c.l.bf16 %v663
        %v1060 = vunpack.c.h.bf16 %v663
        %v1061 = vunpack.c.l.bf16 %v664
        %v1062 = vunpack.c.h.bf16 %v664
        %v1063 = vunpack.c.l.bf16 %v665
        %v1064 = vunpack.c.h.bf16 %v665
        %v1065 = vunpack.c.l.bf16 %v666
        %v1066 = vunpack.c.h.bf16 %v666
        %v1067 = vunpack.c.l.bf16 %v667
        %v1068 = vunpack.c.h.bf16 %v667
        %v1069 = vunpack.c.l.bf16 %v668
        %v1070 = vunpack.c.h.bf16 %v668
        %v1071 = vunpack.c.l.bf16 %v669
        %v1072 = vunpack.c.h.bf16 %v669
        %v1073 = vunpack.c.l.bf16 %v670
        %v1074 = vunpack.c.h.bf16 %v670
        %v1075 = vunpack.c.l.bf16 %v671
        %v1076 = vunpack.c.h.bf16 %v671
        %v1077 = vunpack.c.l.bf16 %v672
        %v1078 = vunpack.c.h.bf16 %v672
        %v1079 = vunpack.c.l.bf16 %v673
        %v1080 = vunpack.c.h.bf16 %v673
        %v1081 = vunpack.c.l.bf16 %v674
        %v1082 = vunpack.c.h.bf16 %v674
        %v1083 = vunpack.c.l.bf16 %v675
        %v1084 = vunpack.c.h.bf16 %v675
        %v1085 = vunpack.c.l.bf16 %v676
        %v1086 = vunpack.c.h.bf16 %v676
        %v1087 = vunpack.c.l.bf16 %v677
        %v1088 = vunpack.c.h.bf16 %v677
        %v1089 = vunpack.c.l.bf16 %v678
        %v1090 = vunpack.c.h.bf16 %v678
        %v1091 = vunpack.c.l.bf16 %v679
        %v1092 = vunpack.c.h.bf16 %v679
        %v1093 = vunpack.c.l.bf16 %v680
        %v1094 = vunpack.c.h.bf16 %v680
        %v1095 = vunpack.c.l.bf16 %v681
        %v1096 = vunpack.c.h.bf16 %v681
        %v1097 = vunpack.c.l.bf16 %v682
        %v1098 = vunpack.c.h.bf16 %v682
        %v1099 = vunpack.c.l.bf16 %v683
        %v1100 = vunpack.c.h.bf16 %v683
        %v1101 = vunpack.c.l.bf16 %v684
        %v1102 = vunpack.c.h.bf16 %v684
        %v1103 = vunpack.c.l.bf16 %v685
        %v1104 = vunpack.c.h.bf16 %v685
        %v1105 = vunpack.c.l.bf16 %v686
        %v1106 = vunpack.c.h.bf16 %v686
        %v1107 = vunpack.c.l.bf16 %v687
        %v1108 = vunpack.c.h.bf16 %v687
        %v1109 = vunpack.c.l.bf16 %v688
        %v1110 = vunpack.c.h.bf16 %v688
        %v1111 = vunpack.c.l.bf16 %v689
        %v1112 = vunpack.c.h.bf16 %v689
        %v1113 = vunpack.c.l.bf16 %v690
        %v1114 = vunpack.c.h.bf16 %v690
        %v1115 = vunpack.c.l.bf16 %v691
        %v1116 = vunpack.c.h.bf16 %v691
        %v1117 = vunpack.c.l.bf16 %v692
        %v1118 = vunpack.c.h.bf16 %v692
        %v1119 = vunpack.c.l.bf16 %v693
        %v1120 = vunpack.c.h.bf16 %v693
        %v1121 = vunpack.c.l.bf16 %v694
        %v1122 = vunpack.c.h.bf16 %v694
        %v1123 = vunpack.c.l.bf16 %v695
        %v1124 = vunpack.c.h.bf16 %v695
        %v1125 = vunpack.c.l.bf16 %v696
        %v1126 = vunpack.c.h.bf16 %v696
        %v1127 = vunpack.c.l.bf16 %v697
        %v1128 = vunpack.c.h.bf16 %v697
        %v1129 = vunpack.c.l.bf16 %v698
        %v1130 = vunpack.c.h.bf16 %v698
        %v1131 = vunpack.c.l.bf16 %v699
        %v1132 = vunpack.c.h.bf16 %v699
        %v1133 = vunpack.c.l.bf16 %v700
        %v1134 = vunpack.c.h.bf16 %v700
        %v1135 = vunpack.c.l.bf16 %v701
        %v1136 = vunpack.c.h.bf16 %v701
        %v1137 = vunpack.c.l.bf16 %v702
        %v1138 = vunpack.c.h.bf16 %v702
        %v1139 = vunpack.c.l.bf16 %v703
        %v1140 = vunpack.c.h.bf16 %v703
        %v1141 = vunpack.c.l.bf16 %v704
        %v1142 = vunpack.c.h.bf16 %v704
        %v1143 = vunpack.c.l.bf16 %v705
        %v1144 = vunpack.c.h.bf16 %v705
        %v1145 = vunpack.c.l.bf16 %v706
        %v1146 = vunpack.c.h.bf16 %v706
        %v1147 = vunpack.c.l.bf16 %v707
        %v1148 = vunpack.c.h.bf16 %v707
        %v1149 = vunpack.c.l.bf16 %v708
        %v1150 = vunpack.c.h.bf16 %v708
        %v1151 = vunpack.c.l.bf16 %v709
        %v1152 = vunpack.c.h.bf16 %v709
        %v1153 = vunpack.c.l.bf16 %v710
        %v1154 = vunpack.c.h.bf16 %v710
        %v1155 = vunpack.c.l.bf16 %v711
        %v1156 = vunpack.c.h.bf16 %v711
        %v1157 = vunpack.c.l.bf16 %v712
        %v1158 = vunpack.c.h.bf16 %v712
        %v1159 = vunpack.c.l.bf16 %v713
        %v1160 = vunpack.c.h.bf16 %v713
        %v1161 = vunpack.c.l.bf16 %v714
        %v1162 = vunpack.c.h.bf16 %v714
        %v1163 = vld [vmem:[%s430] sm:$0xff]
        %v1164 = vld [vmem:[%s430 + $0x8] sm:$0xff]
        %v1165 = vld [vmem:[%s430 + $0x10] sm:$0xff]
        %v1166 = vld [vmem:[%s430 + $0x18] sm:$0xff]
        %v1167 = vld [vmem:[%s430 + $0x20] sm:$0xff]
        %v1168 = vld [vmem:[%s430 + $0x28] sm:$0xff]
        %v1169 = vld [vmem:[%s430 + $0x30] sm:$0xff]
        %v1170 = vld [vmem:[%s5] sm:$0xf]
        %v1172 = vlaneseq
        %v1173 = vshrl.u32 %v1172, 7
        %v1174 = vsub.s32 0, %v1173
        %v1175 = vrot.slane %v1170, %v1174
        %v1176 = vlaneseq
        %v1177 = vshrl.u32 %v1176, 7
        %v1178 = vsub.s32 1, %v1177
        %v1179 = vrot.slane %v1170, %v1178
        %v1180 = vlaneseq
        %v1181 = vshrl.u32 %v1180, 7
        %v1182 = vsub.s32 2, %v1181
        %v1183 = vrot.slane %v1170, %v1182
        %v1184 = vlaneseq
        %v1185 = vshrl.u32 %v1184, 7
        %v1186 = vsub.s32 3, %v1185
        %v1187 = vrot.slane %v1170, %v1186
        %1192 = vmatprep.subr.mxu0 %v716
        %1193 = vmatpush1.msra.mxu0 %v715
        %1194 = vmatprep.subr.mxu0 %v720
        %1195 = vmatpush1.msra.mxu0 %v719
        %1196 = vmatprep.subr.mxu0 %v724
        %1197 = vmatpush1.msra.mxu0 %v723
        %1198 = vmatprep.subr.mxu0 %v728
        %1199 = vmatpush1.msra.mxu0 %v727
        %1200 = vmatprep.subr.mxu0 %v732
        %1201 = vmatpush1.msra.mxu0 %v731
        %1202 = vmatprep.subr.mxu0 %v736
        %1203 = vmatpush1.msra.mxu0 %v735
        %1204 = vmatprep.subr.mxu0 %v740
        %1205 = vmatpush1.msra.mxu0 %v739
        %1206 = vmatprep.subr.mxu0 %v744
        %1207 = vmatpush1.msra.mxu0 %v743
        %1208 = vmatprep.subr.mxu0 %v748
        %1209 = vmatpush1.msra.mxu0 %v747
        %1210 = vmatprep.subr.mxu0 %v752
        %1211 = vmatpush1.msra.mxu0 %v751
        %1212 = vmatprep.subr.mxu0 %v756
        %1213 = vmatpush1.msra.mxu0 %v755
        %1214 = vmatprep.subr.mxu0 %v760
        %1215 = vmatpush1.msra.mxu0 %v759
        %1216 = vmatprep.subr.mxu0 %v764
        %1217 = vmatpush1.msra.mxu0 %v763
        %1218 = vmatprep.subr.mxu0 %v768
        %1219 = vmatpush1.msra.mxu0 %v767
        %1220 = vmatprep.subr.mxu0 %v772
        %1221 = vmatpush1.msra.mxu0 %v771
        %1222 = vmatprep.subr.mxu0 %v776
        %1223 = vmatpush1.msra.mxu0 %v775
        %1224 = vmatprep.subr.mxu0 %v780
        %1225 = vmatpush1.msra.mxu0 %v779
        %1226 = vmatprep.subr.mxu0 %v784
        %1227 = vmatpush1.msra.mxu0 %v783
        %1228 = vmatprep.subr.mxu0 %v788
        %1229 = vmatpush1.msra.mxu0 %v787
        %1230 = vmatprep.subr.mxu0 %v792
        %1231 = vmatpush1.msra.mxu0 %v791
        %1232 = vmatprep.subr.mxu0 %v796
        %1233 = vmatpush1.msra.mxu0 %v795
        %1234 = vmatprep.subr.mxu0 %v800
        %1235 = vmatpush1.msra.mxu0 %v799
        %1236 = vmatprep.subr.mxu0 %v804
        %1237 = vmatpush1.msra.mxu0 %v803
        %1238 = vmatprep.subr.mxu0 %v808
        %1239 = vmatpush1.msra.mxu0 %v807
        %1240 = vmatprep.subr.mxu0 %v812
        %1241 = vmatpush1.msra.mxu0 %v811
        %1242 = vmatprep.subr.mxu0 %v816
        %1243 = vmatpush1.msra.mxu0 %v815
        %1244 = vmatprep.subr.mxu0 %v820
        %1245 = vmatpush1.msra.mxu0 %v819
        %1246 = vmatprep.subr.mxu0 %v824
        %1247 = vmatpush1.msra.mxu0 %v823
        %1248 = vmatprep.subr.mxu0 %v828
        %1249 = vmatpush1.msra.mxu0 %v827
        %1250 = vmatprep.subr.mxu0 %v832
        %1251 = vmatpush1.msra.mxu0 %v831
        %1252 = vmatprep.subr.mxu0 %v836
        %1253 = vmatpush1.msra.mxu0 %v835
        %1254 = vmatprep.subr.mxu0 %v840
        %1255 = vmatpush1.msra.mxu0 %v839
        %1256 = vmatprep.mubr.f32.mxu0 %v1164
        %1257 = vmatmul.mubr.f32.gmra.mrb[0].mxu0 %v1163
        %v1258 = vpop.f32.mrb[0].mxu0
        %v1259 = vadd.f32 %v1175, %v1258
        %v1260 = vpop.f32.mrb[0].mxu0
        %v1261 = vadd.f32 %v1179, %v1260
        %1262 = vdwg.mxu0
        %1263 = vmatprep.subr.mxu0 %v844
        %1264 = vmatpush1.msra.mxu0 %v843
        %1265 = vmatprep.subr.mxu0 %v848
        %1266 = vmatpush1.msra.mxu0 %v847
        %1267 = vmatprep.subr.mxu0 %v852
        %1268 = vmatpush1.msra.mxu0 %v851
        %1269 = vmatprep.subr.mxu0 %v856
        %1270 = vmatpush1.msra.mxu0 %v855
        %1271 = vmatprep.subr.mxu0 %v860
        %1272 = vmatpush1.msra.mxu0 %v859
        %1273 = vmatprep.subr.mxu0 %v864
        %1274 = vmatpush1.msra.mxu0 %v863
        %1275 = vmatprep.subr.mxu0 %v868
        %1276 = vmatpush1.msra.mxu0 %v867
        %1277 = vmatprep.subr.mxu0 %v872
        %1278 = vmatpush1.msra.mxu0 %v871
        %1279 = vmatprep.subr.mxu0 %v876
        %1280 = vmatpush1.msra.mxu0 %v875
        %1281 = vmatprep.subr.mxu0 %v880
        %1282 = vmatpush1.msra.mxu0 %v879
        %1283 = vmatprep.subr.mxu0 %v884
        %1284 = vmatpush1.msra.mxu0 %v883
        %1285 = vmatprep.subr.mxu0 %v888
        %1286 = vmatpush1.msra.mxu0 %v887
        %1287 = vmatprep.subr.mxu0 %v892
        %1288 = vmatpush1.msra.mxu0 %v891
        %1289 = vmatprep.subr.mxu0 %v896
        %1290 = vmatpush1.msra.mxu0 %v895
        %1291 = vmatprep.subr.mxu0 %v900
        %1292 = vmatpush1.msra.mxu0 %v899
        %1293 = vmatprep.subr.mxu0 %v904
        %1294 = vmatpush1.msra.mxu0 %v903
        %1295 = vmatprep.subr.mxu0 %v908
        %1296 = vmatpush1.msra.mxu0 %v907
        %1297 = vmatprep.subr.mxu0 %v912
        %1298 = vmatpush1.msra.mxu0 %v911
        %1299 = vmatprep.subr.mxu0 %v916
        %1300 = vmatpush1.msra.mxu0 %v915
        %1301 = vmatprep.subr.mxu0 %v920
        %1302 = vmatpush1.msra.mxu0 %v919
        %1303 = vmatprep.subr.mxu0 %v924
        %1304 = vmatpush1.msra.mxu0 %v923
        %1305 = vmatprep.subr.mxu0 %v928
        %1306 = vmatpush1.msra.mxu0 %v927
        %1307 = vmatprep.subr.mxu0 %v932
        %1308 = vmatpush1.msra.mxu0 %v931
        %1309 = vmatprep.subr.mxu0 %v936
        %1310 = vmatpush1.msra.mxu0 %v935
        %1311 = vmatprep.subr.mxu0 %v940
        %1312 = vmatpush1.msra.mxu0 %v939
        %1313 = vmatprep.subr.mxu0 %v944
        %1314 = vmatpush1.msra.mxu0 %v943
        %1315 = vmatprep.subr.mxu0 %v948
        %1316 = vmatpush1.msra.mxu0 %v947
        %1317 = vmatprep.subr.mxu0 %v952
        %1318 = vmatpush1.msra.mxu0 %v951
        %1319 = vmatprep.subr.mxu0 %v956
        %1320 = vmatpush1.msra.mxu0 %v955
        %1321 = vmatprep.subr.mxu0 %v960
        %1322 = vmatpush1.msra.mxu0 %v959
        %1323 = vmatprep.subr.mxu0 %v964
        %1324 = vmatpush1.msra.mxu0 %v963
        %1325 = vmatprep.subr.mxu0 %v968
        %1326 = vmatpush1.msra.mxu0 %v967
        %1327 = vmatprep.mubr.f32.mxu0 %v1166
        %1328 = vmatmul.mubr.f32.gmra.mrb[0].mxu0 %v1165
        %v1329 = vpop.f32.mrb[0].mxu0
        %v1330 = vadd.f32 %v1259, %v1329
        %v1331 = vpop.f32.mrb[0].mxu0
        %v1332 = vadd.f32 %v1261, %v1331
        %1333 = vdwg.mxu0
        %1334 = vmatprep.subr.mxu0 %v972
        %1335 = vmatpush1.msra.mxu0 %v971
        %1336 = vmatprep.subr.mxu0 %v976
        %1337 = vmatpush1.msra.mxu0 %v975
        %1338 = vmatprep.subr.mxu0 %v980
        %1339 = vmatpush1.msra.mxu0 %v979
        %1340 = vmatprep.subr.mxu0 %v984
        %1341 = vmatpush1.msra.mxu0 %v983
        %1342 = vmatprep.subr.mxu0 %v988
        %1343 = vmatpush1.msra.mxu0 %v987
        %1344 = vmatprep.subr.mxu0 %v992
        %1345 = vmatpush1.msra.mxu0 %v991
        %1346 = vmatprep.subr.mxu0 %v996
        %1347 = vmatpush1.msra.mxu0 %v995
        %1348 = vmatprep.subr.mxu0 %v1000
        %1349 = vmatpush1.msra.mxu0 %v999
        %1350 = vmatprep.subr.mxu0 %v1004
        %1351 = vmatpush1.msra.mxu0 %v1003
        %1352 = vmatprep.subr.mxu0 %v1008
        %1353 = vmatpush1.msra.mxu0 %v1007
        %1354 = vmatprep.subr.mxu0 %v1012
        %1355 = vmatpush1.msra.mxu0 %v1011
        %1356 = vmatprep.subr.mxu0 %v1016
        %1357 = vmatpush1.msra.mxu0 %v1015
        %1358 = vmatprep.subr.mxu0 %v1020
        %1359 = vmatpush1.msra.mxu0 %v1019
        %1360 = vmatprep.subr.mxu0 %v1024
        %1361 = vmatpush1.msra.mxu0 %v1023
        %1362 = vmatprep.subr.mxu0 %v1028
        %1363 = vmatpush1.msra.mxu0 %v1027
        %1364 = vmatprep.subr.mxu0 %v1032
        %1365 = vmatpush1.msra.mxu0 %v1031
        %1366 = vmatprep.subr.mxu0 %v1036
        %1367 = vmatpush1.msra.mxu0 %v1035
        %1368 = vmatprep.subr.mxu0 %v1040
        %1369 = vmatpush1.msra.mxu0 %v1039
        %1370 = vmatprep.subr.mxu0 %v1044
        %1371 = vmatpush1.msra.mxu0 %v1043
        %1372 = vmatprep.subr.mxu0 %v1048
        %1373 = vmatpush1.msra.mxu0 %v1047
        %1374 = vmatprep.subr.mxu0 %v1052
        %1375 = vmatpush1.msra.mxu0 %v1051
        %1376 = vmatprep.subr.mxu0 %v1056
        %1377 = vmatpush1.msra.mxu0 %v1055
        %1378 = vmatprep.subr.mxu0 %v1060
        %1379 = vmatpush1.msra.mxu0 %v1059
        %1380 = vmatprep.subr.mxu0 %v1064
        %1381 = vmatpush1.msra.mxu0 %v1063
        %1382 = vmatprep.subr.mxu0 %v1068
        %1383 = vmatpush1.msra.mxu0 %v1067
        %1384 = vmatprep.subr.mxu0 %v1072
        %1385 = vmatpush1.msra.mxu0 %v1071
        %1386 = vmatprep.subr.mxu0 %v1076
        %1387 = vmatpush1.msra.mxu0 %v1075
        %1388 = vmatprep.subr.mxu0 %v1080
        %1389 = vmatpush1.msra.mxu0 %v1079
        %1390 = vmatprep.subr.mxu0 %v1084
        %1391 = vmatpush1.msra.mxu0 %v1083
        %1392 = vmatprep.subr.mxu0 %v1088
        %1393 = vmatpush1.msra.mxu0 %v1087
        %1394 = vmatprep.subr.mxu0 %v1092
        %1395 = vmatpush1.msra.mxu0 %v1091
        %1396 = vmatprep.subr.mxu0 %v1096
        %1397 = vmatpush1.msra.mxu0 %v1095
        %1398 = vmatprep.mubr.f32.mxu0 %v1168
        %1399 = vmatmul.mubr.f32.gmra.mrb[0].mxu0 %v1167
        %v1400 = vpop.f32.mrb[0].mxu0
        %v1401 = vadd.f32 %v1330, %v1400
        %v1402 = vpop.f32.mrb[0].mxu0
        %v1403 = vadd.f32 %v1332, %v1402
        %1404 = vdwg.mxu0
        %1405 = vmatprep.subr.mxu0 %v1100
        %1406 = vmatpush1.msra.mxu0 %v1099
        %1407 = vmatprep.subr.mxu0 %v1104
        %1408 = vmatpush1.msra.mxu0 %v1103
        %1409 = vmatprep.subr.mxu0 %v1108
        %1410 = vmatpush1.msra.mxu0 %v1107
        %1411 = vmatprep.subr.mxu0 %v1112
        %1412 = vmatpush1.msra.mxu0 %v1111
        %1413 = vmatprep.subr.mxu0 %v1116
        %1414 = vmatpush1.msra.mxu0 %v1115
        %1415 = vmatprep.subr.mxu0 %v1120
        %1416 = vmatpush1.msra.mxu0 %v1119
        %1417 = vmatprep.subr.mxu0 %v1124
        %1418 = vmatpush1.msra.mxu0 %v1123
        %1419 = vmatprep.subr.mxu0 %v1128
        %1420 = vmatpush1.msra.mxu0 %v1127
        %1421 = vmatprep.subr.mxu0 %v1132
        %1422 = vmatpush1.msra.mxu0 %v1131
        %1423 = vmatprep.subr.mxu0 %v1136
        %1424 = vmatpush1.msra.mxu0 %v1135
        %1425 = vmatprep.subr.mxu0 %v1140
        %1426 = vmatpush1.msra.mxu0 %v1139
        %1427 = vmatprep.subr.mxu0 %v1144
        %1428 = vmatpush1.msra.mxu0 %v1143
        %1429 = vmatprep.subr.mxu0 %v1148
        %1430 = vmatpush1.msra.mxu0 %v1147
        %1431 = vmatprep.subr.mxu0 %v1152
        %1432 = vmatpush1.msra.mxu0 %v1151
        %1433 = vmatprep.subr.mxu0 %v1156
        %1434 = vmatpush1.msra.mxu0 %v1155
        %1435 = vmatprep.subr.mxu0 %v1160
        %1436 = vmatpush1.msra.mxu0 %v1159
        %1437 = vmatprep.subr.mxu0 0.0
        %1438 = vmatpush1.msra.mxu0 0.0
        %1439 = vmatprep.subr.mxu0 0.0
        %1440 = vmatpush1.msra.mxu0 0.0
        %1441 = vmatprep.subr.mxu0 0.0
        %1442 = vmatpush1.msra.mxu0 0.0
        %1443 = vmatprep.subr.mxu0 0.0
        %1444 = vmatpush1.msra.mxu0 0.0
        %1445 = vmatprep.subr.mxu0 0.0
        %1446 = vmatpush1.msra.mxu0 0.0
        %1447 = vmatprep.subr.mxu0 0.0
        %1448 = vmatpush1.msra.mxu0 0.0
        %1449 = vmatprep.subr.mxu0 0.0
        %1450 = vmatpush1.msra.mxu0 0.0
        %1451 = vmatprep.subr.mxu0 0.0
        %1452 = vmatpush1.msra.mxu0 0.0
        %1453 = vmatprep.subr.mxu0 0.0
        %1454 = vmatpush1.msra.mxu0 0.0
        %1455 = vmatprep.subr.mxu0 0.0
        %1456 = vmatpush1.msra.mxu0 0.0
        %1457 = vmatprep.subr.mxu0 0.0
        %1458 = vmatpush1.msra.mxu0 0.0
        %1459 = vmatprep.subr.mxu0 0.0
        %1460 = vmatpush1.msra.mxu0 0.0
        %1461 = vmatprep.subr.mxu0 0.0
        %1462 = vmatpush1.msra.mxu0 0.0
        %1463 = vmatprep.subr.mxu0 0.0
        %1464 = vmatpush1.msra.mxu0 0.0
        %1465 = vmatprep.subr.mxu0 0.0
        %1466 = vmatpush1.msra.mxu0 0.0
        %1467 = vmatprep.subr.mxu0 0.0
        %1468 = vmatpush1.msra.mxu0 0.0
        %1469 = vmatprep.mubr.f32.mxu0 0.0
        %1470 = vmatmul.mubr.f32.gmra.mrb[0].mxu0 %v1169
        %v1471 = vpop.f32.mrb[0].mxu0
        %v1472 = vadd.f32 %v1401, %v1471
        %v1473 = vpop.f32.mrb[0].mxu0
        %v1474 = vadd.f32 %v1403, %v1473
        %1475 = vdwg.mxu0
        %1476 = vmatprep.subr.mxu0 %v718
        %1477 = vmatpush1.msra.mxu0 %v717
        %1478 = vmatprep.subr.mxu0 %v722
        %1479 = vmatpush1.msra.mxu0 %v721
        %1480 = vmatprep.subr.mxu0 %v726
        %1481 = vmatpush1.msra.mxu0 %v725
        %1482 = vmatprep.subr.mxu0 %v730
        %1483 = vmatpush1.msra.mxu0 %v729
        %1484 = vmatprep.subr.mxu0 %v734
        %1485 = vmatpush1.msra.mxu0 %v733
        %1486 = vmatprep.subr.mxu0 %v738
        %1487 = vmatpush1.msra.mxu0 %v737
        %1488 = vmatprep.subr.mxu0 %v742
        %1489 = vmatpush1.msra.mxu0 %v741
        %1490 = vmatprep.subr.mxu0 %v746
        %1491 = vmatpush1.msra.mxu0 %v745
        %1492 = vmatprep.subr.mxu0 %v750
        %1493 = vmatpush1.msra.mxu0 %v749
        %1494 = vmatprep.subr.mxu0 %v754
        %1495 = vmatpush1.msra.mxu0 %v753
        %1496 = vmatprep.subr.mxu0 %v758
        %1497 = vmatpush1.msra.mxu0 %v757
        %1498 = vmatprep.subr.mxu0 %v762
        %1499 = vmatpush1.msra.mxu0 %v761
        %1500 = vmatprep.subr.mxu0 %v766
        %1501 = vmatpush1.msra.mxu0 %v765
        %1502 = vmatprep.subr.mxu0 %v770
        %1503 = vmatpush1.msra.mxu0 %v769
        %1504 = vmatprep.subr.mxu0 %v774
        %1505 = vmatpush1.msra.mxu0 %v773
        %1506 = vmatprep.subr.mxu0 %v778
        %1507 = vmatpush1.msra.mxu0 %v777
        %1508 = vmatprep.subr.mxu0 %v782
        %1509 = vmatpush1.msra.mxu0 %v781
        %1510 = vmatprep.subr.mxu0 %v786
        %1511 = vmatpush1.msra.mxu0 %v785
        %1512 = vmatprep.subr.mxu0 %v790
        %1513 = vmatpush1.msra.mxu0 %v789
        %1514 = vmatprep.subr.mxu0 %v794
        %1515 = vmatpush1.msra.mxu0 %v793
        %1516 = vmatprep.subr.mxu0 %v798
        %1517 = vmatpush1.msra.mxu0 %v797
        %1518 = vmatprep.subr.mxu0 %v802
        %1519 = vmatpush1.msra.mxu0 %v801
        %1520 = vmatprep.subr.mxu0 %v806
        %1521 = vmatpush1.msra.mxu0 %v805
        %1522 = vmatprep.subr.mxu0 %v810
        %1523 = vmatpush1.msra.mxu0 %v809
        %1524 = vmatprep.subr.mxu0 %v814
        %1525 = vmatpush1.msra.mxu0 %v813
        %1526 = vmatprep.subr.mxu0 %v818
        %1527 = vmatpush1.msra.mxu0 %v817
        %1528 = vmatprep.subr.mxu0 %v822
        %1529 = vmatpush1.msra.mxu0 %v821
        %1530 = vmatprep.subr.mxu0 %v826
        %1531 = vmatpush1.msra.mxu0 %v825
        %1532 = vmatprep.subr.mxu0 %v830
        %1533 = vmatpush1.msra.mxu0 %v829
        %1534 = vmatprep.subr.mxu0 %v834
        %1535 = vmatpush1.msra.mxu0 %v833
        %1536 = vmatprep.subr.mxu0 %v838
        %1537 = vmatpush1.msra.mxu0 %v837
        %1538 = vmatprep.subr.mxu0 %v842
        %1539 = vmatpush1.msra.mxu0 %v841
        %1540 = vmatprep.mubr.f32.mxu0 %v1164
        %1541 = vmatmul.mubr.f32.gmra.mrb[0].mxu0 %v1163
        %v1542 = vpop.f32.mrb[0].mxu0
        %v1543 = vadd.f32 %v1183, %v1542
        %v1544 = vpop.f32.mrb[0].mxu0
        %v1545 = vadd.f32 %v1187, %v1544
        %1546 = vdwg.mxu0
        %1547 = vmatprep.subr.mxu0 %v846
        %1548 = vmatpush1.msra.mxu0 %v845
        %1549 = vmatprep.subr.mxu0 %v850
        %1550 = vmatpush1.msra.mxu0 %v849
        %1551 = vmatprep.subr.mxu0 %v854
        %1552 = vmatpush1.msra.mxu0 %v853
        %1553 = vmatprep.subr.mxu0 %v858
        %1554 = vmatpush1.msra.mxu0 %v857
        %1555 = vmatprep.subr.mxu0 %v862
        %1556 = vmatpush1.msra.mxu0 %v861
        %1557 = vmatprep.subr.mxu0 %v866
        %1558 = vmatpush1.msra.mxu0 %v865
        %1559 = vmatprep.subr.mxu0 %v870
        %1560 = vmatpush1.msra.mxu0 %v869
        %1561 = vmatprep.subr.mxu0 %v874
        %1562 = vmatpush1.msra.mxu0 %v873
        %1563 = vmatprep.subr.mxu0 %v878
        %1564 = vmatpush1.msra.mxu0 %v877
        %1565 = vmatprep.subr.mxu0 %v882
        %1566 = vmatpush1.msra.mxu0 %v881
        %1567 = vmatprep.subr.mxu0 %v886
        %1568 = vmatpush1.msra.mxu0 %v885
        %1569 = vmatprep.subr.mxu0 %v890
        %1570 = vmatpush1.msra.mxu0 %v889
        %1571 = vmatprep.subr.mxu0 %v894
        %1572 = vmatpush1.msra.mxu0 %v893
        %1573 = vmatprep.subr.mxu0 %v898
        %1574 = vmatpush1.msra.mxu0 %v897
        %1575 = vmatprep.subr.mxu0 %v902
        %1576 = vmatpush1.msra.mxu0 %v901
        %1577 = vmatprep.subr.mxu0 %v906
        %1578 = vmatpush1.msra.mxu0 %v905
        %1579 = vmatprep.subr.mxu0 %v910
        %1580 = vmatpush1.msra.mxu0 %v909
        %1581 = vmatprep.subr.mxu0 %v914
        %1582 = vmatpush1.msra.mxu0 %v913
        %1583 = vmatprep.subr.mxu0 %v918
        %1584 = vmatpush1.msra.mxu0 %v917
        %1585 = vmatprep.subr.mxu0 %v922
        %1586 = vmatpush1.msra.mxu0 %v921
        %1587 = vmatprep.subr.mxu0 %v926
        %1588 = vmatpush1.msra.mxu0 %v925
        %1589 = vmatprep.subr.mxu0 %v930
        %1590 = vmatpush1.msra.mxu0 %v929
        %1591 = vmatprep.subr.mxu0 %v934
        %1592 = vmatpush1.msra.mxu0 %v933
        %1593 = vmatprep.subr.mxu0 %v938
        %1594 = vmatpush1.msra.mxu0 %v937
        %1595 = vmatprep.subr.mxu0 %v942
        %1596 = vmatpush1.msra.mxu0 %v941
        %1597 = vmatprep.subr.mxu0 %v946
        %1598 = vmatpush1.msra.mxu0 %v945
        %1599 = vmatprep.subr.mxu0 %v950
        %1600 = vmatpush1.msra.mxu0 %v949
        %1601 = vmatprep.subr.mxu0 %v954
        %1602 = vmatpush1.msra.mxu0 %v953
        %1603 = vmatprep.subr.mxu0 %v958
        %1604 = vmatpush1.msra.mxu0 %v957
        %1605 = vmatprep.subr.mxu0 %v962
        %1606 = vmatpush1.msra.mxu0 %v961
        %1607 = vmatprep.subr.mxu0 %v966
        %1608 = vmatpush1.msra.mxu0 %v965
        %1609 = vmatprep.subr.mxu0 %v970
        %1610 = vmatpush1.msra.mxu0 %v969
        %1611 = vmatprep.mubr.f32.mxu0 %v1166
        %1612 = vmatmul.mubr.f32.gmra.mrb[0].mxu0 %v1165
        %v1613 = vpop.f32.mrb[0].mxu0
        %v1614 = vadd.f32 %v1543, %v1613
        %v1615 = vpop.f32.mrb[0].mxu0
        %v1616 = vadd.f32 %v1545, %v1615
        %1617 = vdwg.mxu0
        %1618 = vmatprep.subr.mxu0 %v974
        %1619 = vmatpush1.msra.mxu0 %v973
        %1620 = vmatprep.subr.mxu0 %v978
        %1621 = vmatpush1.msra.mxu0 %v977
        %1622 = vmatprep.subr.mxu0 %v982
        %1623 = vmatpush1.msra.mxu0 %v981
        %1624 = vmatprep.subr.mxu0 %v986
        %1625 = vmatpush1.msra.mxu0 %v985
        %1626 = vmatprep.subr.mxu0 %v990
        %1627 = vmatpush1.msra.mxu0 %v989
        %1628 = vmatprep.subr.mxu0 %v994
        %1629 = vmatpush1.msra.mxu0 %v993
        %1630 = vmatprep.subr.mxu0 %v998
        %1631 = vmatpush1.msra.mxu0 %v997
        %1632 = vmatprep.subr.mxu0 %v1002
        %1633 = vmatpush1.msra.mxu0 %v1001
        %1634 = vmatprep.subr.mxu0 %v1006
        %1635 = vmatpush1.msra.mxu0 %v1005
        %1636 = vmatprep.subr.mxu0 %v1010
        %1637 = vmatpush1.msra.mxu0 %v1009
        %1638 = vmatprep.subr.mxu0 %v1014
        %1639 = vmatpush1.msra.mxu0 %v1013
        %1640 = vmatprep.subr.mxu0 %v1018
        %1641 = vmatpush1.msra.mxu0 %v1017
        %1642 = vmatprep.subr.mxu0 %v1022
        %1643 = vmatpush1.msra.mxu0 %v1021
        %1644 = vmatprep.subr.mxu0 %v1026
        %1645 = vmatpush1.msra.mxu0 %v1025
        %1646 = vmatprep.subr.mxu0 %v1030
        %1647 = vmatpush1.msra.mxu0 %v1029
        %1648 = vmatprep.subr.mxu0 %v1034
        %1649 = vmatpush1.msra.mxu0 %v1033
        %1650 = vmatprep.subr.mxu0 %v1038
        %1651 = vmatpush1.msra.mxu0 %v1037
        %1652 = vmatprep.subr.mxu0 %v1042
        %1653 = vmatpush1.msra.mxu0 %v1041
        %1654 = vmatprep.subr.mxu0 %v1046
        %1655 = vmatpush1.msra.mxu0 %v1045
        %1656 = vmatprep.subr.mxu0 %v1050
        %1657 = vmatpush1.msra.mxu0 %v1049
        %1658 = vmatprep.subr.mxu0 %v1054
        %1659 = vmatpush1.msra.mxu0 %v1053
        %1660 = vmatprep.subr.mxu0 %v1058
        %1661 = vmatpush1.msra.mxu0 %v1057
        %1662 = vmatprep.subr.mxu0 %v1062
        %1663 = vmatpush1.msra.mxu0 %v1061
        %1664 = vmatprep.subr.mxu0 %v1066
        %1665 = vmatpush1.msra.mxu0 %v1065
        %1666 = vmatprep.subr.mxu0 %v1070
        %1667 = vmatpush1.msra.mxu0 %v1069
        %1668 = vmatprep.subr.mxu0 %v1074
        %1669 = vmatpush1.msra.mxu0 %v1073
        %1670 = vmatprep.subr.mxu0 %v1078
        %1671 = vmatpush1.msra.mxu0 %v1077
        %1672 = vmatprep.subr.mxu0 %v1082
        %1673 = vmatpush1.msra.mxu0 %v1081
        %1674 = vmatprep.subr.mxu0 %v1086
        %1675 = vmatpush1.msra.mxu0 %v1085
        %1676 = vmatprep.subr.mxu0 %v1090
        %1677 = vmatpush1.msra.mxu0 %v1089
        %1678 = vmatprep.subr.mxu0 %v1094
        %1679 = vmatpush1.msra.mxu0 %v1093
        %1680 = vmatprep.subr.mxu0 %v1098
        %1681 = vmatpush1.msra.mxu0 %v1097
        %1682 = vmatprep.mubr.f32.mxu0 %v1168
        %1683 = vmatmul.mubr.f32.gmra.mrb[0].mxu0 %v1167
        %v1684 = vpop.f32.mrb[0].mxu0
        %v1685 = vadd.f32 %v1614, %v1684
        %v1686 = vpop.f32.mrb[0].mxu0
        %v1687 = vadd.f32 %v1616, %v1686
        %1688 = vdwg.mxu0
        %1689 = vmatprep.subr.mxu0 %v1102
        %1690 = vmatpush1.msra.mxu0 %v1101
        %1691 = vmatprep.subr.mxu0 %v1106
        %1692 = vmatpush1.msra.mxu0 %v1105
        %1693 = vmatprep.subr.mxu0 %v1110
        %1694 = vmatpush1.msra.mxu0 %v1109
        %1695 = vmatprep.subr.mxu0 %v1114
        %1696 = vmatpush1.msra.mxu0 %v1113
        %1697 = vmatprep.subr.mxu0 %v1118
        %1698 = vmatpush1.msra.mxu0 %v1117
        %1699 = vmatprep.subr.mxu0 %v1122
        %1700 = vmatpush1.msra.mxu0 %v1121
        %1701 = vmatprep.subr.mxu0 %v1126
        %1702 = vmatpush1.msra.mxu0 %v1125
        %1703 = vmatprep.subr.mxu0 %v1130
        %1704 = vmatpush1.msra.mxu0 %v1129
        %1705 = vmatprep.subr.mxu0 %v1134
        %1706 = vmatpush1.msra.mxu0 %v1133
        %1707 = vmatprep.subr.mxu0 %v1138
        %1708 = vmatpush1.msra.mxu0 %v1137
        %1709 = vmatprep.subr.mxu0 %v1142
        %1710 = vmatpush1.msra.mxu0 %v1141
        %1711 = vmatprep.subr.mxu0 %v1146
        %1712 = vmatpush1.msra.mxu0 %v1145
        %1713 = vmatprep.subr.mxu0 %v1150
        %1714 = vmatpush1.msra.mxu0 %v1149
        %1715 = vmatprep.subr.mxu0 %v1154
        %1716 = vmatpush1.msra.mxu0 %v1153
        %1717 = vmatprep.subr.mxu0 %v1158
        %1718 = vmatpush1.msra.mxu0 %v1157
        %1719 = vmatprep.subr.mxu0 %v1162
        %1720 = vmatpush1.msra.mxu0 %v1161
        %1721 = vmatprep.subr.mxu0 0.0
        %1722 = vmatpush1.msra.mxu0 0.0
        %1723 = vmatprep.subr.mxu0 0.0
        %1724 = vmatpush1.msra.mxu0 0.0
        %1725 = vmatprep.subr.mxu0 0.0
        %1726 = vmatpush1.msra.mxu0 0.0
        %1727 = vmatprep.subr.mxu0 0.0
        %1728 = vmatpush1.msra.mxu0 0.0
        %1729 = vmatprep.subr.mxu0 0.0
        %1730 = vmatpush1.msra.mxu0 0.0
        %1731 = vmatprep.subr.mxu0 0.0
        %1732 = vmatpush1.msra.mxu0 0.0
        %1733 = vmatprep.subr.mxu0 0.0
        %1734 = vmatpush1.msra.mxu0 0.0
        %1735 = vmatprep.subr.mxu0 0.0
        %1736 = vmatpush1.msra.mxu0 0.0
        %1737 = vmatprep.subr.mxu0 0.0
        %1738 = vmatpush1.msra.mxu0 0.0
        %1739 = vmatprep.subr.mxu0 0.0
        %1740 = vmatpush1.msra.mxu0 0.0
        %1741 = vmatprep.subr.mxu0 0.0
        %1742 = vmatpush1.msra.mxu0 0.0
        %1743 = vmatprep.subr.mxu0 0.0
        %1744 = vmatpush1.msra.mxu0 0.0
        %1745 = vmatprep.subr.mxu0 0.0
        %1746 = vmatpush1.msra.mxu0 0.0
        %1747 = vmatprep.subr.mxu0 0.0
        %1748 = vmatpush1.msra.mxu0 0.0
        %1749 = vmatprep.subr.mxu0 0.0
        %1750 = vmatpush1.msra.mxu0 0.0
        %1751 = vmatprep.subr.mxu0 0.0
        %1752 = vmatpush1.msra.mxu0 0.0
        %1753 = vmatprep.mubr.f32.mxu0 0.0
        %1754 = vmatmul.mubr.f32.gmra.mrb[0].mxu0 %v1169
        %v1755 = vpop.f32.mrb[0].mxu0
        %v1756 = vadd.f32 %v1685, %v1755
        %v1757 = vpop.f32.mrb[0].mxu0
        %v1758 = vadd.f32 %v1687, %v1757
        %1759 = vdwg.mxu0
        %vm1760 = vcmp.gt.f32.partialorder %v1472, 0.0
        %vm1761 = vcmp.gt.f32.partialorder %v1474, 0.0
        %vm1762 = vcmp.gt.f32.partialorder %v1756, 0.0
        %vm1763 = vcmp.gt.f32.partialorder %v1758, 0.0
        %v1764 = vmin.f32 %v1472, 0.0
        %v1765 = vmin.f32 %v1474, 0.0
        %v1766 = vmin.f32 %v1756, 0.0
        %v1767 = vmin.f32 %v1758, 0.0
        %v1768 = vmul.f32 %v1764, 1.442695
        %v1769 = vpow.pop %v1768
        %v1770 = vmul.f32 %v1765, 1.442695
        %v1771 = vpow.pop %v1770
        %v1772 = vmul.f32 %v1766, 1.442695
        %v1773 = vpow.pop %v1772
        %v1774 = vmul.f32 %v1767, 1.442695
        %v1775 = vpow.pop %v1774
        %v1776 = vsub.f32 %v1769, 1.0
        %v1777 = vsub.f32 %v1771, 1.0
        %v1778 = vsub.f32 %v1773, 1.0
        %v1779 = vsub.f32 %v1775, 1.0
        %v1780 = vmul.f32 %v1776, 1.6732632
        %v1781 = vmul.f32 %v1777, 1.6732632
        %v1782 = vmul.f32 %v1778, 1.6732632
        %v1783 = vmul.f32 %v1779, 1.6732632
        %v1784 = vsel %vm1760, %v1472, %v1780
        %v1785 = vsel %vm1761, %v1474, %v1781
        %v1786 = vsel %vm1762, %v1756, %v1782
        %v1787 = vsel %vm1763, %v1758, %v1783
        %v1788 = vmul.f32 %v1784, 1.050701
        %v1789 = vmul.f32 %v1785, 1.050701
        %v1790 = vmul.f32 %v1786, 1.050701
        %v1791 = vmul.f32 %v1787, 1.050701
        %v1792 = vld [vmem:[#allocation7] sm:$0xf]
        %v1793 = vld [vmem:[#allocation7 + $0x4] sm:$0xf]
        %v1794 = vld [vmem:[#allocation7 + $0x8] sm:$0xf]
        %v1795 = vld [vmem:[#allocation7 + $0xc] sm:$0xf]
        %v1796 = vld [vmem:[#allocation7 + $0x10] sm:$0xf]
        %v1797 = vld [vmem:[#allocation7 + $0x14] sm:$0xf]
        %v1798 = vld [vmem:[#allocation7 + $0x18] sm:$0xf]
        %v1799 = vld [vmem:[#allocation7 + $0x1c] sm:$0xf]
        %v1800 = vld [vmem:[#allocation7 + $0x20] sm:$0xf]
        %v1801 = vld [vmem:[#allocation7 + $0x24] sm:$0xf]
        %v1802 = vld [vmem:[#allocation7 + $0x28] sm:$0xf]
        %v1803 = vld [vmem:[#allocation7 + $0x2c] sm:$0xf]
        %v1804 = vld [vmem:[#allocation7 + $0x30] sm:$0xf]
        %v1805 = vld [vmem:[#allocation7 + $0x34] sm:$0xf]
        %v1806 = vld [vmem:[#allocation7 + $0x38] sm:$0xf]
        %v1807 = vld [vmem:[#allocation7 + $0x3c] sm:$0xf]
        %v1808 = vld [vmem:[#allocation7 + $0x40] sm:$0xf]
        %v1809 = vld [vmem:[#allocation7 + $0x44] sm:$0xf]
        %v1810 = vld [vmem:[#allocation7 + $0x48] sm:$0xf]
        %v1811 = vld [vmem:[#allocation7 + $0x4c] sm:$0xf]
        %v1812 = vld [vmem:[#allocation7 + $0x50] sm:$0xf]
        %v1813 = vld [vmem:[#allocation7 + $0x54] sm:$0xf]
        %v1814 = vld [vmem:[#allocation7 + $0x58] sm:$0xf]
        %v1815 = vld [vmem:[#allocation7 + $0x5c] sm:$0xf]
        %v1816 = vld [vmem:[#allocation7 + $0x60] sm:$0xf]
        %v1817 = vld [vmem:[#allocation7 + $0x64] sm:$0xf]
        %v1818 = vld [vmem:[#allocation7 + $0x68] sm:$0xf]
        %v1819 = vld [vmem:[#allocation7 + $0x6c] sm:$0xf]
        %v1820 = vld [vmem:[#allocation7 + $0x70] sm:$0xf]
        %v1821 = vld [vmem:[#allocation7 + $0x74] sm:$0xf]
        %v1822 = vld [vmem:[#allocation7 + $0x78] sm:$0xf]
        %v1823 = vld [vmem:[#allocation7 + $0x7c] sm:$0xf]
        %v1824 = vld [vmem:[#allocation7 + $0x80] sm:$0xf]
        %v1825 = vld [vmem:[#allocation7 + $0x84] sm:$0xf]
        %v1826 = vld [vmem:[#allocation7 + $0x88] sm:$0xf]
        %v1827 = vld [vmem:[#allocation7 + $0x8c] sm:$0xf]
        %v1828 = vld [vmem:[#allocation7 + $0x90] sm:$0xf]
        %v1829 = vld [vmem:[#allocation7 + $0x94] sm:$0xf]
        %v1830 = vld [vmem:[#allocation7 + $0x98] sm:$0xf]
        %v1831 = vld [vmem:[#allocation7 + $0x9c] sm:$0xf]
        %v1832 = vld [vmem:[#allocation7 + $0xa0] sm:$0xf]
        %v1833 = vld [vmem:[#allocation7 + $0xa4] sm:$0xf]
        %v1834 = vld [vmem:[#allocation7 + $0xa8] sm:$0xf]
        %v1835 = vld [vmem:[#allocation7 + $0xac] sm:$0xf]
        %v1836 = vld [vmem:[#allocation7 + $0xb0] sm:$0xf]
        %v1837 = vld [vmem:[#allocation7 + $0xb4] sm:$0xf]
        %v1838 = vld [vmem:[#allocation7 + $0xb8] sm:$0xf]
        %v1839 = vld [vmem:[#allocation7 + $0xbc] sm:$0xf]
        %v1840 = vld [vmem:[#allocation7 + $0xc0] sm:$0xf]
        %v1841 = vld [vmem:[#allocation7 + $0xc4] sm:$0xf]
        %v1842 = vld [vmem:[#allocation7 + $0xc8] sm:$0xf]
        %v1843 = vld [vmem:[#allocation7 + $0xcc] sm:$0xf]
        %v1844 = vld [vmem:[#allocation7 + $0xd0] sm:$0xf]
        %v1845 = vld [vmem:[#allocation7 + $0xd4] sm:$0xf]
        %v1846 = vld [vmem:[#allocation7 + $0xd8] sm:$0xf]
        %v1847 = vld [vmem:[#allocation7 + $0xdc] sm:$0xf]
        %v1848 = vld [vmem:[#allocation7 + $0xe0] sm:$0xf]
        %v1849 = vld [vmem:[#allocation7 + $0xe4] sm:$0xf]
        %v1850 = vld [vmem:[#allocation7 + $0xe8] sm:$0xf]
        %v1851 = vld [vmem:[#allocation7 + $0xec] sm:$0xf]
        %v1852 = vld [vmem:[#allocation7 + $0xf0] sm:$0xf]
        %v1853 = vld [vmem:[#allocation7 + $0xf4] sm:$0xf]
        %v1854 = vld [vmem:[#allocation7 + $0xf8] sm:$0xf]
        %v1855 = vld [vmem:[#allocation7 + $0xfc] sm:$0xf]
        %v1856 = vunpack.c.l.bf16 %v1792
        %v1857 = vunpack.c.l.bf16 %v1793
        %v1858 = vunpack.c.l.bf16 %v1794
        %v1859 = vunpack.c.l.bf16 %v1795
        %v1860 = vunpack.c.l.bf16 %v1796
        %v1861 = vunpack.c.l.bf16 %v1797
        %v1862 = vunpack.c.l.bf16 %v1798
        %v1863 = vunpack.c.l.bf16 %v1799
        %v1864 = vunpack.c.l.bf16 %v1800
        %v1865 = vunpack.c.l.bf16 %v1801
        %v1866 = vunpack.c.l.bf16 %v1802
        %v1867 = vunpack.c.l.bf16 %v1803
        %v1868 = vunpack.c.l.bf16 %v1804
        %v1869 = vunpack.c.l.bf16 %v1805
        %v1870 = vunpack.c.l.bf16 %v1806
        %v1871 = vunpack.c.l.bf16 %v1807
        %v1872 = vunpack.c.l.bf16 %v1808
        %v1873 = vunpack.c.l.bf16 %v1809
        %v1874 = vunpack.c.l.bf16 %v1810
        %v1875 = vunpack.c.l.bf16 %v1811
        %v1876 = vunpack.c.l.bf16 %v1812
        %v1877 = vunpack.c.l.bf16 %v1813
        %v1878 = vunpack.c.l.bf16 %v1814
        %v1879 = vunpack.c.l.bf16 %v1815
        %v1880 = vunpack.c.l.bf16 %v1816
        %v1881 = vunpack.c.l.bf16 %v1817
        %v1882 = vunpack.c.l.bf16 %v1818
        %v1883 = vunpack.c.l.bf16 %v1819
        %v1884 = vunpack.c.l.bf16 %v1820
        %v1885 = vunpack.c.l.bf16 %v1821
        %v1886 = vunpack.c.l.bf16 %v1822
        %v1887 = vunpack.c.l.bf16 %v1823
        %v1888 = vunpack.c.l.bf16 %v1824
        %v1889 = vunpack.c.l.bf16 %v1825
        %v1890 = vunpack.c.l.bf16 %v1826
        %v1891 = vunpack.c.l.bf16 %v1827
        %v1892 = vunpack.c.l.bf16 %v1828
        %v1893 = vunpack.c.l.bf16 %v1829
        %v1894 = vunpack.c.l.bf16 %v1830
        %v1895 = vunpack.c.l.bf16 %v1831
        %v1896 = vunpack.c.l.bf16 %v1832
        %v1897 = vunpack.c.l.bf16 %v1833
        %v1898 = vunpack.c.l.bf16 %v1834
        %v1899 = vunpack.c.l.bf16 %v1835
        %v1900 = vunpack.c.l.bf16 %v1836
        %v1901 = vunpack.c.l.bf16 %v1837
        %v1902 = vunpack.c.l.bf16 %v1838
        %v1903 = vunpack.c.l.bf16 %v1839
        %v1904 = vunpack.c.l.bf16 %v1840
        %v1905 = vunpack.c.l.bf16 %v1841
        %v1906 = vunpack.c.l.bf16 %v1842
        %v1907 = vunpack.c.l.bf16 %v1843
        %v1908 = vunpack.c.l.bf16 %v1844
        %v1909 = vunpack.c.l.bf16 %v1845
        %v1910 = vunpack.c.l.bf16 %v1846
        %v1911 = vunpack.c.l.bf16 %v1847
        %v1912 = vunpack.c.l.bf16 %v1848
        %v1913 = vunpack.c.l.bf16 %v1849
        %v1914 = vunpack.c.l.bf16 %v1850
        %v1915 = vunpack.c.l.bf16 %v1851
        %v1916 = vunpack.c.l.bf16 %v1852
        %v1917 = vunpack.c.l.bf16 %v1853
        %v1918 = vunpack.c.l.bf16 %v1854
        %v1919 = vunpack.c.l.bf16 %v1855
        %v1920 = vld [vmem:[%s7] sm:$0x1]
        %v1922 = vlaneseq
        %v1923 = vshrl.u32 %v1922, 7
        %v1924 = vsub.s32 0, %v1923
        %v1925 = vrot.slane %v1920, %v1924
        %1927 = vmatprep.subr.mxu0 0.0
        %1928 = vmatpush1.msra.mxu0 %v1856
        %1929 = vmatprep.subr.mxu0 0.0
        %1930 = vmatpush1.msra.mxu0 %v1857
        %1931 = vmatprep.subr.mxu0 0.0
        %1932 = vmatpush1.msra.mxu0 %v1858
        %1933 = vmatprep.subr.mxu0 0.0
        %1934 = vmatpush1.msra.mxu0 %v1859
        %1935 = vmatprep.subr.mxu0 0.0
        %1936 = vmatpush1.msra.mxu0 %v1860
        %1937 = vmatprep.subr.mxu0 0.0
        %1938 = vmatpush1.msra.mxu0 %v1861
        %1939 = vmatprep.subr.mxu0 0.0
        %1940 = vmatpush1.msra.mxu0 %v1862
        %1941 = vmatprep.subr.mxu0 0.0
        %1942 = vmatpush1.msra.mxu0 %v1863
        %1943 = vmatprep.subr.mxu0 0.0
        %1944 = vmatpush1.msra.mxu0 %v1864
        %1945 = vmatprep.subr.mxu0 0.0
        %1946 = vmatpush1.msra.mxu0 %v1865
        %1947 = vmatprep.subr.mxu0 0.0
        %1948 = vmatpush1.msra.mxu0 %v1866
        %1949 = vmatprep.subr.mxu0 0.0
        %1950 = vmatpush1.msra.mxu0 %v1867
        %1951 = vmatprep.subr.mxu0 0.0
        %1952 = vmatpush1.msra.mxu0 %v1868
        %1953 = vmatprep.subr.mxu0 0.0
        %1954 = vmatpush1.msra.mxu0 %v1869
        %1955 = vmatprep.subr.mxu0 0.0
        %1956 = vmatpush1.msra.mxu0 %v1870
        %1957 = vmatprep.subr.mxu0 0.0
        %1958 = vmatpush1.msra.mxu0 %v1871
        %1959 = vmatprep.subr.mxu0 0.0
        %1960 = vmatpush1.msra.mxu0 %v1872
        %1961 = vmatprep.subr.mxu0 0.0
        %1962 = vmatpush1.msra.mxu0 %v1873
        %1963 = vmatprep.subr.mxu0 0.0
        %1964 = vmatpush1.msra.mxu0 %v1874
        %1965 = vmatprep.subr.mxu0 0.0
        %1966 = vmatpush1.msra.mxu0 %v1875
        %1967 = vmatprep.subr.mxu0 0.0
        %1968 = vmatpush1.msra.mxu0 %v1876
        %1969 = vmatprep.subr.mxu0 0.0
        %1970 = vmatpush1.msra.mxu0 %v1877
        %1971 = vmatprep.subr.mxu0 0.0
        %1972 = vmatpush1.msra.mxu0 %v1878
        %1973 = vmatprep.subr.mxu0 0.0
        %1974 = vmatpush1.msra.mxu0 %v1879
        %1975 = vmatprep.subr.mxu0 0.0
        %1976 = vmatpush1.msra.mxu0 %v1880
        %1977 = vmatprep.subr.mxu0 0.0
        %1978 = vmatpush1.msra.mxu0 %v1881
        %1979 = vmatprep.subr.mxu0 0.0
        %1980 = vmatpush1.msra.mxu0 %v1882
        %1981 = vmatprep.subr.mxu0 0.0
        %1982 = vmatpush1.msra.mxu0 %v1883
        %1983 = vmatprep.subr.mxu0 0.0
        %1984 = vmatpush1.msra.mxu0 %v1884
        %1985 = vmatprep.subr.mxu0 0.0
        %1986 = vmatpush1.msra.mxu0 %v1885
        %1987 = vmatprep.subr.mxu0 0.0
        %1988 = vmatpush1.msra.mxu0 %v1886
        %1989 = vmatprep.subr.mxu0 0.0
        %1990 = vmatpush1.msra.mxu0 %v1887
        %1991 = vmatprep.mubr.f32.mxu0 %v1789
        %1992 = vmatmul.mubr.f32.gmra.mrb[0].mxu0 %v1788
        %v1993 = vpop.f32.mrb[0].mxu0
        %v1994 = vadd.f32 %v1925, %v1993
        %v1995 = vpop.f32.mrb[0].mxu0
        %1996 = vdwg.mxu0
        %1997 = vmatprep.subr.mxu0 0.0
        %1998 = vmatpush1.msra.mxu0 %v1888
        %1999 = vmatprep.subr.mxu0 0.0
        %2000 = vmatpush1.msra.mxu0 %v1889
        %2001 = vmatprep.subr.mxu0 0.0
        %2002 = vmatpush1.msra.mxu0 %v1890
        %2003 = vmatprep.subr.mxu0 0.0
        %2004 = vmatpush1.msra.mxu0 %v1891
        %2005 = vmatprep.subr.mxu0 0.0
        %2006 = vmatpush1.msra.mxu0 %v1892
        %2007 = vmatprep.subr.mxu0 0.0
        %2008 = vmatpush1.msra.mxu0 %v1893
        %2009 = vmatprep.subr.mxu0 0.0
        %2010 = vmatpush1.msra.mxu0 %v1894
        %2011 = vmatprep.subr.mxu0 0.0
        %2012 = vmatpush1.msra.mxu0 %v1895
        %2013 = vmatprep.subr.mxu0 0.0
        %2014 = vmatpush1.msra.mxu0 %v1896
        %2015 = vmatprep.subr.mxu0 0.0
        %2016 = vmatpush1.msra.mxu0 %v1897
        %2017 = vmatprep.subr.mxu0 0.0
        %2018 = vmatpush1.msra.mxu0 %v1898
        %2019 = vmatprep.subr.mxu0 0.0
        %2020 = vmatpush1.msra.mxu0 %v1899
        %2021 = vmatprep.subr.mxu0 0.0
        %2022 = vmatpush1.msra.mxu0 %v1900
        %2023 = vmatprep.subr.mxu0 0.0
        %2024 = vmatpush1.msra.mxu0 %v1901
        %2025 = vmatprep.subr.mxu0 0.0
        %2026 = vmatpush1.msra.mxu0 %v1902
        %2027 = vmatprep.subr.mxu0 0.0
        %2028 = vmatpush1.msra.mxu0 %v1903
        %2029 = vmatprep.subr.mxu0 0.0
        %2030 = vmatpush1.msra.mxu0 %v1904
        %2031 = vmatprep.subr.mxu0 0.0
        %2032 = vmatpush1.msra.mxu0 %v1905
        %2033 = vmatprep.subr.mxu0 0.0
        %2034 = vmatpush1.msra.mxu0 %v1906
        %2035 = vmatprep.subr.mxu0 0.0
        %2036 = vmatpush1.msra.mxu0 %v1907
        %2037 = vmatprep.subr.mxu0 0.0
        %2038 = vmatpush1.msra.mxu0 %v1908
        %2039 = vmatprep.subr.mxu0 0.0
        %2040 = vmatpush1.msra.mxu0 %v1909
        %2041 = vmatprep.subr.mxu0 0.0
        %2042 = vmatpush1.msra.mxu0 %v1910
        %2043 = vmatprep.subr.mxu0 0.0
        %2044 = vmatpush1.msra.mxu0 %v1911
        %2045 = vmatprep.subr.mxu0 0.0
        %2046 = vmatpush1.msra.mxu0 %v1912
        %2047 = vmatprep.subr.mxu0 0.0
        %2048 = vmatpush1.msra.mxu0 %v1913
        %2049 = vmatprep.subr.mxu0 0.0
        %2050 = vmatpush1.msra.mxu0 %v1914
        %2051 = vmatprep.subr.mxu0 0.0
        %2052 = vmatpush1.msra.mxu0 %v1915
        %2053 = vmatprep.subr.mxu0 0.0
        %2054 = vmatpush1.msra.mxu0 %v1916
        %2055 = vmatprep.subr.mxu0 0.0
        %2056 = vmatpush1.msra.mxu0 %v1917
        %2057 = vmatprep.subr.mxu0 0.0
        %2058 = vmatpush1.msra.mxu0 %v1918
        %2059 = vmatprep.subr.mxu0 0.0
        %2060 = vmatpush1.msra.mxu0 %v1919
        %2061 = vmatprep.mubr.f32.mxu0 %v1791
        %2062 = vmatmul.mubr.f32.gmra.mrb[0].mxu0 %v1790
        %v2063 = vpop.f32.mrb[0].mxu0
        %v2064 = vadd.f32 %v1994, %v2063
        %v2065 = vpop.f32.mrb[0].mxu0
        %2066 = vdwg.mxu0
        %v2067 = vmul.f32 %v2064, 1.442695
        %v2068 = vpow.pop %v2067
        %v2069 = vld [vmem:[%s3] sm:$0x1]
        %v2071 = vlaneseq
        %v2072 = vshrl.u32 %v2071, 7
        %v2073 = vsub.s32 0, %v2072
        %v2074 = vrot.slane %v2069, %v2073
        %2075 = vrot.lane.b32.xlu0 %v2074, 16
        %v2076 = vpop.permute.xlu0 %2075
        %v2078 = vmul.f32 %v2064, %v2076
        %v2079 = vld [vmem:[%s490] sm:$0xff]
        %2081 = vrot.lane.b32.xlu0 %v2068, 120
        %v2082 = vpop.permute.xlu0 %2081
        %v2084 = vmul.f32 %v2079, %v2082
        %v2085 = vadd.f32 %v2064, %v2084
        %2087 = vset.pattern.permute.xlu0 0
        %2088 = vperm.xlu0 %2087, %v2079
        %v2089 = vpop.permute.xlu0 %2088
        %v2091 = vmul.f32 %v2089, %v2078
        %2093 = vrot.lane.b32.xlu0 %v2091, 112
        %v2094 = vpop.permute.xlu0 %2093
        %v2096 = vadd.f32 %v2085, %v2094
        %2097 = vset.pattern.permute.xlu0 1
        %2098 = vperm.xlu0 %2097, %v2079
        %v2099 = vpop.permute.xlu0 %2098
        %v2101 = vmul.f32 %v2099, %v2078
        %2103 = vrot.lane.b32.xlu0 %v2101, 104
        %v2104 = vpop.permute.xlu0 %2103
        %v2106 = vadd.f32 %v2096, %v2104
        %2107 = vset.pattern.permute.xlu0 2
        %2108 = vperm.xlu0 %2107, %v2079
        %v2109 = vpop.permute.xlu0 %2108
        %v2111 = vmul.f32 %v2109, %v2078
        %2113 = vrot.lane.b32.xlu0 %v2111, 96
        %v2114 = vpop.permute.xlu0 %2113
        %v2116 = vadd.f32 %v2106, %v2114
        %2117 = vset.pattern.permute.xlu0 3
        %2118 = vperm.xlu0 %2117, %v2079
        %v2119 = vpop.permute.xlu0 %2118
        %v2121 = vmul.f32 %v2119, %v2078
        %2123 = vrot.lane.b32.xlu0 %v2121, 88
        %v2124 = vpop.permute.xlu0 %2123
        %v2126 = vadd.f32 %v2116, %v2124
        %2127 = vset.pattern.permute.xlu0 4
        %2128 = vperm.xlu0 %2127, %v2079
        %v2129 = vpop.permute.xlu0 %2128
        %v2131 = vmul.f32 %v2129, %v2078
        %2133 = vrot.lane.b32.xlu0 %v2131, 80
        %v2134 = vpop.permute.xlu0 %2133
        %v2136 = vadd.f32 %v2126, %v2134
        %2137 = vset.pattern.permute.xlu0 5
        %2138 = vperm.xlu0 %2137, %v2079
        %v2139 = vpop.permute.xlu0 %2138
        %v2141 = vmul.f32 %v2139, %v2078
        %2143 = vrot.lane.b32.xlu0 %v2141, 72
        %v2144 = vpop.permute.xlu0 %2143
        %v2146 = vadd.f32 %v2136, %v2144
        %2147 = vset.pattern.permute.xlu0 6
        %2148 = vperm.xlu0 %2147, %v2079
        %v2149 = vpop.permute.xlu0 %2148
        %v2151 = vmul.f32 %v2149, %v2078
        %2153 = vrot.lane.b32.xlu0 %v2151, 64
        %v2154 = vpop.permute.xlu0 %2153
        %v2156 = vadd.f32 %v2146, %v2154
        %v2157 = vld [vmem:[%s8] sm:$0xff]
        %v2158 = vld [vmem:[%s8 + $0x8] sm:$0xff]
        %v2159 = vld [vmem:[%s8 + $0x10] sm:$0xff]
        %v2160 = vld [vmem:[%s8 + $0x18] sm:$0xff]
        %v2161 = vld [vmem:[%s9] sm:$0xf]
        %v2163 = vlaneseq
        %v2164 = vshrl.u32 %v2163, 7
        %v2165 = vsub.s32 0, %v2164
        %v2166 = vrot.slane %v2161, %v2165
        %v2167 = vlaneseq
        %v2168 = vshrl.u32 %v2167, 7
        %v2169 = vsub.s32 1, %v2168
        %v2170 = vrot.slane %v2161, %v2169
        %v2171 = vlaneseq
        %v2172 = vshrl.u32 %v2171, 7
        %v2173 = vsub.s32 2, %v2172
        %v2174 = vrot.slane %v2161, %v2173
        %v2175 = vlaneseq
        %v2176 = vshrl.u32 %v2175, 7
        %v2177 = vsub.s32 3, %v2176
        %v2178 = vrot.slane %v2161, %v2177
        %vm2183 = vcmask 64512
        %v2185 = vsel %vm2183, %v2156, 0
        %2187 = vmatprep.subr.mxu0 %v2158
        %2188 = vmatpush1.msra.mxu0 %v2157
        %2189 = vmatprep.subr.mxu0 0.0
        %2190 = vmatpush1.msra.mxu0 0.0
        %2191 = vmatprep.subr.mxu0 0.0
        %2192 = vmatpush1.msra.mxu0 0.0
        %2193 = vmatprep.subr.mxu0 0.0
        %2194 = vmatpush1.msra.mxu0 0.0
        %2195 = vmatprep.subr.mxu0 0.0
        %2196 = vmatpush1.msra.mxu0 0.0
        %2197 = vmatprep.subr.mxu0 0.0
        %2198 = vmatpush1.msra.mxu0 0.0
        %2199 = vmatprep.subr.mxu0 0.0
        %2200 = vmatpush1.msra.mxu0 0.0
        %2201 = vmatprep.subr.mxu0 0.0
        %2202 = vmatpush1.msra.mxu0 0.0
        %2203 = vmatprep.subr.mxu0 0.0
        %2204 = vmatpush1.msra.mxu0 0.0
        %2205 = vmatprep.subr.mxu0 0.0
        %2206 = vmatpush1.msra.mxu0 0.0
        %2207 = vmatprep.subr.mxu0 0.0
        %2208 = vmatpush1.msra.mxu0 0.0
        %2209 = vmatprep.subr.mxu0 0.0
        %2210 = vmatpush1.msra.mxu0 0.0
        %2211 = vmatprep.subr.mxu0 0.0
        %2212 = vmatpush1.msra.mxu0 0.0
        %2213 = vmatprep.subr.mxu0 0.0
        %2214 = vmatpush1.msra.mxu0 0.0
        %2215 = vmatprep.subr.mxu0 0.0
        %2216 = vmatpush1.msra.mxu0 0.0
        %2217 = vmatprep.subr.mxu0 0.0
        %2218 = vmatpush1.msra.mxu0 0.0
        %2219 = vmatprep.subr.mxu0 0.0
        %2220 = vmatpush1.msra.mxu0 0.0
        %2221 = vmatprep.subr.mxu0 0.0
        %2222 = vmatpush1.msra.mxu0 0.0
        %2223 = vmatprep.subr.mxu0 0.0
        %2224 = vmatpush1.msra.mxu0 0.0
        %2225 = vmatprep.subr.mxu0 0.0
        %2226 = vmatpush1.msra.mxu0 0.0
        %2227 = vmatprep.subr.mxu0 0.0
        %2228 = vmatpush1.msra.mxu0 0.0
        %2229 = vmatprep.subr.mxu0 0.0
        %2230 = vmatpush1.msra.mxu0 0.0
        %2231 = vmatprep.subr.mxu0 0.0
        %2232 = vmatpush1.msra.mxu0 0.0
        %2233 = vmatprep.subr.mxu0 0.0
        %2234 = vmatpush1.msra.mxu0 0.0
        %2235 = vmatprep.subr.mxu0 0.0
        %2236 = vmatpush1.msra.mxu0 0.0
        %2237 = vmatprep.subr.mxu0 0.0
        %2238 = vmatpush1.msra.mxu0 0.0
        %2239 = vmatprep.subr.mxu0 0.0
        %2240 = vmatpush1.msra.mxu0 0.0
        %2241 = vmatprep.subr.mxu0 0.0
        %2242 = vmatpush1.msra.mxu0 0.0
        %2243 = vmatprep.subr.mxu0 0.0
        %2244 = vmatpush1.msra.mxu0 0.0
        %2245 = vmatprep.subr.mxu0 0.0
        %2246 = vmatpush1.msra.mxu0 0.0
        %2247 = vmatprep.subr.mxu0 0.0
        %2248 = vmatpush1.msra.mxu0 0.0
        %2249 = vmatprep.subr.mxu0 0.0
        %2250 = vmatpush1.msra.mxu0 0.0
        %2251 = vmatprep.mubr.f32.mxu0 0.0
        %2252 = vmatmul.mubr.f32.gmra.mrb[0].mxu0 %v2185
        %v2253 = vpop.f32.mrb[0].mxu0
        %v2254 = vadd.f32 %v2166, %v2253
        %v2255 = vpop.f32.mrb[0].mxu0
        %v2256 = vadd.f32 %v2170, %v2255
        %2257 = vdwg.mxu0
        %2258 = vmatprep.subr.mxu0 %v2160
        %2259 = vmatpush1.msra.mxu0 %v2159
        %2260 = vmatprep.subr.mxu0 0.0
        %2261 = vmatpush1.msra.mxu0 0.0
        %2262 = vmatprep.subr.mxu0 0.0
        %2263 = vmatpush1.msra.mxu0 0.0
        %2264 = vmatprep.subr.mxu0 0.0
        %2265 = vmatpush1.msra.mxu0 0.0
        %2266 = vmatprep.subr.mxu0 0.0
        %2267 = vmatpush1.msra.mxu0 0.0
        %2268 = vmatprep.subr.mxu0 0.0
        %2269 = vmatpush1.msra.mxu0 0.0
        %2270 = vmatprep.subr.mxu0 0.0
        %2271 = vmatpush1.msra.mxu0 0.0
        %2272 = vmatprep.subr.mxu0 0.0
        %2273 = vmatpush1.msra.mxu0 0.0
        %2274 = vmatprep.subr.mxu0 0.0
        %2275 = vmatpush1.msra.mxu0 0.0
        %2276 = vmatprep.subr.mxu0 0.0
        %2277 = vmatpush1.msra.mxu0 0.0
        %2278 = vmatprep.subr.mxu0 0.0
        %2279 = vmatpush1.msra.mxu0 0.0
        %2280 = vmatprep.subr.mxu0 0.0
        %2281 = vmatpush1.msra.mxu0 0.0
        %2282 = vmatprep.subr.mxu0 0.0
        %2283 = vmatpush1.msra.mxu0 0.0
        %2284 = vmatprep.subr.mxu0 0.0
        %2285 = vmatpush1.msra.mxu0 0.0
        %2286 = vmatprep.subr.mxu0 0.0
        %2287 = vmatpush1.msra.mxu0 0.0
        %2288 = vmatprep.subr.mxu0 0.0
        %2289 = vmatpush1.msra.mxu0 0.0
        %2290 = vmatprep.subr.mxu0 0.0
        %2291 = vmatpush1.msra.mxu0 0.0
        %2292 = vmatprep.subr.mxu0 0.0
        %2293 = vmatpush1.msra.mxu0 0.0
        %2294 = vmatprep.subr.mxu0 0.0
        %2295 = vmatpush1.msra.mxu0 0.0
        %2296 = vmatprep.subr.mxu0 0.0
        %2297 = vmatpush1.msra.mxu0 0.0
        %2298 = vmatprep.subr.mxu0 0.0
        %2299 = vmatpush1.msra.mxu0 0.0
        %2300 = vmatprep.subr.mxu0 0.0
        %2301 = vmatpush1.msra.mxu0 0.0
        %2302 = vmatprep.subr.mxu0 0.0
        %2303 = vmatpush1.msra.mxu0 0.0
        %2304 = vmatprep.subr.mxu0 0.0
        %2305 = vmatpush1.msra.mxu0 0.0
        %2306 = vmatprep.subr.mxu0 0.0
        %2307 = vmatpush1.msra.mxu0 0.0
        %2308 = vmatprep.subr.mxu0 0.0
        %2309 = vmatpush1.msra.mxu0 0.0
        %2310 = vmatprep.subr.mxu0 0.0
        %2311 = vmatpush1.msra.mxu0 0.0
        %2312 = vmatprep.subr.mxu0 0.0
        %2313 = vmatpush1.msra.mxu0 0.0
        %2314 = vmatprep.subr.mxu0 0.0
        %2315 = vmatpush1.msra.mxu0 0.0
        %2316 = vmatprep.subr.mxu0 0.0
        %2317 = vmatpush1.msra.mxu0 0.0
        %2318 = vmatprep.subr.mxu0 0.0
        %2319 = vmatpush1.msra.mxu0 0.0
        %2320 = vmatprep.subr.mxu0 0.0
        %2321 = vmatpush1.msra.mxu0 0.0
        %2322 = vmatprep.mubr.f32.mxu0 0.0
        %2323 = vmatmul.mubr.f32.gmra.mrb[0].mxu0 %v2185
        %v2324 = vpop.f32.mrb[0].mxu0
        %v2325 = vadd.f32 %v2174, %v2324
        %v2326 = vpop.f32.mrb[0].mxu0
        %v2327 = vadd.f32 %v2178, %v2326
        %2328 = vdwg.mxu0
        %v2329 = vmax.f32 %v2254, 0.0
        %v2330 = vmax.f32 %v2256, 0.0
        %v2331 = vmax.f32 %v2325, 0.0
        %v2332 = vmax.f32 %v2327, 0.0
        %v2333 = vld [vmem:[#allocation8] sm:$0xff]
        %v2334 = vld [vmem:[#allocation8 + $0x8] sm:$0xff]
        %v2335 = vld [vmem:[#allocation8 + $0x10] sm:$0xff]
        %v2336 = vld [vmem:[#allocation8 + $0x18] sm:$0xf]
        %v2337 = vld [vmem:[#allocation8 + $0x1c] sm:$0xff]
        %v2338 = vld [vmem:[#allocation8 + $0x24] sm:$0xff]
        %v2339 = vld [vmem:[#allocation8 + $0x2c] sm:$0xff]
        %v2340 = vld [vmem:[#allocation8 + $0x34] sm:$0xf]
        %v2341 = vld [vmem:[#allocation8 + $0x38] sm:$0xff]
        %v2342 = vld [vmem:[#allocation8 + $0x40] sm:$0xff]
        %v2343 = vld [vmem:[#allocation8 + $0x48] sm:$0xff]
        %v2344 = vld [vmem:[#allocation8 + $0x50] sm:$0xf]
        %v2345 = vld [vmem:[#allocation8 + $0x54] sm:$0xff]
        %v2346 = vld [vmem:[#allocation8 + $0x5c] sm:$0xff]
        %v2347 = vld [vmem:[#allocation8 + $0x64] sm:$0xff]
        %v2348 = vld [vmem:[#allocation8 + $0x6c] sm:$0xf]
        %v2349 = vld [vmem:[#allocation8 + $0x70] sm:$0xff]
        %v2350 = vld [vmem:[#allocation8 + $0x78] sm:$0xff]
        %v2351 = vld [vmem:[#allocation8 + $0x80] sm:$0xff]
        %v2352 = vld [vmem:[#allocation8 + $0x88] sm:$0xf]
        %v2353 = vld [vmem:[#allocation8 + $0x8c] sm:$0xff]
        %v2354 = vld [vmem:[#allocation8 + $0x94] sm:$0xff]
        %v2355 = vld [vmem:[#allocation8 + $0x9c] sm:$0xff]
        %v2356 = vld [vmem:[#allocation8 + $0xa4] sm:$0xf]
        %v2357 = vld [vmem:[#allocation8 + $0xa8] sm:$0xff]
        %v2358 = vld [vmem:[#allocation8 + $0xb0] sm:$0xff]
        %v2359 = vld [vmem:[#allocation8 + $0xb8] sm:$0xff]
        %v2360 = vld [vmem:[#allocation8 + $0xc0] sm:$0xf]
        %v2361 = vld [vmem:[#allocation8 + $0xc4] sm:$0xff]
        %v2362 = vld [vmem:[#allocation8 + $0xcc] sm:$0xff]
        %v2363 = vld [vmem:[#allocation8 + $0xd4] sm:$0xff]
        %v2364 = vld [vmem:[#allocation8 + $0xdc] sm:$0xf]
        %v2365 = vld [vmem:[#allocation8 + $0xe0] sm:$0xff]
        %v2366 = vld [vmem:[#allocation8 + $0xe8] sm:$0xff]
        %v2367 = vld [vmem:[#allocation8 + $0xf0] sm:$0xff]
        %v2368 = vld [vmem:[#allocation8 + $0xf8] sm:$0xf]
        %v2369 = vld [vmem:[#allocation8 + $0xfc] sm:$0xff]
        %v2370 = vld [vmem:[#allocation8 + $0x104] sm:$0xff]
        %v2371 = vld [vmem:[#allocation8 + $0x10c] sm:$0xff]
        %v2372 = vld [vmem:[#allocation8 + $0x114] sm:$0xf]
        %v2373 = vld [vmem:[#allocation8 + $0x118] sm:$0xff]
        %v2374 = vld [vmem:[#allocation8 + $0x120] sm:$0xff]
        %v2375 = vld [vmem:[#allocation8 + $0x128] sm:$0xff]
        %v2376 = vld [vmem:[#allocation8 + $0x130] sm:$0xf]
        %v2377 = vld [vmem:[#allocation8 + $0x134] sm:$0xff]
        %v2378 = vld [vmem:[#allocation8 + $0x13c] sm:$0xff]
        %v2379 = vld [vmem:[#allocation8 + $0x144] sm:$0xff]
        %v2380 = vld [vmem:[#allocation8 + $0x14c] sm:$0xf]
        %v2381 = vld [vmem:[#allocation8 + $0x150] sm:$0xff]
        %v2382 = vld [vmem:[#allocation8 + $0x158] sm:$0xff]
        %v2383 = vld [vmem:[#allocation8 + $0x160] sm:$0xff]
        %v2384 = vld [vmem:[#allocation8 + $0x168] sm:$0xf]
        %v2385 = vld [vmem:[#allocation8 + $0x16c] sm:$0xff]
        %v2386 = vld [vmem:[#allocation8 + $0x174] sm:$0xff]
        %v2387 = vld [vmem:[#allocation8 + $0x17c] sm:$0xff]
        %v2388 = vld [vmem:[#allocation8 + $0x184] sm:$0xf]
        %v2389 = vld [vmem:[#allocation8 + $0x188] sm:$0xff]
        %v2390 = vld [vmem:[#allocation8 + $0x190] sm:$0xff]
        %v2391 = vld [vmem:[#allocation8 + $0x198] sm:$0xff]
        %v2392 = vld [vmem:[#allocation8 + $0x1a0] sm:$0xf]
        %v2393 = vld [vmem:[#allocation8 + $0x1a4] sm:$0xff]
        %v2394 = vld [vmem:[#allocation8 + $0x1ac] sm:$0xff]
        %v2395 = vld [vmem:[#allocation8 + $0x1b4] sm:$0xff]
        %v2396 = vld [vmem:[#allocation8 + $0x1bc] sm:$0xf]
        %v2397 = vld [vmem:[#allocation8 + $0x1c0] sm:$0xff]
        %v2398 = vld [vmem:[#allocation8 + $0x1c8] sm:$0xff]
        %v2399 = vld [vmem:[#allocation8 + $0x1d0] sm:$0xff]
        %v2400 = vld [vmem:[#allocation8 + $0x1d8] sm:$0xf]
        %v2401 = vld [vmem:[#allocation8 + $0x1dc] sm:$0xff]
        %v2402 = vld [vmem:[#allocation8 + $0x1e4] sm:$0xff]
        %v2403 = vld [vmem:[#allocation8 + $0x1ec] sm:$0xff]
        %v2404 = vld [vmem:[#allocation8 + $0x1f4] sm:$0xf]
        %v2405 = vld [vmem:[#allocation8 + $0x1f8] sm:$0xff]
        %v2406 = vld [vmem:[#allocation8 + $0x200] sm:$0xff]
        %v2407 = vld [vmem:[#allocation8 + $0x208] sm:$0xff]
        %v2408 = vld [vmem:[#allocation8 + $0x210] sm:$0xf]
        %v2409 = vld [vmem:[#allocation8 + $0x214] sm:$0xff]
        %v2410 = vld [vmem:[#allocation8 + $0x21c] sm:$0xff]
        %v2411 = vld [vmem:[#allocation8 + $0x224] sm:$0xff]
        %v2412 = vld [vmem:[#allocation8 + $0x22c] sm:$0xf]
        %v2413 = vld [vmem:[#allocation8 + $0x230] sm:$0xff]
        %v2414 = vld [vmem:[#allocation8 + $0x238] sm:$0xff]
        %v2415 = vld [vmem:[#allocation8 + $0x240] sm:$0xff]
        %v2416 = vld [vmem:[#allocation8 + $0x248] sm:$0xf]
        %v2417 = vld [vmem:[#allocation8 + $0x24c] sm:$0xff]
        %v2418 = vld [vmem:[#allocation8 + $0x254] sm:$0xff]
        %v2419 = vld [vmem:[#allocation8 + $0x25c] sm:$0xff]
        %v2420 = vld [vmem:[#allocation8 + $0x264] sm:$0xf]
        %v2421 = vld [vmem:[#allocation8 + $0x268] sm:$0xff]
        %v2422 = vld [vmem:[#allocation8 + $0x270] sm:$0xff]
        %v2423 = vld [vmem:[#allocation8 + $0x278] sm:$0xff]
        %v2424 = vld [vmem:[#allocation8 + $0x280] sm:$0xf]
        %v2425 = vld [vmem:[#allocation8 + $0x284] sm:$0xff]
        %v2426 = vld [vmem:[#allocation8 + $0x28c] sm:$0xff]
        %v2427 = vld [vmem:[#allocation8 + $0x294] sm:$0xff]
        %v2428 = vld [vmem:[#allocation8 + $0x29c] sm:$0xf]
        %v2429 = vld [vmem:[#allocation8 + $0x2a0] sm:$0xff]
        %v2430 = vld [vmem:[#allocation8 + $0x2a8] sm:$0xff]
        %v2431 = vld [vmem:[#allocation8 + $0x2b0] sm:$0xff]
        %v2432 = vld [vmem:[#allocation8 + $0x2b8] sm:$0xf]
        %v2433 = vld [vmem:[#allocation8 + $0x2bc] sm:$0xff]
        %v2434 = vld [vmem:[#allocation8 + $0x2c4] sm:$0xff]
        %v2435 = vld [vmem:[#allocation8 + $0x2cc] sm:$0xff]
        %v2436 = vld [vmem:[#allocation8 + $0x2d4] sm:$0xf]
        %v2437 = vld [vmem:[#allocation8 + $0x2d8] sm:$0xff]
        %v2438 = vld [vmem:[#allocation8 + $0x2e0] sm:$0xff]
        %v2439 = vld [vmem:[#allocation8 + $0x2e8] sm:$0xff]
        %v2440 = vld [vmem:[#allocation8 + $0x2f0] sm:$0xf]
        %v2441 = vld [vmem:[#allocation8 + $0x2f4] sm:$0xff]
        %v2442 = vld [vmem:[#allocation8 + $0x2fc] sm:$0xff]
        %v2443 = vld [vmem:[#allocation8 + $0x304] sm:$0xff]
        %v2444 = vld [vmem:[#allocation8 + $0x30c] sm:$0xf]
        %v2445 = vld [vmem:[#allocation8 + $0x310] sm:$0xff]
        %v2446 = vld [vmem:[#allocation8 + $0x318] sm:$0xff]
        %v2447 = vld [vmem:[#allocation8 + $0x320] sm:$0xff]
        %v2448 = vld [vmem:[#allocation8 + $0x328] sm:$0xf]
        %v2449 = vld [vmem:[#allocation8 + $0x32c] sm:$0xff]
        %v2450 = vld [vmem:[#allocation8 + $0x334] sm:$0xff]
        %v2451 = vld [vmem:[#allocation8 + $0x33c] sm:$0xff]
        %v2452 = vld [vmem:[#allocation8 + $0x344] sm:$0xf]
        %v2453 = vld [vmem:[#allocation8 + $0x348] sm:$0xff]
        %v2454 = vld [vmem:[#allocation8 + $0x350] sm:$0xff]
        %v2455 = vld [vmem:[#allocation8 + $0x358] sm:$0xff]
        %v2456 = vld [vmem:[#allocation8 + $0x360] sm:$0xf]
        %v2457 = vld [vmem:[#allocation8 + $0x364] sm:$0xff]
        %v2458 = vld [vmem:[#allocation8 + $0x36c] sm:$0xff]
        %v2459 = vld [vmem:[#allocation8 + $0x374] sm:$0xff]
        %v2460 = vld [vmem:[#allocation8 + $0x37c] sm:$0xf]
        %v2461 = vld [vmem:[#allocation8 + $0x380] sm:$0xff]
        %v2462 = vld [vmem:[#allocation8 + $0x388] sm:$0xff]
        %v2463 = vld [vmem:[#allocation8 + $0x390] sm:$0xff]
        %v2464 = vld [vmem:[#allocation8 + $0x398] sm:$0xf]
        %v2465 = vld [vmem:[#allocation8 + $0x39c] sm:$0xff]
        %v2466 = vld [vmem:[#allocation8 + $0x3a4] sm:$0xff]
        %v2467 = vld [vmem:[#allocation8 + $0x3ac] sm:$0xff]
        %v2468 = vld [vmem:[#allocation8 + $0x3b4] sm:$0xf]
        %v2469 = vld [vmem:[#allocation8 + $0x3b8] sm:$0xff]
        %v2470 = vld [vmem:[#allocation8 + $0x3c0] sm:$0xff]
        %v2471 = vld [vmem:[#allocation8 + $0x3c8] sm:$0xff]
        %v2472 = vld [vmem:[#allocation8 + $0x3d0] sm:$0xf]
        %v2473 = vld [vmem:[#allocation8 + $0x3d4] sm:$0xff]
        %v2474 = vld [vmem:[#allocation8 + $0x3dc] sm:$0xff]
        %v2475 = vld [vmem:[#allocation8 + $0x3e4] sm:$0xff]
        %v2476 = vld [vmem:[#allocation8 + $0x3ec] sm:$0xf]
        %v2477 = vld [vmem:[#allocation8 + $0x3f0] sm:$0xff]
        %v2478 = vld [vmem:[#allocation8 + $0x3f8] sm:$0xff]
        %v2479 = vld [vmem:[#allocation8 + $0x400] sm:$0xff]
        %v2480 = vld [vmem:[#allocation8 + $0x408] sm:$0xf]
        %v2481 = vld [vmem:[#allocation8 + $0x40c] sm:$0xff]
        %v2482 = vld [vmem:[#allocation8 + $0x414] sm:$0xff]
        %v2483 = vld [vmem:[#allocation8 + $0x41c] sm:$0xff]
        %v2484 = vld [vmem:[#allocation8 + $0x424] sm:$0xf]
        %v2485 = vld [vmem:[#allocation8 + $0x428] sm:$0xff]
        %v2486 = vld [vmem:[#allocation8 + $0x430] sm:$0xff]
        %v2487 = vld [vmem:[#allocation8 + $0x438] sm:$0xff]
        %v2488 = vld [vmem:[#allocation8 + $0x440] sm:$0xf]
        %v2489 = vld [vmem:[#allocation8 + $0x444] sm:$0xff]
        %v2490 = vld [vmem:[#allocation8 + $0x44c] sm:$0xff]
        %v2491 = vld [vmem:[#allocation8 + $0x454] sm:$0xff]
        %v2492 = vld [vmem:[#allocation8 + $0x45c] sm:$0xf]
        %v2493 = vld [vmem:[#allocation8 + $0x460] sm:$0xff]
        %v2494 = vld [vmem:[#allocation8 + $0x468] sm:$0xff]
        %v2495 = vld [vmem:[#allocation8 + $0x470] sm:$0xff]
        %v2496 = vld [vmem:[#allocation8 + $0x478] sm:$0xf]
        %v2497 = vld [vmem:[#allocation8 + $0x47c] sm:$0xff]
        %v2498 = vld [vmem:[#allocation8 + $0x484] sm:$0xff]
        %v2499 = vld [vmem:[#allocation8 + $0x48c] sm:$0xff]
        %v2500 = vld [vmem:[#allocation8 + $0x494] sm:$0xf]
        %v2501 = vld [vmem:[#allocation8 + $0x498] sm:$0xff]
        %v2502 = vld [vmem:[#allocation8 + $0x4a0] sm:$0xff]
        %v2503 = vld [vmem:[#allocation8 + $0x4a8] sm:$0xff]
        %v2504 = vld [vmem:[#allocation8 + $0x4b0] sm:$0xf]
        %v2505 = vld [vmem:[#allocation8 + $0x4b4] sm:$0xff]
        %v2506 = vld [vmem:[#allocation8 + $0x4bc] sm:$0xff]
        %v2507 = vld [vmem:[#allocation8 + $0x4c4] sm:$0xff]
        %v2508 = vld [vmem:[#allocation8 + $0x4cc] sm:$0xf]
        %v2509 = vld [vmem:[#allocation8 + $0x4d0] sm:$0xff]
        %v2510 = vld [vmem:[#allocation8 + $0x4d8] sm:$0xff]
        %v2511 = vld [vmem:[#allocation8 + $0x4e0] sm:$0xff]
        %v2512 = vld [vmem:[#allocation8 + $0x4e8] sm:$0xf]
        %v2513 = vld [vmem:[#allocation8 + $0x4ec] sm:$0xff]
        %v2514 = vld [vmem:[#allocation8 + $0x4f4] sm:$0xff]
        %v2515 = vld [vmem:[#allocation8 + $0x4fc] sm:$0xff]
        %v2516 = vld [vmem:[#allocation8 + $0x504] sm:$0xf]
        %v2517 = vld [vmem:[#allocation8 + $0x508] sm:$0xff]
        %v2518 = vld [vmem:[#allocation8 + $0x510] sm:$0xff]
        %v2519 = vld [vmem:[#allocation8 + $0x518] sm:$0xff]
        %v2520 = vld [vmem:[#allocation8 + $0x520] sm:$0xf]
        %v2521 = vld [vmem:[#allocation8 + $0x524] sm:$0xff]
        %v2522 = vld [vmem:[#allocation8 + $0x52c] sm:$0xff]
        %v2523 = vld [vmem:[#allocation8 + $0x534] sm:$0xff]
        %v2524 = vld [vmem:[#allocation8 + $0x53c] sm:$0xf]
        %v2525 = vld [vmem:[#allocation8 + $0x540] sm:$0xff]
        %v2526 = vld [vmem:[#allocation8 + $0x548] sm:$0xff]
        %v2527 = vld [vmem:[#allocation8 + $0x550] sm:$0xff]
        %v2528 = vld [vmem:[#allocation8 + $0x558] sm:$0xf]
        %v2529 = vld [vmem:[#allocation8 + $0x55c] sm:$0xff]
        %v2530 = vld [vmem:[#allocation8 + $0x564] sm:$0xff]
        %v2531 = vld [vmem:[#allocation8 + $0x56c] sm:$0xff]
        %v2532 = vld [vmem:[#allocation8 + $0x574] sm:$0xf]
        %v2533 = vld [vmem:[#allocation8 + $0x578] sm:$0xff]
        %v2534 = vld [vmem:[#allocation8 + $0x580] sm:$0xff]
        %v2535 = vld [vmem:[#allocation8 + $0x588] sm:$0xff]
        %v2536 = vld [vmem:[#allocation8 + $0x590] sm:$0xf]
        %v2537 = vld [vmem:[#allocation8 + $0x594] sm:$0xff]
        %v2538 = vld [vmem:[#allocation8 + $0x59c] sm:$0xff]
        %v2539 = vld [vmem:[#allocation8 + $0x5a4] sm:$0xff]
        %v2540 = vld [vmem:[#allocation8 + $0x5ac] sm:$0xf]
        %v2541 = vld [vmem:[#allocation8 + $0x5b0] sm:$0xff]
        %v2542 = vld [vmem:[#allocation8 + $0x5b8] sm:$0xff]
        %v2543 = vld [vmem:[#allocation8 + $0x5c0] sm:$0xff]
        %v2544 = vld [vmem:[#allocation8 + $0x5c8] sm:$0xf]
        %v2545 = vld [vmem:[#allocation8 + $0x5cc] sm:$0xff]
        %v2546 = vld [vmem:[#allocation8 + $0x5d4] sm:$0xff]
        %v2547 = vld [vmem:[#allocation8 + $0x5dc] sm:$0xff]
        %v2548 = vld [vmem:[#allocation8 + $0x5e4] sm:$0xf]
        %v2549 = vld [vmem:[#allocation8 + $0x5e8] sm:$0xff]
        %v2550 = vld [vmem:[#allocation8 + $0x5f0] sm:$0xff]
        %v2551 = vld [vmem:[#allocation8 + $0x5f8] sm:$0xff]
        %v2552 = vld [vmem:[#allocation8 + $0x600] sm:$0xf]
        %v2553 = vld [vmem:[#allocation8 + $0x604] sm:$0xff]
        %v2554 = vld [vmem:[#allocation8 + $0x60c] sm:$0xff]
        %v2555 = vld [vmem:[#allocation8 + $0x614] sm:$0xff]
        %v2556 = vld [vmem:[#allocation8 + $0x61c] sm:$0xf]
        %v2557 = vld [vmem:[#allocation8 + $0x620] sm:$0xff]
        %v2558 = vld [vmem:[#allocation8 + $0x628] sm:$0xff]
        %v2559 = vld [vmem:[#allocation8 + $0x630] sm:$0xff]
        %v2560 = vld [vmem:[#allocation8 + $0x638] sm:$0xf]
        %v2561 = vld [vmem:[#allocation8 + $0x63c] sm:$0xff]
        %v2562 = vld [vmem:[#allocation8 + $0x644] sm:$0xff]
        %v2563 = vld [vmem:[#allocation8 + $0x64c] sm:$0xff]
        %v2564 = vld [vmem:[#allocation8 + $0x654] sm:$0xf]
        %v2565 = vld [vmem:[#allocation8 + $0x658] sm:$0xff]
        %v2566 = vld [vmem:[#allocation8 + $0x660] sm:$0xff]
        %v2567 = vld [vmem:[#allocation8 + $0x668] sm:$0xff]
        %v2568 = vld [vmem:[#allocation8 + $0x670] sm:$0xf]
        %v2569 = vld [vmem:[#allocation8 + $0x674] sm:$0xff]
        %v2570 = vld [vmem:[#allocation8 + $0x67c] sm:$0xff]
        %v2571 = vld [vmem:[#allocation8 + $0x684] sm:$0xff]
        %v2572 = vld [vmem:[#allocation8 + $0x68c] sm:$0xf]
        %v2573 = vld [vmem:[#allocation8 + $0x690] sm:$0xff]
        %v2574 = vld [vmem:[#allocation8 + $0x698] sm:$0xff]
        %v2575 = vld [vmem:[#allocation8 + $0x6a0] sm:$0xff]
        %v2576 = vld [vmem:[#allocation8 + $0x6a8] sm:$0xf]
        %v2577 = vld [vmem:[#allocation8 + $0x6ac] sm:$0xff]
        %v2578 = vld [vmem:[#allocation8 + $0x6b4] sm:$0xff]
        %v2579 = vld [vmem:[#allocation8 + $0x6bc] sm:$0xff]
        %v2580 = vld [vmem:[#allocation8 + $0x6c4] sm:$0xf]
        %v2581 = vld [vmem:[#allocation8 + $0x6c8] sm:$0xff]
        %v2582 = vld [vmem:[#allocation8 + $0x6d0] sm:$0xff]
        %v2583 = vld [vmem:[#allocation8 + $0x6d8] sm:$0xff]
        %v2584 = vld [vmem:[#allocation8 + $0x6e0] sm:$0xf]
        %v2585 = vld [vmem:[#allocation8 + $0x6e4] sm:$0xff]
        %v2586 = vld [vmem:[#allocation8 + $0x6ec] sm:$0xff]
        %v2587 = vld [vmem:[#allocation8 + $0x6f4] sm:$0xff]
        %v2588 = vld [vmem:[#allocation8 + $0x6fc] sm:$0xf]
        %v2589 = vunpack.c.l.bf16 %v2333
        %v2590 = vunpack.c.h.bf16 %v2333
        %v2591 = vunpack.c.l.bf16 %v2334
        %v2592 = vunpack.c.h.bf16 %v2334
        %v2593 = vunpack.c.l.bf16 %v2335
        %v2594 = vunpack.c.h.bf16 %v2335
        %v2595 = vunpack.c.l.bf16 %v2336
        %v2596 = vunpack.c.l.bf16 %v2337
        %v2597 = vunpack.c.h.bf16 %v2337
        %v2598 = vunpack.c.l.bf16 %v2338
        %v2599 = vunpack.c.h.bf16 %v2338
        %v2600 = vunpack.c.l.bf16 %v2339
        %v2601 = vunpack.c.h.bf16 %v2339
        %v2602 = vunpack.c.l.bf16 %v2340
        %v2603 = vunpack.c.l.bf16 %v2341
        %v2604 = vunpack.c.h.bf16 %v2341
        %v2605 = vunpack.c.l.bf16 %v2342
        %v2606 = vunpack.c.h.bf16 %v2342
        %v2607 = vunpack.c.l.bf16 %v2343
        %v2608 = vunpack.c.h.bf16 %v2343
        %v2609 = vunpack.c.l.bf16 %v2344
        %v2610 = vunpack.c.l.bf16 %v2345
        %v2611 = vunpack.c.h.bf16 %v2345
        %v2612 = vunpack.c.l.bf16 %v2346
        %v2613 = vunpack.c.h.bf16 %v2346
        %v2614 = vunpack.c.l.bf16 %v2347
        %v2615 = vunpack.c.h.bf16 %v2347
        %v2616 = vunpack.c.l.bf16 %v2348
        %v2617 = vunpack.c.l.bf16 %v2349
        %v2618 = vunpack.c.h.bf16 %v2349
        %v2619 = vunpack.c.l.bf16 %v2350
        %v2620 = vunpack.c.h.bf16 %v2350
        %v2621 = vunpack.c.l.bf16 %v2351
        %v2622 = vunpack.c.h.bf16 %v2351
        %v2623 = vunpack.c.l.bf16 %v2352
        %v2624 = vunpack.c.l.bf16 %v2353
        %v2625 = vunpack.c.h.bf16 %v2353
        %v2626 = vunpack.c.l.bf16 %v2354
        %v2627 = vunpack.c.h.bf16 %v2354
        %v2628 = vunpack.c.l.bf16 %v2355
        %v2629 = vunpack.c.h.bf16 %v2355
        %v2630 = vunpack.c.l.bf16 %v2356
        %v2631 = vunpack.c.l.bf16 %v2357
        %v2632 = vunpack.c.h.bf16 %v2357
        %v2633 = vunpack.c.l.bf16 %v2358
        %v2634 = vunpack.c.h.bf16 %v2358
        %v2635 = vunpack.c.l.bf16 %v2359
        %v2636 = vunpack.c.h.bf16 %v2359
        %v2637 = vunpack.c.l.bf16 %v2360
        %v2638 = vunpack.c.l.bf16 %v2361
        %v2639 = vunpack.c.h.bf16 %v2361
        %v2640 = vunpack.c.l.bf16 %v2362
        %v2641 = vunpack.c.h.bf16 %v2362
        %v2642 = vunpack.c.l.bf16 %v2363
        %v2643 = vunpack.c.h.bf16 %v2363
        %v2644 = vunpack.c.l.bf16 %v2364
        %v2645 = vunpack.c.l.bf16 %v2365
        %v2646 = vunpack.c.h.bf16 %v2365
        %v2647 = vunpack.c.l.bf16 %v2366
        %v2648 = vunpack.c.h.bf16 %v2366
        %v2649 = vunpack.c.l.bf16 %v2367
        %v2650 = vunpack.c.h.bf16 %v2367
        %v2651 = vunpack.c.l.bf16 %v2368
        %v2652 = vunpack.c.l.bf16 %v2369
        %v2653 = vunpack.c.h.bf16 %v2369
        %v2654 = vunpack.c.l.bf16 %v2370
        %v2655 = vunpack.c.h.bf16 %v2370
        %v2656 = vunpack.c.l.bf16 %v2371
        %v2657 = vunpack.c.h.bf16 %v2371
        %v2658 = vunpack.c.l.bf16 %v2372
        %v2659 = vunpack.c.l.bf16 %v2373
        %v2660 = vunpack.c.h.bf16 %v2373
        %v2661 = vunpack.c.l.bf16 %v2374
        %v2662 = vunpack.c.h.bf16 %v2374
        %v2663 = vunpack.c.l.bf16 %v2375
        %v2664 = vunpack.c.h.bf16 %v2375
        %v2665 = vunpack.c.l.bf16 %v2376
        %v2666 = vunpack.c.l.bf16 %v2377
        %v2667 = vunpack.c.h.bf16 %v2377
        %v2668 = vunpack.c.l.bf16 %v2378
        %v2669 = vunpack.c.h.bf16 %v2378
        %v2670 = vunpack.c.l.bf16 %v2379
        %v2671 = vunpack.c.h.bf16 %v2379
        %v2672 = vunpack.c.l.bf16 %v2380
        %v2673 = vunpack.c.l.bf16 %v2381
        %v2674 = vunpack.c.h.bf16 %v2381
        %v2675 = vunpack.c.l.bf16 %v2382
        %v2676 = vunpack.c.h.bf16 %v2382
        %v2677 = vunpack.c.l.bf16 %v2383
        %v2678 = vunpack.c.h.bf16 %v2383
        %v2679 = vunpack.c.l.bf16 %v2384
        %v2680 = vunpack.c.l.bf16 %v2385
        %v2681 = vunpack.c.h.bf16 %v2385
        %v2682 = vunpack.c.l.bf16 %v2386
        %v2683 = vunpack.c.h.bf16 %v2386
        %v2684 = vunpack.c.l.bf16 %v2387
        %v2685 = vunpack.c.h.bf16 %v2387
        %v2686 = vunpack.c.l.bf16 %v2388
        %v2687 = vunpack.c.l.bf16 %v2389
        %v2688 = vunpack.c.h.bf16 %v2389
        %v2689 = vunpack.c.l.bf16 %v2390
        %v2690 = vunpack.c.h.bf16 %v2390
        %v2691 = vunpack.c.l.bf16 %v2391
        %v2692 = vunpack.c.h.bf16 %v2391
        %v2693 = vunpack.c.l.bf16 %v2392
        %v2694 = vunpack.c.l.bf16 %v2393
        %v2695 = vunpack.c.h.bf16 %v2393
        %v2696 = vunpack.c.l.bf16 %v2394
        %v2697 = vunpack.c.h.bf16 %v2394
        %v2698 = vunpack.c.l.bf16 %v2395
        %v2699 = vunpack.c.h.bf16 %v2395
        %v2700 = vunpack.c.l.bf16 %v2396
        %v2701 = vunpack.c.l.bf16 %v2397
        %v2702 = vunpack.c.h.bf16 %v2397
        %v2703 = vunpack.c.l.bf16 %v2398
        %v2704 = vunpack.c.h.bf16 %v2398
        %v2705 = vunpack.c.l.bf16 %v2399
        %v2706 = vunpack.c.h.bf16 %v2399
        %v2707 = vunpack.c.l.bf16 %v2400
        %v2708 = vunpack.c.l.bf16 %v2401
        %v2709 = vunpack.c.h.bf16 %v2401
        %v2710 = vunpack.c.l.bf16 %v2402
        %v2711 = vunpack.c.h.bf16 %v2402
        %v2712 = vunpack.c.l.bf16 %v2403
        %v2713 = vunpack.c.h.bf16 %v2403
        %v2714 = vunpack.c.l.bf16 %v2404
        %v2715 = vunpack.c.l.bf16 %v2405
        %v2716 = vunpack.c.h.bf16 %v2405
        %v2717 = vunpack.c.l.bf16 %v2406
        %v2718 = vunpack.c.h.bf16 %v2406
        %v2719 = vunpack.c.l.bf16 %v2407
        %v2720 = vunpack.c.h.bf16 %v2407
        %v2721 = vunpack.c.l.bf16 %v2408
        %v2722 = vunpack.c.l.bf16 %v2409
        %v2723 = vunpack.c.h.bf16 %v2409
        %v2724 = vunpack.c.l.bf16 %v2410
        %v2725 = vunpack.c.h.bf16 %v2410
        %v2726 = vunpack.c.l.bf16 %v2411
        %v2727 = vunpack.c.h.bf16 %v2411
        %v2728 = vunpack.c.l.bf16 %v2412
        %v2729 = vunpack.c.l.bf16 %v2413
        %v2730 = vunpack.c.h.bf16 %v2413
        %v2731 = vunpack.c.l.bf16 %v2414
        %v2732 = vunpack.c.h.bf16 %v2414
        %v2733 = vunpack.c.l.bf16 %v2415
        %v2734 = vunpack.c.h.bf16 %v2415
        %v2735 = vunpack.c.l.bf16 %v2416
        %v2736 = vunpack.c.l.bf16 %v2417
        %v2737 = vunpack.c.h.bf16 %v2417
        %v2738 = vunpack.c.l.bf16 %v2418
        %v2739 = vunpack.c.h.bf16 %v2418
        %v2740 = vunpack.c.l.bf16 %v2419
        %v2741 = vunpack.c.h.bf16 %v2419
        %v2742 = vunpack.c.l.bf16 %v2420
        %v2743 = vunpack.c.l.bf16 %v2421
        %v2744 = vunpack.c.h.bf16 %v2421
        %v2745 = vunpack.c.l.bf16 %v2422
        %v2746 = vunpack.c.h.bf16 %v2422
        %v2747 = vunpack.c.l.bf16 %v2423
        %v2748 = vunpack.c.h.bf16 %v2423
        %v2749 = vunpack.c.l.bf16 %v2424
        %v2750 = vunpack.c.l.bf16 %v2425
        %v2751 = vunpack.c.h.bf16 %v2425
        %v2752 = vunpack.c.l.bf16 %v2426
        %v2753 = vunpack.c.h.bf16 %v2426
        %v2754 = vunpack.c.l.bf16 %v2427
        %v2755 = vunpack.c.h.bf16 %v2427
        %v2756 = vunpack.c.l.bf16 %v2428
        %v2757 = vunpack.c.l.bf16 %v2429
        %v2758 = vunpack.c.h.bf16 %v2429
        %v2759 = vunpack.c.l.bf16 %v2430
        %v2760 = vunpack.c.h.bf16 %v2430
        %v2761 = vunpack.c.l.bf16 %v2431
        %v2762 = vunpack.c.h.bf16 %v2431
        %v2763 = vunpack.c.l.bf16 %v2432
        %v2764 = vunpack.c.l.bf16 %v2433
        %v2765 = vunpack.c.h.bf16 %v2433
        %v2766 = vunpack.c.l.bf16 %v2434
        %v2767 = vunpack.c.h.bf16 %v2434
        %v2768 = vunpack.c.l.bf16 %v2435
        %v2769 = vunpack.c.h.bf16 %v2435
        %v2770 = vunpack.c.l.bf16 %v2436
        %v2771 = vunpack.c.l.bf16 %v2437
        %v2772 = vunpack.c.h.bf16 %v2437
        %v2773 = vunpack.c.l.bf16 %v2438
        %v2774 = vunpack.c.h.bf16 %v2438
        %v2775 = vunpack.c.l.bf16 %v2439
        %v2776 = vunpack.c.h.bf16 %v2439
        %v2777 = vunpack.c.l.bf16 %v2440
        %v2778 = vunpack.c.l.bf16 %v2441
        %v2779 = vunpack.c.h.bf16 %v2441
        %v2780 = vunpack.c.l.bf16 %v2442
        %v2781 = vunpack.c.h.bf16 %v2442
        %v2782 = vunpack.c.l.bf16 %v2443
        %v2783 = vunpack.c.h.bf16 %v2443
        %v2784 = vunpack.c.l.bf16 %v2444
        %v2785 = vunpack.c.l.bf16 %v2445
        %v2786 = vunpack.c.h.bf16 %v2445
        %v2787 = vunpack.c.l.bf16 %v2446
        %v2788 = vunpack.c.h.bf16 %v2446
        %v2789 = vunpack.c.l.bf16 %v2447
        %v2790 = vunpack.c.h.bf16 %v2447
        %v2791 = vunpack.c.l.bf16 %v2448
        %v2792 = vunpack.c.l.bf16 %v2449
        %v2793 = vunpack.c.h.bf16 %v2449
        %v2794 = vunpack.c.l.bf16 %v2450
        %v2795 = vunpack.c.h.bf16 %v2450
        %v2796 = vunpack.c.l.bf16 %v2451
        %v2797 = vunpack.c.h.bf16 %v2451
        %v2798 = vunpack.c.l.bf16 %v2452
        %v2799 = vunpack.c.l.bf16 %v2453
        %v2800 = vunpack.c.h.bf16 %v2453
        %v2801 = vunpack.c.l.bf16 %v2454
        %v2802 = vunpack.c.h.bf16 %v2454
        %v2803 = vunpack.c.l.bf16 %v2455
        %v2804 = vunpack.c.h.bf16 %v2455
        %v2805 = vunpack.c.l.bf16 %v2456
        %v2806 = vunpack.c.l.bf16 %v2457
        %v2807 = vunpack.c.h.bf16 %v2457
        %v2808 = vunpack.c.l.bf16 %v2458
        %v2809 = vunpack.c.h.bf16 %v2458
        %v2810 = vunpack.c.l.bf16 %v2459
        %v2811 = vunpack.c.h.bf16 %v2459
        %v2812 = vunpack.c.l.bf16 %v2460
        %v2813 = vunpack.c.l.bf16 %v2461
        %v2814 = vunpack.c.h.bf16 %v2461
        %v2815 = vunpack.c.l.bf16 %v2462
        %v2816 = vunpack.c.h.bf16 %v2462
        %v2817 = vunpack.c.l.bf16 %v2463
        %v2818 = vunpack.c.h.bf16 %v2463
        %v2819 = vunpack.c.l.bf16 %v2464
        %v2820 = vunpack.c.l.bf16 %v2465
        %v2821 = vunpack.c.h.bf16 %v2465
        %v2822 = vunpack.c.l.bf16 %v2466
        %v2823 = vunpack.c.h.bf16 %v2466
        %v2824 = vunpack.c.l.bf16 %v2467
        %v2825 = vunpack.c.h.bf16 %v2467
        %v2826 = vunpack.c.l.bf16 %v2468
        %v2827 = vunpack.c.l.bf16 %v2469
        %v2828 = vunpack.c.h.bf16 %v2469
        %v2829 = vunpack.c.l.bf16 %v2470
        %v2830 = vunpack.c.h.bf16 %v2470
        %v2831 = vunpack.c.l.bf16 %v2471
        %v2832 = vunpack.c.h.bf16 %v2471
        %v2833 = vunpack.c.l.bf16 %v2472
        %v2834 = vunpack.c.l.bf16 %v2473
        %v2835 = vunpack.c.h.bf16 %v2473
        %v2836 = vunpack.c.l.bf16 %v2474
        %v2837 = vunpack.c.h.bf16 %v2474
        %v2838 = vunpack.c.l.bf16 %v2475
        %v2839 = vunpack.c.h.bf16 %v2475
        %v2840 = vunpack.c.l.bf16 %v2476
        %v2841 = vunpack.c.l.bf16 %v2477
        %v2842 = vunpack.c.h.bf16 %v2477
        %v2843 = vunpack.c.l.bf16 %v2478
        %v2844 = vunpack.c.h.bf16 %v2478
        %v2845 = vunpack.c.l.bf16 %v2479
        %v2846 = vunpack.c.h.bf16 %v2479
        %v2847 = vunpack.c.l.bf16 %v2480
        %v2848 = vunpack.c.l.bf16 %v2481
        %v2849 = vunpack.c.h.bf16 %v2481
        %v2850 = vunpack.c.l.bf16 %v2482
        %v2851 = vunpack.c.h.bf16 %v2482
        %v2852 = vunpack.c.l.bf16 %v2483
        %v2853 = vunpack.c.h.bf16 %v2483
        %v2854 = vunpack.c.l.bf16 %v2484
        %v2855 = vunpack.c.l.bf16 %v2485
        %v2856 = vunpack.c.h.bf16 %v2485
        %v2857 = vunpack.c.l.bf16 %v2486
        %v2858 = vunpack.c.h.bf16 %v2486
        %v2859 = vunpack.c.l.bf16 %v2487
        %v2860 = vunpack.c.h.bf16 %v2487
        %v2861 = vunpack.c.l.bf16 %v2488
        %v2862 = vunpack.c.l.bf16 %v2489
        %v2863 = vunpack.c.h.bf16 %v2489
        %v2864 = vunpack.c.l.bf16 %v2490
        %v2865 = vunpack.c.h.bf16 %v2490
        %v2866 = vunpack.c.l.bf16 %v2491
        %v2867 = vunpack.c.h.bf16 %v2491
        %v2868 = vunpack.c.l.bf16 %v2492
        %v2869 = vunpack.c.l.bf16 %v2493
        %v2870 = vunpack.c.h.bf16 %v2493
        %v2871 = vunpack.c.l.bf16 %v2494
        %v2872 = vunpack.c.h.bf16 %v2494
        %v2873 = vunpack.c.l.bf16 %v2495
        %v2874 = vunpack.c.h.bf16 %v2495
        %v2875 = vunpack.c.l.bf16 %v2496
        %v2876 = vunpack.c.l.bf16 %v2497
        %v2877 = vunpack.c.h.bf16 %v2497
        %v2878 = vunpack.c.l.bf16 %v2498
        %v2879 = vunpack.c.h.bf16 %v2498
        %v2880 = vunpack.c.l.bf16 %v2499
        %v2881 = vunpack.c.h.bf16 %v2499
        %v2882 = vunpack.c.l.bf16 %v2500
        %v2883 = vunpack.c.l.bf16 %v2501
        %v2884 = vunpack.c.h.bf16 %v2501
        %v2885 = vunpack.c.l.bf16 %v2502
        %v2886 = vunpack.c.h.bf16 %v2502
        %v2887 = vunpack.c.l.bf16 %v2503
        %v2888 = vunpack.c.h.bf16 %v2503
        %v2889 = vunpack.c.l.bf16 %v2504
        %v2890 = vunpack.c.l.bf16 %v2505
        %v2891 = vunpack.c.h.bf16 %v2505
        %v2892 = vunpack.c.l.bf16 %v2506
        %v2893 = vunpack.c.h.bf16 %v2506
        %v2894 = vunpack.c.l.bf16 %v2507
        %v2895 = vunpack.c.h.bf16 %v2507
        %v2896 = vunpack.c.l.bf16 %v2508
        %v2897 = vunpack.c.l.bf16 %v2509
        %v2898 = vunpack.c.h.bf16 %v2509
        %v2899 = vunpack.c.l.bf16 %v2510
        %v2900 = vunpack.c.h.bf16 %v2510
        %v2901 = vunpack.c.l.bf16 %v2511
        %v2902 = vunpack.c.h.bf16 %v2511
        %v2903 = vunpack.c.l.bf16 %v2512
        %v2904 = vunpack.c.l.bf16 %v2513
        %v2905 = vunpack.c.h.bf16 %v2513
        %v2906 = vunpack.c.l.bf16 %v2514
        %v2907 = vunpack.c.h.bf16 %v2514
        %v2908 = vunpack.c.l.bf16 %v2515
        %v2909 = vunpack.c.h.bf16 %v2515
        %v2910 = vunpack.c.l.bf16 %v2516
        %v2911 = vunpack.c.l.bf16 %v2517
        %v2912 = vunpack.c.h.bf16 %v2517
        %v2913 = vunpack.c.l.bf16 %v2518
        %v2914 = vunpack.c.h.bf16 %v2518
        %v2915 = vunpack.c.l.bf16 %v2519
        %v2916 = vunpack.c.h.bf16 %v2519
        %v2917 = vunpack.c.l.bf16 %v2520
        %v2918 = vunpack.c.l.bf16 %v2521
        %v2919 = vunpack.c.h.bf16 %v2521
        %v2920 = vunpack.c.l.bf16 %v2522
        %v2921 = vunpack.c.h.bf16 %v2522
        %v2922 = vunpack.c.l.bf16 %v2523
        %v2923 = vunpack.c.h.bf16 %v2523
        %v2924 = vunpack.c.l.bf16 %v2524
        %v2925 = vunpack.c.l.bf16 %v2525
        %v2926 = vunpack.c.h.bf16 %v2525
        %v2927 = vunpack.c.l.bf16 %v2526
        %v2928 = vunpack.c.h.bf16 %v2526
        %v2929 = vunpack.c.l.bf16 %v2527
        %v2930 = vunpack.c.h.bf16 %v2527
        %v2931 = vunpack.c.l.bf16 %v2528
        %v2932 = vunpack.c.l.bf16 %v2529
        %v2933 = vunpack.c.h.bf16 %v2529
        %v2934 = vunpack.c.l.bf16 %v2530
        %v2935 = vunpack.c.h.bf16 %v2530
        %v2936 = vunpack.c.l.bf16 %v2531
        %v2937 = vunpack.c.h.bf16 %v2531
        %v2938 = vunpack.c.l.bf16 %v2532
        %v2939 = vunpack.c.l.bf16 %v2533
        %v2940 = vunpack.c.h.bf16 %v2533
        %v2941 = vunpack.c.l.bf16 %v2534
        %v2942 = vunpack.c.h.bf16 %v2534
        %v2943 = vunpack.c.l.bf16 %v2535
        %v2944 = vunpack.c.h.bf16 %v2535
        %v2945 = vunpack.c.l.bf16 %v2536
        %v2946 = vunpack.c.l.bf16 %v2537
        %v2947 = vunpack.c.h.bf16 %v2537
        %v2948 = vunpack.c.l.bf16 %v2538
        %v2949 = vunpack.c.h.bf16 %v2538
        %v2950 = vunpack.c.l.bf16 %v2539
        %v2951 = vunpack.c.h.bf16 %v2539
        %v2952 = vunpack.c.l.bf16 %v2540
        %v2953 = vunpack.c.l.bf16 %v2541
        %v2954 = vunpack.c.h.bf16 %v2541
        %v2955 = vunpack.c.l.bf16 %v2542
        %v2956 = vunpack.c.h.bf16 %v2542
        %v2957 = vunpack.c.l.bf16 %v2543
        %v2958 = vunpack.c.h.bf16 %v2543
        %v2959 = vunpack.c.l.bf16 %v2544
        %v2960 = vunpack.c.l.bf16 %v2545
        %v2961 = vunpack.c.h.bf16 %v2545
        %v2962 = vunpack.c.l.bf16 %v2546
        %v2963 = vunpack.c.h.bf16 %v2546
        %v2964 = vunpack.c.l.bf16 %v2547
        %v2965 = vunpack.c.h.bf16 %v2547
        %v2966 = vunpack.c.l.bf16 %v2548
        %v2967 = vunpack.c.l.bf16 %v2549
        %v2968 = vunpack.c.h.bf16 %v2549
        %v2969 = vunpack.c.l.bf16 %v2550
        %v2970 = vunpack.c.h.bf16 %v2550
        %v2971 = vunpack.c.l.bf16 %v2551
        %v2972 = vunpack.c.h.bf16 %v2551
        %v2973 = vunpack.c.l.bf16 %v2552
        %v2974 = vunpack.c.l.bf16 %v2553
        %v2975 = vunpack.c.h.bf16 %v2553
        %v2976 = vunpack.c.l.bf16 %v2554
        %v2977 = vunpack.c.h.bf16 %v2554
        %v2978 = vunpack.c.l.bf16 %v2555
        %v2979 = vunpack.c.h.bf16 %v2555
        %v2980 = vunpack.c.l.bf16 %v2556
        %v2981 = vunpack.c.l.bf16 %v2557
        %v2982 = vunpack.c.h.bf16 %v2557
        %v2983 = vunpack.c.l.bf16 %v2558
        %v2984 = vunpack.c.h.bf16 %v2558
        %v2985 = vunpack.c.l.bf16 %v2559
        %v2986 = vunpack.c.h.bf16 %v2559
        %v2987 = vunpack.c.l.bf16 %v2560
        %v2988 = vunpack.c.l.bf16 %v2561
        %v2989 = vunpack.c.h.bf16 %v2561
        %v2990 = vunpack.c.l.bf16 %v2562
        %v2991 = vunpack.c.h.bf16 %v2562
        %v2992 = vunpack.c.l.bf16 %v2563
        %v2993 = vunpack.c.h.bf16 %v2563
        %v2994 = vunpack.c.l.bf16 %v2564
        %v2995 = vunpack.c.l.bf16 %v2565
        %v2996 = vunpack.c.h.bf16 %v2565
        %v2997 = vunpack.c.l.bf16 %v2566
        %v2998 = vunpack.c.h.bf16 %v2566
        %v2999 = vunpack.c.l.bf16 %v2567
        %v3000 = vunpack.c.h.bf16 %v2567
        %v3001 = vunpack.c.l.bf16 %v2568
        %v3002 = vunpack.c.l.bf16 %v2569
        %v3003 = vunpack.c.h.bf16 %v2569
        %v3004 = vunpack.c.l.bf16 %v2570
        %v3005 = vunpack.c.h.bf16 %v2570
        %v3006 = vunpack.c.l.bf16 %v2571
        %v3007 = vunpack.c.h.bf16 %v2571
        %v3008 = vunpack.c.l.bf16 %v2572
        %v3009 = vunpack.c.l.bf16 %v2573
        %v3010 = vunpack.c.h.bf16 %v2573
        %v3011 = vunpack.c.l.bf16 %v2574
        %v3012 = vunpack.c.h.bf16 %v2574
        %v3013 = vunpack.c.l.bf16 %v2575
        %v3014 = vunpack.c.h.bf16 %v2575
        %v3015 = vunpack.c.l.bf16 %v2576
        %v3016 = vunpack.c.l.bf16 %v2577
        %v3017 = vunpack.c.h.bf16 %v2577
        %v3018 = vunpack.c.l.bf16 %v2578
        %v3019 = vunpack.c.h.bf16 %v2578
        %v3020 = vunpack.c.l.bf16 %v2579
        %v3021 = vunpack.c.h.bf16 %v2579
        %v3022 = vunpack.c.l.bf16 %v2580
        %v3023 = vunpack.c.l.bf16 %v2581
        %v3024 = vunpack.c.h.bf16 %v2581
        %v3025 = vunpack.c.l.bf16 %v2582
        %v3026 = vunpack.c.h.bf16 %v2582
        %v3027 = vunpack.c.l.bf16 %v2583
        %v3028 = vunpack.c.h.bf16 %v2583
        %v3029 = vunpack.c.l.bf16 %v2584
        %v3030 = vunpack.c.l.bf16 %v2585
        %v3031 = vunpack.c.h.bf16 %v2585
        %v3032 = vunpack.c.l.bf16 %v2586
        %v3033 = vunpack.c.h.bf16 %v2586
        %v3034 = vunpack.c.l.bf16 %v2587
        %v3035 = vunpack.c.h.bf16 %v2587
        %v3036 = vunpack.c.l.bf16 %v2588
        %v3037 = vld [vmem:[%s11] sm:$0xff]
        %v3039 = vlaneseq
        %v3040 = vshrl.u32 %v3039, 7
        %v3041 = vsub.s32 0, %v3040
        %v3042 = vrot.slane %v3037, %v3041
        %v3043 = vlaneseq
        %v3044 = vshrl.u32 %v3043, 7
        %v3045 = vsub.s32 1, %v3044
        %v3046 = vrot.slane %v3037, %v3045
        %v3047 = vlaneseq
        %v3048 = vshrl.u32 %v3047, 7
        %v3049 = vsub.s32 2, %v3048
        %v3050 = vrot.slane %v3037, %v3049
        %v3051 = vlaneseq
        %v3052 = vshrl.u32 %v3051, 7
        %v3053 = vsub.s32 3, %v3052
        %v3054 = vrot.slane %v3037, %v3053
        %v3055 = vlaneseq
        %v3056 = vshrl.u32 %v3055, 7
        %v3057 = vsub.s32 4, %v3056
        %v3058 = vrot.slane %v3037, %v3057
        %v3059 = vlaneseq
        %v3060 = vshrl.u32 %v3059, 7
        %v3061 = vsub.s32 5, %v3060
        %v3062 = vrot.slane %v3037, %v3061
        %v3063 = vlaneseq
        %v3064 = vshrl.u32 %v3063, 7
        %v3065 = vsub.s32 6, %v3064
        %v3066 = vrot.slane %v3037, %v3065
        %3074 = vmatprep.subr.mxu0 %v2590
        %3075 = vmatpush1.msra.mxu0 %v2589
        %3076 = vmatprep.subr.mxu0 %v2597
        %3077 = vmatpush1.msra.mxu0 %v2596
        %3078 = vmatprep.subr.mxu0 %v2604
        %3079 = vmatpush1.msra.mxu0 %v2603
        %3080 = vmatprep.subr.mxu0 %v2611
        %3081 = vmatpush1.msra.mxu0 %v2610
        %3082 = vmatprep.subr.mxu0 %v2618
        %3083 = vmatpush1.msra.mxu0 %v2617
        %3084 = vmatprep.subr.mxu0 %v2625
        %3085 = vmatpush1.msra.mxu0 %v2624
        %3086 = vmatprep.subr.mxu0 %v2632
        %3087 = vmatpush1.msra.mxu0 %v2631
        %3088 = vmatprep.subr.mxu0 %v2639
        %3089 = vmatpush1.msra.mxu0 %v2638
        %3090 = vmatprep.subr.mxu0 %v2646
        %3091 = vmatpush1.msra.mxu0 %v2645
        %3092 = vmatprep.subr.mxu0 %v2653
        %3093 = vmatpush1.msra.mxu0 %v2652
        %3094 = vmatprep.subr.mxu0 %v2660
        %3095 = vmatpush1.msra.mxu0 %v2659
        %3096 = vmatprep.subr.mxu0 %v2667
        %3097 = vmatpush1.msra.mxu0 %v2666
        %3098 = vmatprep.subr.mxu0 %v2674
        %3099 = vmatpush1.msra.mxu0 %v2673
        %3100 = vmatprep.subr.mxu0 %v2681
        %3101 = vmatpush1.msra.mxu0 %v2680
        %3102 = vmatprep.subr.mxu0 %v2688
        %3103 = vmatpush1.msra.mxu0 %v2687
        %3104 = vmatprep.subr.mxu0 %v2695
        %3105 = vmatpush1.msra.mxu0 %v2694
        %3106 = vmatprep.subr.mxu0 %v2702
        %3107 = vmatpush1.msra.mxu0 %v2701
        %3108 = vmatprep.subr.mxu0 %v2709
        %3109 = vmatpush1.msra.mxu0 %v2708
        %3110 = vmatprep.subr.mxu0 %v2716
        %3111 = vmatpush1.msra.mxu0 %v2715
        %3112 = vmatprep.subr.mxu0 %v2723
        %3113 = vmatpush1.msra.mxu0 %v2722
        %3114 = vmatprep.subr.mxu0 %v2730
        %3115 = vmatpush1.msra.mxu0 %v2729
        %3116 = vmatprep.subr.mxu0 %v2737
        %3117 = vmatpush1.msra.mxu0 %v2736
        %3118 = vmatprep.subr.mxu0 %v2744
        %3119 = vmatpush1.msra.mxu0 %v2743
        %3120 = vmatprep.subr.mxu0 %v2751
        %3121 = vmatpush1.msra.mxu0 %v2750
        %3122 = vmatprep.subr.mxu0 %v2758
        %3123 = vmatpush1.msra.mxu0 %v2757
        %3124 = vmatprep.subr.mxu0 %v2765
        %3125 = vmatpush1.msra.mxu0 %v2764
        %3126 = vmatprep.subr.mxu0 %v2772
        %3127 = vmatpush1.msra.mxu0 %v2771
        %3128 = vmatprep.subr.mxu0 %v2779
        %3129 = vmatpush1.msra.mxu0 %v2778
        %3130 = vmatprep.subr.mxu0 %v2786
        %3131 = vmatpush1.msra.mxu0 %v2785
        %3132 = vmatprep.subr.mxu0 %v2793
        %3133 = vmatpush1.msra.mxu0 %v2792
        %3134 = vmatprep.subr.mxu0 %v2800
        %3135 = vmatpush1.msra.mxu0 %v2799
        %3136 = vmatprep.subr.mxu0 %v2807
        %3137 = vmatpush1.msra.mxu0 %v2806
        %3138 = vmatprep.mubr.f32.mxu0 %v2330
        %3139 = vmatmul.mubr.f32.gmra.mrb[0].mxu0 %v2329
        %v3140 = vpop.f32.mrb[0].mxu0
        %v3141 = vadd.f32 %v3042, %v3140
        %v3142 = vpop.f32.mrb[0].mxu0
        %v3143 = vadd.f32 %v3046, %v3142
        %3144 = vdwg.mxu0
        %3145 = vmatprep.subr.mxu0 %v2814
        %3146 = vmatpush1.msra.mxu0 %v2813
        %3147 = vmatprep.subr.mxu0 %v2821
        %3148 = vmatpush1.msra.mxu0 %v2820
        %3149 = vmatprep.subr.mxu0 %v2828
        %3150 = vmatpush1.msra.mxu0 %v2827
        %3151 = vmatprep.subr.mxu0 %v2835
        %3152 = vmatpush1.msra.mxu0 %v2834
        %3153 = vmatprep.subr.mxu0 %v2842
        %3154 = vmatpush1.msra.mxu0 %v2841
        %3155 = vmatprep.subr.mxu0 %v2849
        %3156 = vmatpush1.msra.mxu0 %v2848
        %3157 = vmatprep.subr.mxu0 %v2856
        %3158 = vmatpush1.msra.mxu0 %v2855
        %3159 = vmatprep.subr.mxu0 %v2863
        %3160 = vmatpush1.msra.mxu0 %v2862
        %3161 = vmatprep.subr.mxu0 %v2870
        %3162 = vmatpush1.msra.mxu0 %v2869
        %3163 = vmatprep.subr.mxu0 %v2877
        %3164 = vmatpush1.msra.mxu0 %v2876
        %3165 = vmatprep.subr.mxu0 %v2884
        %3166 = vmatpush1.msra.mxu0 %v2883
        %3167 = vmatprep.subr.mxu0 %v2891
        %3168 = vmatpush1.msra.mxu0 %v2890
        %3169 = vmatprep.subr.mxu0 %v2898
        %3170 = vmatpush1.msra.mxu0 %v2897
        %3171 = vmatprep.subr.mxu0 %v2905
        %3172 = vmatpush1.msra.mxu0 %v2904
        %3173 = vmatprep.subr.mxu0 %v2912
        %3174 = vmatpush1.msra.mxu0 %v2911
        %3175 = vmatprep.subr.mxu0 %v2919
        %3176 = vmatpush1.msra.mxu0 %v2918
        %3177 = vmatprep.subr.mxu0 %v2926
        %3178 = vmatpush1.msra.mxu0 %v2925
        %3179 = vmatprep.subr.mxu0 %v2933
        %3180 = vmatpush1.msra.mxu0 %v2932
        %3181 = vmatprep.subr.mxu0 %v2940
        %3182 = vmatpush1.msra.mxu0 %v2939
        %3183 = vmatprep.subr.mxu0 %v2947
        %3184 = vmatpush1.msra.mxu0 %v2946
        %3185 = vmatprep.subr.mxu0 %v2954
        %3186 = vmatpush1.msra.mxu0 %v2953
        %3187 = vmatprep.subr.mxu0 %v2961
        %3188 = vmatpush1.msra.mxu0 %v2960
        %3189 = vmatprep.subr.mxu0 %v2968
        %3190 = vmatpush1.msra.mxu0 %v2967
        %3191 = vmatprep.subr.mxu0 %v2975
        %3192 = vmatpush1.msra.mxu0 %v2974
        %3193 = vmatprep.subr.mxu0 %v2982
        %3194 = vmatpush1.msra.mxu0 %v2981
        %3195 = vmatprep.subr.mxu0 %v2989
        %3196 = vmatpush1.msra.mxu0 %v2988
        %3197 = vmatprep.subr.mxu0 %v2996
        %3198 = vmatpush1.msra.mxu0 %v2995
        %3199 = vmatprep.subr.mxu0 %v3003
        %3200 = vmatpush1.msra.mxu0 %v3002
        %3201 = vmatprep.subr.mxu0 %v3010
        %3202 = vmatpush1.msra.mxu0 %v3009
        %3203 = vmatprep.subr.mxu0 %v3017
        %3204 = vmatpush1.msra.mxu0 %v3016
        %3205 = vmatprep.subr.mxu0 %v3024
        %3206 = vmatpush1.msra.mxu0 %v3023
        %3207 = vmatprep.subr.mxu0 %v3031
        %3208 = vmatpush1.msra.mxu0 %v3030
        %3209 = vmatprep.mubr.f32.mxu0 %v2332
        %3210 = vmatmul.mubr.f32.gmra.mrb[0].mxu0 %v2331
        %v3211 = vpop.f32.mrb[0].mxu0
        %v3212 = vadd.f32 %v3141, %v3211
        %v3213 = vpop.f32.mrb[0].mxu0
        %v3214 = vadd.f32 %v3143, %v3213
        %3215 = vdwg.mxu0
        %3216 = vmatprep.subr.mxu0 %v2592
        %3217 = vmatpush1.msra.mxu0 %v2591
        %3218 = vmatprep.subr.mxu0 %v2599
        %3219 = vmatpush1.msra.mxu0 %v2598
        %3220 = vmatprep.subr.mxu0 %v2606
        %3221 = vmatpush1.msra.mxu0 %v2605
        %3222 = vmatprep.subr.mxu0 %v2613
        %3223 = vmatpush1.msra.mxu0 %v2612
        %3224 = vmatprep.subr.mxu0 %v2620
        %3225 = vmatpush1.msra.mxu0 %v2619
        %3226 = vmatprep.subr.mxu0 %v2627
        %3227 = vmatpush1.msra.mxu0 %v2626
        %3228 = vmatprep.subr.mxu0 %v2634
        %3229 = vmatpush1.msra.mxu0 %v2633
        %3230 = vmatprep.subr.mxu0 %v2641
        %3231 = vmatpush1.msra.mxu0 %v2640
        %3232 = vmatprep.subr.mxu0 %v2648
        %3233 = vmatpush1.msra.mxu0 %v2647
        %3234 = vmatprep.subr.mxu0 %v2655
        %3235 = vmatpush1.msra.mxu0 %v2654
        %3236 = vmatprep.subr.mxu0 %v2662
        %3237 = vmatpush1.msra.mxu0 %v2661
        %3238 = vmatprep.subr.mxu0 %v2669
        %3239 = vmatpush1.msra.mxu0 %v2668
        %3240 = vmatprep.subr.mxu0 %v2676
        %3241 = vmatpush1.msra.mxu0 %v2675
        %3242 = vmatprep.subr.mxu0 %v2683
        %3243 = vmatpush1.msra.mxu0 %v2682
        %3244 = vmatprep.subr.mxu0 %v2690
        %3245 = vmatpush1.msra.mxu0 %v2689
        %3246 = vmatprep.subr.mxu0 %v2697
        %3247 = vmatpush1.msra.mxu0 %v2696
        %3248 = vmatprep.subr.mxu0 %v2704
        %3249 = vmatpush1.msra.mxu0 %v2703
        %3250 = vmatprep.subr.mxu0 %v2711
        %3251 = vmatpush1.msra.mxu0 %v2710
        %3252 = vmatprep.subr.mxu0 %v2718
        %3253 = vmatpush1.msra.mxu0 %v2717
        %3254 = vmatprep.subr.mxu0 %v2725
        %3255 = vmatpush1.msra.mxu0 %v2724
        %3256 = vmatprep.subr.mxu0 %v2732
        %3257 = vmatpush1.msra.mxu0 %v2731
        %3258 = vmatprep.subr.mxu0 %v2739
        %3259 = vmatpush1.msra.mxu0 %v2738
        %3260 = vmatprep.subr.mxu0 %v2746
        %3261 = vmatpush1.msra.mxu0 %v2745
        %3262 = vmatprep.subr.mxu0 %v2753
        %3263 = vmatpush1.msra.mxu0 %v2752
        %3264 = vmatprep.subr.mxu0 %v2760
        %3265 = vmatpush1.msra.mxu0 %v2759
        %3266 = vmatprep.subr.mxu0 %v2767
        %3267 = vmatpush1.msra.mxu0 %v2766
        %3268 = vmatprep.subr.mxu0 %v2774
        %3269 = vmatpush1.msra.mxu0 %v2773
        %3270 = vmatprep.subr.mxu0 %v2781
        %3271 = vmatpush1.msra.mxu0 %v2780
        %3272 = vmatprep.subr.mxu0 %v2788
        %3273 = vmatpush1.msra.mxu0 %v2787
        %3274 = vmatprep.subr.mxu0 %v2795
        %3275 = vmatpush1.msra.mxu0 %v2794
        %3276 = vmatprep.subr.mxu0 %v2802
        %3277 = vmatpush1.msra.mxu0 %v2801
        %3278 = vmatprep.subr.mxu0 %v2809
        %3279 = vmatpush1.msra.mxu0 %v2808
        %3280 = vmatprep.mubr.f32.mxu0 %v2330
        %3281 = vmatmul.mubr.f32.gmra.mrb[0].mxu0 %v2329
        %v3282 = vpop.f32.mrb[0].mxu0
        %v3283 = vadd.f32 %v3050, %v3282
        %v3284 = vpop.f32.mrb[0].mxu0
        %v3285 = vadd.f32 %v3054, %v3284
        %3286 = vdwg.mxu0
        %3287 = vmatprep.subr.mxu0 %v2816
        %3288 = vmatpush1.msra.mxu0 %v2815
        %3289 = vmatprep.subr.mxu0 %v2823
        %3290 = vmatpush1.msra.mxu0 %v2822
        %3291 = vmatprep.subr.mxu0 %v2830
        %3292 = vmatpush1.msra.mxu0 %v2829
        %3293 = vmatprep.subr.mxu0 %v2837
        %3294 = vmatpush1.msra.mxu0 %v2836
        %3295 = vmatprep.subr.mxu0 %v2844
        %3296 = vmatpush1.msra.mxu0 %v2843
        %3297 = vmatprep.subr.mxu0 %v2851
        %3298 = vmatpush1.msra.mxu0 %v2850
        %3299 = vmatprep.subr.mxu0 %v2858
        %3300 = vmatpush1.msra.mxu0 %v2857
        %3301 = vmatprep.subr.mxu0 %v2865
        %3302 = vmatpush1.msra.mxu0 %v2864
        %3303 = vmatprep.subr.mxu0 %v2872
        %3304 = vmatpush1.msra.mxu0 %v2871
        %3305 = vmatprep.subr.mxu0 %v2879
        %3306 = vmatpush1.msra.mxu0 %v2878
        %3307 = vmatprep.subr.mxu0 %v2886
        %3308 = vmatpush1.msra.mxu0 %v2885
        %3309 = vmatprep.subr.mxu0 %v2893
        %3310 = vmatpush1.msra.mxu0 %v2892
        %3311 = vmatprep.subr.mxu0 %v2900
        %3312 = vmatpush1.msra.mxu0 %v2899
        %3313 = vmatprep.subr.mxu0 %v2907
        %3314 = vmatpush1.msra.mxu0 %v2906
        %3315 = vmatprep.subr.mxu0 %v2914
        %3316 = vmatpush1.msra.mxu0 %v2913
        %3317 = vmatprep.subr.mxu0 %v2921
        %3318 = vmatpush1.msra.mxu0 %v2920
        %3319 = vmatprep.subr.mxu0 %v2928
        %3320 = vmatpush1.msra.mxu0 %v2927
        %3321 = vmatprep.subr.mxu0 %v2935
        %3322 = vmatpush1.msra.mxu0 %v2934
        %3323 = vmatprep.subr.mxu0 %v2942
        %3324 = vmatpush1.msra.mxu0 %v2941
        %3325 = vmatprep.subr.mxu0 %v2949
        %3326 = vmatpush1.msra.mxu0 %v2948
        %3327 = vmatprep.subr.mxu0 %v2956
        %3328 = vmatpush1.msra.mxu0 %v2955
        %3329 = vmatprep.subr.mxu0 %v2963
        %3330 = vmatpush1.msra.mxu0 %v2962
        %3331 = vmatprep.subr.mxu0 %v2970
        %3332 = vmatpush1.msra.mxu0 %v2969
        %3333 = vmatprep.subr.mxu0 %v2977
        %3334 = vmatpush1.msra.mxu0 %v2976
        %3335 = vmatprep.subr.mxu0 %v2984
        %3336 = vmatpush1.msra.mxu0 %v2983
        %3337 = vmatprep.subr.mxu0 %v2991
        %3338 = vmatpush1.msra.mxu0 %v2990
        %3339 = vmatprep.subr.mxu0 %v2998
        %3340 = vmatpush1.msra.mxu0 %v2997
        %3341 = vmatprep.subr.mxu0 %v3005
        %3342 = vmatpush1.msra.mxu0 %v3004
        %3343 = vmatprep.subr.mxu0 %v3012
        %3344 = vmatpush1.msra.mxu0 %v3011
        %3345 = vmatprep.subr.mxu0 %v3019
        %3346 = vmatpush1.msra.mxu0 %v3018
        %3347 = vmatprep.subr.mxu0 %v3026
        %3348 = vmatpush1.msra.mxu0 %v3025
        %3349 = vmatprep.subr.mxu0 %v3033
        %3350 = vmatpush1.msra.mxu0 %v3032
        %3351 = vmatprep.mubr.f32.mxu0 %v2332
        %3352 = vmatmul.mubr.f32.gmra.mrb[0].mxu0 %v2331
        %v3353 = vpop.f32.mrb[0].mxu0
        %v3354 = vadd.f32 %v3283, %v3353
        %v3355 = vpop.f32.mrb[0].mxu0
        %v3356 = vadd.f32 %v3285, %v3355
        %3357 = vdwg.mxu0
        %3358 = vmatprep.subr.mxu0 %v2594
        %3359 = vmatpush1.msra.mxu0 %v2593
        %3360 = vmatprep.subr.mxu0 %v2601
        %3361 = vmatpush1.msra.mxu0 %v2600
        %3362 = vmatprep.subr.mxu0 %v2608
        %3363 = vmatpush1.msra.mxu0 %v2607
        %3364 = vmatprep.subr.mxu0 %v2615
        %3365 = vmatpush1.msra.mxu0 %v2614
        %3366 = vmatprep.subr.mxu0 %v2622
        %3367 = vmatpush1.msra.mxu0 %v2621
        %3368 = vmatprep.subr.mxu0 %v2629
        %3369 = vmatpush1.msra.mxu0 %v2628
        %3370 = vmatprep.subr.mxu0 %v2636
        %3371 = vmatpush1.msra.mxu0 %v2635
        %3372 = vmatprep.subr.mxu0 %v2643
        %3373 = vmatpush1.msra.mxu0 %v2642
        %3374 = vmatprep.subr.mxu0 %v2650
        %3375 = vmatpush1.msra.mxu0 %v2649
        %3376 = vmatprep.subr.mxu0 %v2657
        %3377 = vmatpush1.msra.mxu0 %v2656
        %3378 = vmatprep.subr.mxu0 %v2664
        %3379 = vmatpush1.msra.mxu0 %v2663
        %3380 = vmatprep.subr.mxu0 %v2671
        %3381 = vmatpush1.msra.mxu0 %v2670
        %3382 = vmatprep.subr.mxu0 %v2678
        %3383 = vmatpush1.msra.mxu0 %v2677
        %3384 = vmatprep.subr.mxu0 %v2685
        %3385 = vmatpush1.msra.mxu0 %v2684
        %3386 = vmatprep.subr.mxu0 %v2692
        %3387 = vmatpush1.msra.mxu0 %v2691
        %3388 = vmatprep.subr.mxu0 %v2699
        %3389 = vmatpush1.msra.mxu0 %v2698
        %3390 = vmatprep.subr.mxu0 %v2706
        %3391 = vmatpush1.msra.mxu0 %v2705
        %3392 = vmatprep.subr.mxu0 %v2713
        %3393 = vmatpush1.msra.mxu0 %v2712
        %3394 = vmatprep.subr.mxu0 %v2720
        %3395 = vmatpush1.msra.mxu0 %v2719
        %3396 = vmatprep.subr.mxu0 %v2727
        %3397 = vmatpush1.msra.mxu0 %v2726
        %3398 = vmatprep.subr.mxu0 %v2734
        %3399 = vmatpush1.msra.mxu0 %v2733
        %3400 = vmatprep.subr.mxu0 %v2741
        %3401 = vmatpush1.msra.mxu0 %v2740
        %3402 = vmatprep.subr.mxu0 %v2748
        %3403 = vmatpush1.msra.mxu0 %v2747
        %3404 = vmatprep.subr.mxu0 %v2755
        %3405 = vmatpush1.msra.mxu0 %v2754
        %3406 = vmatprep.subr.mxu0 %v2762
        %3407 = vmatpush1.msra.mxu0 %v2761
        %3408 = vmatprep.subr.mxu0 %v2769
        %3409 = vmatpush1.msra.mxu0 %v2768
        %3410 = vmatprep.subr.mxu0 %v2776
        %3411 = vmatpush1.msra.mxu0 %v2775
        %3412 = vmatprep.subr.mxu0 %v2783
        %3413 = vmatpush1.msra.mxu0 %v2782
        %3414 = vmatprep.subr.mxu0 %v2790
        %3415 = vmatpush1.msra.mxu0 %v2789
        %3416 = vmatprep.subr.mxu0 %v2797
        %3417 = vmatpush1.msra.mxu0 %v2796
        %3418 = vmatprep.subr.mxu0 %v2804
        %3419 = vmatpush1.msra.mxu0 %v2803
        %3420 = vmatprep.subr.mxu0 %v2811
        %3421 = vmatpush1.msra.mxu0 %v2810
        %3422 = vmatprep.mubr.f32.mxu0 %v2330
        %3423 = vmatmul.mubr.f32.gmra.mrb[0].mxu0 %v2329
        %v3424 = vpop.f32.mrb[0].mxu0
        %v3425 = vadd.f32 %v3058, %v3424
        %v3426 = vpop.f32.mrb[0].mxu0
        %v3427 = vadd.f32 %v3062, %v3426
        %3428 = vdwg.mxu0
        %3429 = vmatprep.subr.mxu0 %v2818
        %3430 = vmatpush1.msra.mxu0 %v2817
        %3431 = vmatprep.subr.mxu0 %v2825
        %3432 = vmatpush1.msra.mxu0 %v2824
        %3433 = vmatprep.subr.mxu0 %v2832
        %3434 = vmatpush1.msra.mxu0 %v2831
        %3435 = vmatprep.subr.mxu0 %v2839
        %3436 = vmatpush1.msra.mxu0 %v2838
        %3437 = vmatprep.subr.mxu0 %v2846
        %3438 = vmatpush1.msra.mxu0 %v2845
        %3439 = vmatprep.subr.mxu0 %v2853
        %3440 = vmatpush1.msra.mxu0 %v2852
        %3441 = vmatprep.subr.mxu0 %v2860
        %3442 = vmatpush1.msra.mxu0 %v2859
        %3443 = vmatprep.subr.mxu0 %v2867
        %3444 = vmatpush1.msra.mxu0 %v2866
        %3445 = vmatprep.subr.mxu0 %v2874
        %3446 = vmatpush1.msra.mxu0 %v2873
        %3447 = vmatprep.subr.mxu0 %v2881
        %3448 = vmatpush1.msra.mxu0 %v2880
        %3449 = vmatprep.subr.mxu0 %v2888
        %3450 = vmatpush1.msra.mxu0 %v2887
        %3451 = vmatprep.subr.mxu0 %v2895
        %3452 = vmatpush1.msra.mxu0 %v2894
        %3453 = vmatprep.subr.mxu0 %v2902
        %3454 = vmatpush1.msra.mxu0 %v2901
        %3455 = vmatprep.subr.mxu0 %v2909
        %3456 = vmatpush1.msra.mxu0 %v2908
        %3457 = vmatprep.subr.mxu0 %v2916
        %3458 = vmatpush1.msra.mxu0 %v2915
        %3459 = vmatprep.subr.mxu0 %v2923
        %3460 = vmatpush1.msra.mxu0 %v2922
        %3461 = vmatprep.subr.mxu0 %v2930
        %3462 = vmatpush1.msra.mxu0 %v2929
        %3463 = vmatprep.subr.mxu0 %v2937
        %3464 = vmatpush1.msra.mxu0 %v2936
        %3465 = vmatprep.subr.mxu0 %v2944
        %3466 = vmatpush1.msra.mxu0 %v2943
        %3467 = vmatprep.subr.mxu0 %v2951
        %3468 = vmatpush1.msra.mxu0 %v2950
        %3469 = vmatprep.subr.mxu0 %v2958
        %3470 = vmatpush1.msra.mxu0 %v2957
        %3471 = vmatprep.subr.mxu0 %v2965
        %3472 = vmatpush1.msra.mxu0 %v2964
        %3473 = vmatprep.subr.mxu0 %v2972
        %3474 = vmatpush1.msra.mxu0 %v2971
        %3475 = vmatprep.subr.mxu0 %v2979
        %3476 = vmatpush1.msra.mxu0 %v2978
        %3477 = vmatprep.subr.mxu0 %v2986
        %3478 = vmatpush1.msra.mxu0 %v2985
        %3479 = vmatprep.subr.mxu0 %v2993
        %3480 = vmatpush1.msra.mxu0 %v2992
        %3481 = vmatprep.subr.mxu0 %v3000
        %3482 = vmatpush1.msra.mxu0 %v2999
        %3483 = vmatprep.subr.mxu0 %v3007
        %3484 = vmatpush1.msra.mxu0 %v3006
        %3485 = vmatprep.subr.mxu0 %v3014
        %3486 = vmatpush1.msra.mxu0 %v3013
        %3487 = vmatprep.subr.mxu0 %v3021
        %3488 = vmatpush1.msra.mxu0 %v3020
        %3489 = vmatprep.subr.mxu0 %v3028
        %3490 = vmatpush1.msra.mxu0 %v3027
        %3491 = vmatprep.subr.mxu0 %v3035
        %3492 = vmatpush1.msra.mxu0 %v3034
        %3493 = vmatprep.mubr.f32.mxu0 %v2332
        %3494 = vmatmul.mubr.f32.gmra.mrb[0].mxu0 %v2331
        %v3495 = vpop.f32.mrb[0].mxu0
        %v3496 = vadd.f32 %v3425, %v3495
        %v3497 = vpop.f32.mrb[0].mxu0
        %v3498 = vadd.f32 %v3427, %v3497
        %3499 = vdwg.mxu0
        %3500 = vmatprep.subr.mxu0 0.0
        %3501 = vmatpush1.msra.mxu0 %v2595
        %3502 = vmatprep.subr.mxu0 0.0
        %3503 = vmatpush1.msra.mxu0 %v2602
        %3504 = vmatprep.subr.mxu0 0.0
        %3505 = vmatpush1.msra.mxu0 %v2609
        %3506 = vmatprep.subr.mxu0 0.0
        %3507 = vmatpush1.msra.mxu0 %v2616
        %3508 = vmatprep.subr.mxu0 0.0
        %3509 = vmatpush1.msra.mxu0 %v2623
        %3510 = vmatprep.subr.mxu0 0.0
        %3511 = vmatpush1.msra.mxu0 %v2630
        %3512 = vmatprep.subr.mxu0 0.0
        %3513 = vmatpush1.msra.mxu0 %v2637
        %3514 = vmatprep.subr.mxu0 0.0
        %3515 = vmatpush1.msra.mxu0 %v2644
        %3516 = vmatprep.subr.mxu0 0.0
        %3517 = vmatpush1.msra.mxu0 %v2651
        %3518 = vmatprep.subr.mxu0 0.0
        %3519 = vmatpush1.msra.mxu0 %v2658
        %3520 = vmatprep.subr.mxu0 0.0
        %3521 = vmatpush1.msra.mxu0 %v2665
        %3522 = vmatprep.subr.mxu0 0.0
        %3523 = vmatpush1.msra.mxu0 %v2672
        %3524 = vmatprep.subr.mxu0 0.0
        %3525 = vmatpush1.msra.mxu0 %v2679
        %3526 = vmatprep.subr.mxu0 0.0
        %3527 = vmatpush1.msra.mxu0 %v2686
        %3528 = vmatprep.subr.mxu0 0.0
        %3529 = vmatpush1.msra.mxu0 %v2693
        %3530 = vmatprep.subr.mxu0 0.0
        %3531 = vmatpush1.msra.mxu0 %v2700
        %3532 = vmatprep.subr.mxu0 0.0
        %3533 = vmatpush1.msra.mxu0 %v2707
        %3534 = vmatprep.subr.mxu0 0.0
        %3535 = vmatpush1.msra.mxu0 %v2714
        %3536 = vmatprep.subr.mxu0 0.0
        %3537 = vmatpush1.msra.mxu0 %v2721
        %3538 = vmatprep.subr.mxu0 0.0
        %3539 = vmatpush1.msra.mxu0 %v2728
        %3540 = vmatprep.subr.mxu0 0.0
        %3541 = vmatpush1.msra.mxu0 %v2735
        %3542 = vmatprep.subr.mxu0 0.0
        %3543 = vmatpush1.msra.mxu0 %v2742
        %3544 = vmatprep.subr.mxu0 0.0
        %3545 = vmatpush1.msra.mxu0 %v2749
        %3546 = vmatprep.subr.mxu0 0.0
        %3547 = vmatpush1.msra.mxu0 %v2756
        %3548 = vmatprep.subr.mxu0 0.0
        %3549 = vmatpush1.msra.mxu0 %v2763
        %3550 = vmatprep.subr.mxu0 0.0
        %3551 = vmatpush1.msra.mxu0 %v2770
        %3552 = vmatprep.subr.mxu0 0.0
        %3553 = vmatpush1.msra.mxu0 %v2777
        %3554 = vmatprep.subr.mxu0 0.0
        %3555 = vmatpush1.msra.mxu0 %v2784
        %3556 = vmatprep.subr.mxu0 0.0
        %3557 = vmatpush1.msra.mxu0 %v2791
        %3558 = vmatprep.subr.mxu0 0.0
        %3559 = vmatpush1.msra.mxu0 %v2798
        %3560 = vmatprep.subr.mxu0 0.0
        %3561 = vmatpush1.msra.mxu0 %v2805
        %3562 = vmatprep.subr.mxu0 0.0
        %3563 = vmatpush1.msra.mxu0 %v2812
        %3564 = vmatprep.mubr.f32.mxu0 %v2330
        %3565 = vmatmul.mubr.f32.gmra.mrb[0].mxu0 %v2329
        %v3566 = vpop.f32.mrb[0].mxu0
        %v3567 = vadd.f32 %v3066, %v3566
        %v3568 = vpop.f32.mrb[0].mxu0
        %3569 = vdwg.mxu0
        %3570 = vmatprep.subr.mxu0 0.0
        %3571 = vmatpush1.msra.mxu0 %v2819
        %3572 = vmatprep.subr.mxu0 0.0
        %3573 = vmatpush1.msra.mxu0 %v2826
        %3574 = vmatprep.subr.mxu0 0.0
        %3575 = vmatpush1.msra.mxu0 %v2833
        %3576 = vmatprep.subr.mxu0 0.0
        %3577 = vmatpush1.msra.mxu0 %v2840
        %3578 = vmatprep.subr.mxu0 0.0
        %3579 = vmatpush1.msra.mxu0 %v2847
        %3580 = vmatprep.subr.mxu0 0.0
        %3581 = vmatpush1.msra.mxu0 %v2854
        %3582 = vmatprep.subr.mxu0 0.0
        %3583 = vmatpush1.msra.mxu0 %v2861
        %3584 = vmatprep.subr.mxu0 0.0
        %3585 = vmatpush1.msra.mxu0 %v2868
        %3586 = vmatprep.subr.mxu0 0.0
        %3587 = vmatpush1.msra.mxu0 %v2875
        %3588 = vmatprep.subr.mxu0 0.0
        %3589 = vmatpush1.msra.mxu0 %v2882
        %3590 = vmatprep.subr.mxu0 0.0
        %3591 = vmatpush1.msra.mxu0 %v2889
        %3592 = vmatprep.subr.mxu0 0.0
        %3593 = vmatpush1.msra.mxu0 %v2896
        %3594 = vmatprep.subr.mxu0 0.0
        %3595 = vmatpush1.msra.mxu0 %v2903
        %3596 = vmatprep.subr.mxu0 0.0
        %3597 = vmatpush1.msra.mxu0 %v2910
        %3598 = vmatprep.subr.mxu0 0.0
        %3599 = vmatpush1.msra.mxu0 %v2917
        %3600 = vmatprep.subr.mxu0 0.0
        %3601 = vmatpush1.msra.mxu0 %v2924
        %3602 = vmatprep.subr.mxu0 0.0
        %3603 = vmatpush1.msra.mxu0 %v2931
        %3604 = vmatprep.subr.mxu0 0.0
        %3605 = vmatpush1.msra.mxu0 %v2938
        %3606 = vmatprep.subr.mxu0 0.0
        %3607 = vmatpush1.msra.mxu0 %v2945
        %3608 = vmatprep.subr.mxu0 0.0
        %3609 = vmatpush1.msra.mxu0 %v2952
        %3610 = vmatprep.subr.mxu0 0.0
        %3611 = vmatpush1.msra.mxu0 %v2959
        %3612 = vmatprep.subr.mxu0 0.0
        %3613 = vmatpush1.msra.mxu0 %v2966
        %3614 = vmatprep.subr.mxu0 0.0
        %3615 = vmatpush1.msra.mxu0 %v2973
        %3616 = vmatprep.subr.mxu0 0.0
        %3617 = vmatpush1.msra.mxu0 %v2980
        %3618 = vmatprep.subr.mxu0 0.0
        %3619 = vmatpush1.msra.mxu0 %v2987
        %3620 = vmatprep.subr.mxu0 0.0
        %3621 = vmatpush1.msra.mxu0 %v2994
        %3622 = vmatprep.subr.mxu0 0.0
        %3623 = vmatpush1.msra.mxu0 %v3001
        %3624 = vmatprep.subr.mxu0 0.0
        %3625 = vmatpush1.msra.mxu0 %v3008
        %3626 = vmatprep.subr.mxu0 0.0
        %3627 = vmatpush1.msra.mxu0 %v3015
        %3628 = vmatprep.subr.mxu0 0.0
        %3629 = vmatpush1.msra.mxu0 %v3022
        %3630 = vmatprep.subr.mxu0 0.0
        %3631 = vmatpush1.msra.mxu0 %v3029
        %3632 = vmatprep.subr.mxu0 0.0
        %3633 = vmatpush1.msra.mxu0 %v3036
        %3634 = vmatprep.mubr.f32.mxu0 %v2332
        %3635 = vmatmul.mubr.f32.gmra.mrb[0].mxu0 %v2331
        %v3636 = vpop.f32.mrb[0].mxu0
        %v3637 = vadd.f32 %v3567, %v3636
        %v3638 = vpop.f32.mrb[0].mxu0
        %3639 = vdwg.mxu0
        %v3640 = vtanh.pop %v3212
        %v3641 = vtanh.pop %v3214
        %v3642 = vtanh.pop %v3354
        %v3643 = vtanh.pop %v3356
        %v3644 = vtanh.pop %v3496
        %v3645 = vtanh.pop %v3498
        %v3646 = vtanh.pop %v3637
        %3647 = vst [vmem:[%s486] sm:$0xff] %v3640
        %3648 = vst [vmem:[%s486 + $0x8] sm:$0xff] %v3641
        %3649 = vst [vmem:[%s486 + $0x10] sm:$0xff] %v3642
        %3650 = vst [vmem:[%s486 + $0x18] sm:$0xff] %v3643
        %3651 = vst [vmem:[%s486 + $0x20] sm:$0xff] %v3644
        %3652 = vst [vmem:[%s486 + $0x28] sm:$0xff] %v3645
        %3653 = vst [vmem:[%s486 + $0x30] sm:$0xff] %v3646
        %s3654 = sand.u32 %s301, 1
        %s3655 = scalar_lea.sflag [#allocation4], %s3654
        %s3656 = sand.u32 %s301, 1
        %s3657 = smul.addr %s3656, 56
        %s3658 = scalar_lea.vmem [#allocation10], %s3657
        // Predicated region
        $region85: #{tpu_custom_call.1} parent=67 // pred_check
          %p3659 = pneg %p311
        $region86: #{tpu_custom_call.1} parent=67 // pred_check_branch
          %3661 = sbr.rel (%p3659) target = $region88
        $region87: #{tpu_custom_call.1} parent=67 // pred_region
          %s3663 = ssub.s32 896, 896
          %3664 = vsyncadd %s3655, %s3663
          %s3665 = smul.addr %s31, 7
          %s3666 = smul.addr %s3665, 128
          %s3667 = scalar_lea.hbm %s12, %s3666
          %s3669 = sshll.u32 %s3658, 4
          %s3670 = int_to_ptr.vmem [resolvable:$true] %s3669
          %3672 = dma.vmem_to_hbm [thread:$0]  %s3670, 896, %s3667, %s3655
        $region88: #{tpu_custom_call.1} parent=67 // pred_fallthru
          _
      $region68: #{tpu_custom_call.1} parent=5 // pred_fallthru
        _
      %p3673 = scmp.le.s32.totalorder 2, %s26
      // Predicated region
      $region89: #{tpu_custom_call.1} parent=5 // pred_check
        %p3674 = pneg %p3673
      $region90: #{tpu_custom_call.1} parent=5 // pred_check_branch
        %3676 = sbr.rel (%p3674) target = $region92
      $region91: #{tpu_custom_call.1} parent=5 // pred_region
        %s3677 = ssub.s32 %s26, 2
        // Predicated region
        $region93: #{tpu_custom_call.1} parent=91 // pred_check
          %p3678 = pneg %p317
        $region94: #{tpu_custom_call.1} parent=91 // pred_check_branch
          %3680 = sbr.rel (%p3678) target = $region96
        $region95: #{tpu_custom_call.1} parent=91 // pred_region
          %s3681 = sand.u32 %s302, 1
          %s3682 = scalar_lea.sflag [#allocation4], %s3681
          %s3683 = sand.u32 %s302, 1
          %s3684 = smul.addr %s3683, 56
          %s3685 = scalar_lea.vmem [#allocation10], %s3684
          %3686 = dma.done %s3682, 896
        $region96: #{tpu_custom_call.1} parent=91 // pred_fallthru
          _
      $region92: #{tpu_custom_call.1} parent=5 // pred_fallthru
        _
    $region6: #{tpu_custom_call.1} parent=1 // loop_footer
      %s30 = sadd.s32 1, %s26
    $region7: #{tpu_custom_call.1} parent=1 // loop_footer_branch
      %25 = sbr.rel target = $region3
    $region8: #{tpu_custom_call.1} parent=1 // loop_exit
      _
    %3687 = vsyncpa [#allocation3], 1
    %s3688 = scalar_lea.sflag [#allocation3], 1
    %3689 = vsyncpa %s3688, 1
    %3690 = vsyncpa [#allocation6], 1
    %3691 = vsyncpa [#allocation9], 1
    %3692 = vsyncpa [#allocation4], 1
    %s3693 = scalar_lea.sflag [#allocation4], 1
    %3694 = vsyncpa %s3693, 1

</llo_original>
